<compile_context>
chip_gen: v6e
topology: v6e:2x2x1
jax: 0.10.0
libtpu: 0.0.40
codegen_flags: <defaults>
</compile_context>

<pallas_src>
import math

import numpy as np
import jax
import jax.numpy as jnp
from jax import lax
from jax.experimental import pallas as pl
from jax.experimental.pallas import tpu as pltpu

F32 = jnp.float32
MM_DTYPE = jnp.bfloat16   # MXU operand dtype (accumulation stays f32)
BN_EPS = 1e-5
NEG_INF = -1e30           # applied to f32 scores only (bf16-safe by construction)
LANES = 128


# ---------------------------------------------------------------------------
# Host-side weight packing (done once, outside jit)
# ---------------------------------------------------------------------------
def _ceil_to(x, a):
    return ((x + a - 1) // a) * a


class _Packer:
    """Packs many small 2-D params into one (rows, 128) slab + static metadata."""

    def __init__(self, dtype, row_align):
        self.dtype = dtype
        self.row_align = row_align
        self.chunks = []
        self.meta = []
        self.rows = 0

    def add(self, arr):
        arr = np.asarray(arr, np.float32)
        if arr.ndim == 1:
            arr = arr.reshape(1, -1)
        r, c = arr.shape
        assert c <= LANES, (r, c)
        rp = _ceil_to(r, self.row_align)
        buf = np.zeros((rp, LANES), np.float32)
        buf[:r, :c] = arr
        self.chunks.append(buf)
        self.meta.append((self.rows, r, c))
        self.rows += rp

    def finalize(self):
        total = _ceil_to(max(self.rows, self.row_align), self.row_align)
        buf = np.zeros((total, LANES), np.float32)
        off = 0
        for ch in self.chunks:
            buf[off:off + ch.shape[0]] = ch
            off += ch.shape[0]
        return jnp.asarray(buf).astype(self.dtype), tuple(self.meta)


def prepare_weights(params, cfg):
    """Flatten/pack all weights in the exact order the kernel consumes them."""
    K, H = cfg["K"], cfg["H"]
    C_in = cfg["C_in"]
    chans = list(cfg["channels"])
    E = chans[-1]
    Dh = E // H

    w_align = 16 if MM_DTYPE == jnp.bfloat16 else 8
    wp = _Packer(MM_DTYPE, w_align)   # matmul weights (bf16 on the MXU)
    bp = _Packer(F32, 8)              # biases / vectors (f32)

    # TODO(synk): weight_norm (g * v/||v||) is assumed folded into w1/w2.
    for name in ("enc", "dec"):
        cin = C_in
        for lvl, cout in enumerate(chans):
            blk = params[name][lvl]
            wp.add(np.asarray(blk["w1"]).reshape(K * cin, cout))
            bp.add(blk["b1"])
            wp.add(np.asarray(blk["w2"]).reshape(K * cout, cout))
            bp.add(blk["b2"])
            if cin != cout:
                wp.add(blk["wd"])
                bp.add(blk["bd"])
            cin = cout

    # TODO(synk): real PyTorch checkpoints store in_proj_weight/out_proj.weight
    # applied as x @ W.T -- split + transpose when loading; here params are
    # already stored as x @ W.
    for attn in ("self_attn", "cross_attn"):
        p = params[attn]
        for kname in ("bq", "bk", "bv", "bo"):
            bp.add(p[kname])
        for h in range(H):
            sl = slice(h * Dh, (h + 1) * Dh)
            wp.add(np.asarray(p["wq"])[:, sl])   # (E, Dh)
            wp.add(np.asarray(p["wk"])[:, sl])   # (E, Dh)
            wp.add(np.asarray(p["wv"])[:, sl])   # (E, Dh)
            wp.add(np.asarray(p["wo"])[sl, :])   # (Dh, E)

    # BatchNorm1d (eval, running stats) folded into the final Linear.
    gamma = np.asarray(params["bn_gamma"], np.float32)
    beta = np.asarray(params["bn_beta"], np.float32)
    mean = np.asarray(params["bn_mean"], np.float32)
    var = np.asarray(params["bn_var"], np.float32)
    wl = np.asarray(params["w_lin"], np.float32)
    bl = np.asarray(params["b_lin"], np.float32)
    g = gamma / np.sqrt(var + BN_EPS)            # (1, E)
    wl_fold = g.T * wl                           # (E, classes)
    bl_fold = bl + (beta - mean * g) @ wl        # (1, classes)
    wp.add(wl_fold)
    bp.add(bl_fold)

    w_slab, w_meta = wp.finalize()
    b_slab, b_meta = bp.finalize()
    return w_slab, b_slab, w_meta, b_meta


# ---------------------------------------------------------------------------
# Fused forward kernel
# ---------------------------------------------------------------------------
def _make_fused_kernel(cfg, w_meta, b_meta):
    K, H = cfg["K"], cfg["H"]
    C_in = cfg["C_in"]
    chans = tuple(cfg["channels"])
    E = chans[-1]
    Dh = E // H
    L_enc, L_dec = cfg["L_enc"], cfg["L_dec"]
    classes, P_out = cfg["classes"], cfg["P_out"]
    scale = 1.0 / math.sqrt(Dh)

    def kernel(enc_ref, dec_ref, w_ref, b_ref, out_ref):
        w_it = iter(w_meta)
        b_it = iter(b_meta)

        def take_w():
            off, r, c = next(w_it)                 # static python ints
            return w_ref[off:off + r, 0:c]         # (r, c) bf16 weight

        def take_b():
            off, r, c = next(b_it)
            return b_ref[off:off + r, 0:c]         # (r, c) f32 bias

        def causal_conv(x, wf, b, d, L, cin):
            # Dilated causal Conv1d + Chomp as ONE im2col matmul; causal pad is
            # a static sublane zero-pad + K static slices (no O(L^2) matmuls).
            pad = (K - 1) * d
            xp = x if pad == 0 else jnp.concatenate(
                [jnp.zeros((pad, cin), F32), x], axis=0)
            cols = [xp[k * d:k * d + L, :] for k in range(K)]
            im = cols[0] if K == 1 else jnp.concatenate(cols, axis=1)
            y = jnp.dot(im.astype(MM_DTYPE), wf, preferred_element_type=F32) + b
            return jnp.maximum(y, 0.0)

        def tcn(x, L):
            cin = C_in
            for lvl, cout in enumerate(chans):
                d = 2 ** lvl
                w1, b1 = take_w(), take_b()
                w2, b2 = take_w(), take_b()
                y = causal_conv(x, w1, b1, d, L, cin)
                # TODO(synk): Dropout inside TemporalBlock is identity (eval).
                y = causal_conv(y, w2, b2, d, L, cout)
                if cin != cout:
                    wd, bd = take_w(), take_b()
                    res = jnp.dot(x.astype(MM_DTYPE), wd,
                                  preferred_element_type=F32) + bd
                else:
                    res = x
                x = jnp.maximum(y + res, 0.0)
                cin = cout
            return x

        def softmax_rows(s):                       # s: f32
            m = jnp.max(s, axis=-1, keepdims=True)
            p = jnp.exp(s - m)
            l = jnp.sum(p, axis=-1, keepdims=True)
            r = pl.reciprocal(l, approx=True)      # EUP slot (otherwise idle)
            r = r * (2.0 - l * r)                  # one Newton step -> f32-accurate
            return p * r

        def mha(xq, xkv, Lq, Lk, causal):
            # Per-head projections; output projection folded into the head loop.
            bq, bk, bv, bo = take_b(), take_b(), take_b(), take_b()   # (1, E)
            xq_mm = xq.astype(MM_DTYPE)
            xkv_mm = xkv.astype(MM_DTYPE)
            if causal:
                row = lax.broadcasted_iota(jnp.int32, (Lq, Lk), 0)
                col = lax.broadcasted_iota(jnp.int32, (Lq, Lk), 1)
                keep = col <= row                  # hoisted once, reused per head
            out = jnp.zeros((Lq, E), F32) + bo
            attn_sum = jnp.zeros((Lq, Lk), F32)
            for h in range(H):
                sl = slice(h * Dh, (h + 1) * Dh)
                wq, wk, wv, wo = take_w(), take_w(), take_w(), take_w()
                q = jnp.dot(xq_mm, wq, preferred_element_type=F32) + bq[:, sl]
                k = jnp.dot(xkv_mm, wk, preferred_element_type=F32) + bk[:, sl]
                v = jnp.dot(xkv_mm, wv, preferred_element_type=F32) + bv[:, sl]
                s = lax.dot_general(q.astype(MM_DTYPE), k.astype(MM_DTYPE),
                                    (((1,), (1,)), ((), ())),
                                    preferred_element_type=F32) * scale
                if causal:
                    s = jnp.where(keep, s, NEG_INF)    # f32 scores, bf16-safe
                a = softmax_rows(s)
                attn_sum = attn_sum + a
                ctx = jnp.dot(a.astype(MM_DTYPE), v.astype(MM_DTYPE),
                              preferred_element_type=F32)
                out = out + jnp.dot(ctx.astype(MM_DTYPE), wo,
                                    preferred_element_type=F32)
            return out, attn_sum * (1.0 / H)

        enc_x = enc_ref[...]                       # (L_enc, C_in) f32
        dec_x = dec_ref[...]                       # (L_dec, C_in) f32

        enc_out = tcn(enc_x, L_enc)                # (L_enc, E)
        dec_out = tcn(dec_x, L_dec)                # (L_dec, E)

        sa, self_attn = mha(dec_out, dec_out, L_dec, L_dec, causal=True)
        dec_out = dec_out + sa
        ca, cross_attn = mha(dec_out, enc_out, L_dec, L_enc, causal=False)
        y = dec_out + ca

        # BatchNorm1d (eval) already folded into this Linear at weight prep.
        wl, bl = take_w(), take_b()
        logits = jnp.dot(y.astype(MM_DTYPE), wl, preferred_element_type=F32) + bl

        # Single lane-dense output store: [logits | self_attn | cross_attn | 0].
        used = classes + L_dec + L_enc
        parts = [logits, self_attn, cross_attn]
        if P_out > used:
            parts.append(jnp.zeros((L_dec, P_out - used), F32))
        out_ref[...] = jnp.concatenate(parts, axis=1)

    return kernel


# ---------------------------------------------------------------------------
# Wrapper
# ---------------------------------------------------------------------------
def build_forward(params, cfg):
    cfg = dict(cfg)
    classes = int(np.asarray(params["w_lin"]).shape[-1])
    cfg["classes"] = classes
    w_slab, b_slab, w_meta, b_meta = prepare_weights(params, cfg)
    Rw, Rb = w_slab.shape[0], b_slab.shape[0]

    def forward(encoder_input, target):
        B, L_enc, C_in = encoder_input.shape
        _, L_dec, _ = target.shape
        used = classes + L_dec + L_enc
        P_out = max(LANES, _ceil_to(used, LANES))

        kern = _make_fused_kernel(dict(cfg, L_enc=L_enc, L_dec=L_dec, P_out=P_out),
                                  w_meta, b_meta)

        in_specs = [
            pl.BlockSpec((None, L_enc, C_in), lambda i: (i, 0, 0)),
            pl.BlockSpec((None, L_dec, C_in), lambda i: (i, 0, 0)),
            pl.BlockSpec((Rw, LANES), lambda i: (0, 0)),   # weight slab (VMEM-resident)
            pl.BlockSpec((Rb, LANES), lambda i: (0, 0)),   # bias slab   (VMEM-resident)
        ]
        out_specs = pl.BlockSpec((None, L_dec, P_out), lambda i: (i, 0, 0))
        out_shape = jax.ShapeDtypeStruct((B, L_dec, P_out), F32)

        io_bytes = 4 * (L_enc * C_in + L_dec * C_in + L_dec * P_out)
        vmem_limit = int(min(max(2 * io_bytes + w_slab.nbytes + b_slab.nbytes
                                 + (8 << 20), 32 << 20), 56 << 20))

        slab = pl.pallas_call(
            kern,
            out_shape=out_shape,
            grid=(B,),
            in_specs=in_specs,
            out_specs=out_specs,
            compiler_params=pltpu.CompilerParams(
                dimension_semantics=("parallel",),   # batch -> both v7x cores
                vmem_limit_bytes=vmem_limit),
        )(encoder_input.astype(F32), target.astype(F32), w_slab, b_slab)

        result = slab[:, :, 0:classes]
        self_attn = slab[:, :, classes:classes + L_dec]
        cross_attn = slab[:, :, classes + L_dec:classes + L_dec + L_enc]
        return result, (self_attn, cross_attn)

    return forward


# ---------------------------------------------------------------------------
# Parameter construction (stored pre-transposed: applied as x @ W)
# ---------------------------------------------------------------------------
def init_params(key, C_in, num_channels, K, classes):
    keys = iter(jax.random.split(key, 256))
    nrm = lambda shape, s=0.01: (s * jax.random.normal(next(keys), shape)).astype(F32)
    E = num_channels[-1]
    params = {"enc": [], "dec": []}
    for name in ("enc", "dec"):
        cin = C_in
        for cout in num_channels:
            blk = {"w1": nrm((K, cin, cout)), "b1": nrm((1, cout)),
                   "w2": nrm((K, cout, cout)), "b2": nrm((1, cout))}
            if cin != cout:
                blk["wd"] = nrm((cin, cout))
                blk["bd"] = nrm((1, cout))
            params[name].append(blk)
            cin = cout

    def mha_p():
        return {"wq": nrm((E, E), 0.1), "wk": nrm((E, E), 0.1),
                "wv": nrm((E, E), 0.1), "wo": nrm((E, E), 0.1),
                "bq": nrm((1, E)), "bk": nrm((1, E)),
                "bv": nrm((1, E)), "bo": nrm((1, E))}

    params["self_attn"] = mha_p()
    params["cross_attn"] = mha_p()
    params["bn_gamma"] = jnp.ones((1, E), F32)
    params["bn_beta"] = jnp.zeros((1, E), F32)
    params["bn_mean"] = jnp.zeros((1, E), F32)
    params["bn_var"] = jnp.ones((1, E), F32)
    params["w_lin"] = nrm((E, classes), 0.1)
    params["b_lin"] = nrm((1, classes))
    return params


# ---------------------------------------------------------------------------
# Pure-JAX f32 reference (faithful PyTorch-eval mirror)
# ---------------------------------------------------------------------------
def _ref_conv(x, w, b, d, relu=False):
    B, L, _ = x.shape
    K = w.shape[0]
    xp = jnp.pad(x, ((0, 0), ((K - 1) * d, 0), (0, 0)))
    acc = jnp.zeros((B, L, w.shape[-1]), F32) + b[None]
    for k in range(K):
        acc = acc + jnp.einsum("blc,cd->bld", xp[:, k * d:k * d + L, :], w[k])
    return jnp.maximum(acc, 0.0) if relu else acc


def _ref_tcn(x, blocks):
    for i, blk in enumerate(blocks):
        d = 2 ** i
        y = _ref_conv(x, blk["w1"], blk["b1"], d, relu=True)
        y = _ref_conv(y, blk["w2"], blk["b2"], d, relu=True)
        if "wd" in blk:
            res = jnp.einsum("blc,cd->bld", x, blk["wd"]) + blk["bd"][None]
        else:
            res = x
        x = jnp.maximum(y + res, 0.0)
    return x


def _ref_mha(xq, xkv, p, H, causal):
    B, Lq, E = xq.shape
    Lk = xkv.shape[1]
    Dh = E // H
    q = xq @ p["wq"] + p["bq"][None]
    k = xkv @ p["wk"] + p["bk"][None]
    v = xkv @ p["wv"] + p["bv"][None]
    qh = q.reshape(B, Lq, H, Dh).transpose(0, 2, 1, 3)
    kh = k.reshape(B, Lk, H, Dh).transpose(0, 2, 1, 3)
    vh = v.reshape(B, Lk, H, Dh).transpose(0, 2, 1, 3)
    s = jnp.einsum("bhqd,bhkd->bhqk", qh, kh) / math.sqrt(Dh)
    if causal:
        keep = jnp.tril(jnp.ones((Lq, Lk), bool))
        s = jnp.where(keep[None, None], s, NEG_INF)
    a = jax.nn.softmax(s, axis=-1)
    ctx = jnp.einsum("bhqk,bhkd->bhqd", a, vh).transpose(0, 2, 1, 3).reshape(B, Lq, E)
    return ctx @ p["wo"] + p["bo"][None], a.mean(axis=1)


def _ref_forward(params, encoder_input, target, H):
    enc = _ref_tcn(encoder_input, params["enc"])
    dec = _ref_tcn(target, params["dec"])
    sa, self_attn = _ref_mha(dec, dec, params["self_attn"], H, True)
    dec = dec + sa
    ca, cross_attn = _ref_mha(dec, enc, params["cross_attn"], H, False)
    out = dec + ca
    xn = ((out - params["bn_mean"][None]) * lax.rsqrt(params["bn_var"][None] + BN_EPS)
          * params["bn_gamma"][None] + params["bn_beta"][None])
    res = xn @ params["w_lin"] + params["b_lin"][None]
    return res, (self_attn, cross_attn)


if __name__ == "__main__":
    B, L_enc, L_dec = 2, 16, 8
    C_in, K, num_heads, classes = 4, 3, 4, 2
    num_channels = [32, 32]          # embed_dim 32, divisible by num_heads
    cfg = dict(C_in=C_in, channels=num_channels, K=K, H=num_heads)

    key = jax.random.PRNGKey(0)
    kp, ke, kt = jax.random.split(key, 3)
    params = init_params(kp, C_in, num_channels, K, classes)
    encoder_input = jax.random.normal(ke, (B, L_enc, C_in), F32)
    target = jax.random.normal(kt, (B, L_dec, C_in), F32)

    fwd = jax.jit(build_forward(params, cfg))
    result, (self_attn, cross_attn) = fwd(encoder_input, target)
    jax.block_until_ready((result, self_attn, cross_attn))

    r_ref, (sa_ref, ca_ref) = _ref_forward(params, encoder_input, target, num_heads)
    assert result.shape == (B, L_dec, classes)
    assert self_attn.shape == (B, L_dec, L_dec)
    assert cross_attn.shape == (B, L_dec, L_enc)

    if MM_DTYPE == jnp.float32:
        r_rtol, r_atol, a_atol = 1e-4, 1e-5, 1e-5
    else:   # bf16 MXU operands with f32 accumulation
        r_rtol, r_atol, a_atol = 5e-2, 2e-3, 1e-3
    assert jnp.allclose(result, r_ref, rtol=r_rtol, atol=r_atol), \
        float(jnp.max(jnp.abs(result - r_ref)))
    assert jnp.allclose(self_attn, sa_ref, rtol=r_rtol, atol=a_atol), \
        float(jnp.max(jnp.abs(self_attn - sa_ref)))
    assert jnp.allclose(cross_attn, ca_ref, rtol=r_rtol, atol=a_atol), \
        float(jnp.max(jnp.abs(cross_attn - ca_ref)))
    print("KERNEL_OK")
</pallas_src>

<mosaic_0001>
module attributes {stable_mosaic.version = 11 : i64} {
  func.func @kernel(%arg0: i32, %arg1: memref<1x16x4xf32, #tpu.memory_space<vmem>>, %arg2: memref<1x8x4xf32, #tpu.memory_space<vmem>>, %arg3: memref<1568x128xbf16, #tpu.memory_space<vmem>>, %arg4: memref<152x128xf32, #tpu.memory_space<vmem>>, %arg5: memref<1x8x128xf32, #tpu.memory_space<vmem>>) attributes {dimension_semantics = [#tpu.dimension_semantics<parallel>], iteration_bounds = array<i64: 2>, scalar_prefetch = 0 : i64, scratch_operands = 0 : i64, tpu.core_type = #tpu.core_type<tc>, window_params = [{transform_indices = @transform_0, window_bounds = array<i64: 1, 16, 4>}, {transform_indices = @transform_1, window_bounds = array<i64: 1, 8, 4>}, {pipeline_mode = #tpu.pipeline_mode<synchronous>, transform_indices = @transform_2, window_bounds = array<i64: 1568, 128>}, {pipeline_mode = #tpu.pipeline_mode<synchronous>, transform_indices = @transform_3, window_bounds = array<i64: 152, 128>}, {transform_indices = @transform_4, window_bounds = array<i64: 1, 8, 128>}]} {
    %c0 = arith.constant 0 : index
    %c0_0 = arith.constant 0 : index
    %c0_1 = arith.constant 0 : index
    %0 = vector.load %arg1[%c0, %c0_0, %c0_1] : memref<1x16x4xf32, #tpu.memory_space<vmem>>, vector<1x16x4xf32>
    %1 = vector.shape_cast %0 : vector<1x16x4xf32> to vector<16x4xf32>
    %c0_2 = arith.constant 0 : index
    %c0_3 = arith.constant 0 : index
    %c0_4 = arith.constant 0 : index
    %2 = vector.load %arg2[%c0_2, %c0_3, %c0_4] : memref<1x8x4xf32, #tpu.memory_space<vmem>>, vector<1x8x4xf32>
    %3 = vector.shape_cast %2 : vector<1x8x4xf32> to vector<8x4xf32>
    %c0_5 = arith.constant 0 : index
    %c0_6 = arith.constant 0 : index
    %4 = vector.load %arg3[%c0_5, %c0_6] : memref<1568x128xbf16, #tpu.memory_space<vmem>>, vector<12x32xbf16>
    %c0_7 = arith.constant 0 : index
    %c0_8 = arith.constant 0 : index
    %5 = vector.load %arg4[%c0_7, %c0_8] : memref<152x128xf32, #tpu.memory_space<vmem>>, vector<1x32xf32>
    %c16 = arith.constant 16 : index
    %c0_9 = arith.constant 0 : index
    %6 = vector.load %arg3[%c16, %c0_9] : memref<1568x128xbf16, #tpu.memory_space<vmem>>, vector<96x32xbf16>
    %c8 = arith.constant 8 : index
    %c0_10 = arith.constant 0 : index
    %7 = vector.load %arg4[%c8, %c0_10] : memref<152x128xf32, #tpu.memory_space<vmem>>, vector<1x32xf32>
    %cst = arith.constant 0.000000e+00 : f32
    %8 = vector.broadcast %cst : f32 to vector<2x4xf32>
    %9 = tpu.concatenate %8, %1 in 0 : vector<2x4xf32>, vector<16x4xf32> -> vector<18x4xf32>
    %10 = vector.extract_strided_slice %9 {offsets = [0, 0], sizes = [16, 4], strides = [1, 1]} : vector<18x4xf32> to vector<16x4xf32>
    %11 = vector.extract_strided_slice %9 {offsets = [1, 0], sizes = [16, 4], strides = [1, 1]} : vector<18x4xf32> to vector<16x4xf32>
    %12 = vector.extract_strided_slice %9 {offsets = [2, 0], sizes = [16, 4], strides = [1, 1]} : vector<18x4xf32> to vector<16x4xf32>
    %13 = tpu.concatenate %10, %11, %12 in 1 : vector<16x4xf32>, vector<16x4xf32>, vector<16x4xf32> -> vector<16x12xf32>
    %14 = arith.truncf %13 : vector<16x12xf32> to vector<16x12xbf16>
    %cst_11 = arith.constant dense<0.000000e+00> : vector<16x32xf32>
    %15 = tpu.matmul %14, %4, %cst_11 {dimension_numbers = #tpu.dot_dimension_numbers<[1], [0], [0], [1], [0, 0, 1, 1], [], []>} : vector<16x12xbf16>, vector<12x32xbf16>, vector<16x32xf32> -> vector<16x32xf32>
    %16 = vector.broadcast %5 : vector<1x32xf32> to vector<16x32xf32>
    %17 = arith.addf %15, %16 : vector<16x32xf32>
    %cst_12 = arith.constant 0.000000e+00 : f32
    %18 = vector.broadcast %cst_12 : f32 to vector<16x32xf32>
    %19 = arith.maximumf %17, %18 : vector<16x32xf32>
    %cst_13 = arith.constant 0.000000e+00 : f32
    %20 = vector.broadcast %cst_13 : f32 to vector<2x32xf32>
    %21 = tpu.concatenate %20, %19 in 0 : vector<2x32xf32>, vector<16x32xf32> -> vector<18x32xf32>
    %22 = vector.extract_strided_slice %21 {offsets = [0, 0], sizes = [16, 32], strides = [1, 1]} : vector<18x32xf32> to vector<16x32xf32>
    %23 = vector.extract_strided_slice %21 {offsets = [1, 0], sizes = [16, 32], strides = [1, 1]} : vector<18x32xf32> to vector<16x32xf32>
    %24 = vector.extract_strided_slice %21 {offsets = [2, 0], sizes = [16, 32], strides = [1, 1]} : vector<18x32xf32> to vector<16x32xf32>
    %25 = tpu.concatenate %22, %23, %24 in 1 : vector<16x32xf32>, vector<16x32xf32>, vector<16x32xf32> -> vector<16x96xf32>
    %26 = arith.truncf %25 : vector<16x96xf32> to vector<16x96xbf16>
    %cst_14 = arith.constant dense<0.000000e+00> : vector<16x32xf32>
    %27 = tpu.matmul %26, %6, %cst_14 {dimension_numbers = #tpu.dot_dimension_numbers<[1], [0], [0], [1], [0, 0, 1, 1], [], []>} : vector<16x96xbf16>, vector<96x32xbf16>, vector<16x32xf32> -> vector<16x32xf32>
    %28 = vector.broadcast %7 : vector<1x32xf32> to vector<16x32xf32>
    %29 = arith.addf %27, %28 : vector<16x32xf32>
    %cst_15 = arith.constant 0.000000e+00 : f32
    %30 = vector.broadcast %cst_15 : f32 to vector<16x32xf32>
    %31 = arith.maximumf %29, %30 : vector<16x32xf32>
    %c112 = arith.constant 112 : index
    %c0_16 = arith.constant 0 : index
    %32 = vector.load %arg3[%c112, %c0_16] : memref<1568x128xbf16, #tpu.memory_space<vmem>>, vector<4x32xbf16>
    %c16_17 = arith.constant 16 : index
    %c0_18 = arith.constant 0 : index
    %33 = vector.load %arg4[%c16_17, %c0_18] : memref<152x128xf32, #tpu.memory_space<vmem>>, vector<1x32xf32>
    %34 = arith.truncf %1 : vector<16x4xf32> to vector<16x4xbf16>
    %cst_19 = arith.constant dense<0.000000e+00> : vector<16x32xf32>
    %35 = tpu.matmul %34, %32, %cst_19 {dimension_numbers = #tpu.dot_dimension_numbers<[1], [0], [0], [1], [0, 0, 1, 1], [], []>} : vector<16x4xbf16>, vector<4x32xbf16>, vector<16x32xf32> -> vector<16x32xf32>
    %36 = vector.broadcast %33 : vector<1x32xf32> to vector<16x32xf32>
    %37 = arith.addf %35, %36 : vector<16x32xf32>
    %38 = arith.addf %31, %37 : vector<16x32xf32>
    %cst_20 = arith.constant 0.000000e+00 : f32
    %39 = vector.broadcast %cst_20 : f32 to vector<16x32xf32>
    %40 = arith.maximumf %38, %39 : vector<16x32xf32>
    %c128 = arith.constant 128 : index
    %c0_21 = arith.constant 0 : index
    %41 = vector.load %arg3[%c128, %c0_21] : memref<1568x128xbf16, #tpu.memory_space<vmem>>, vector<96x32xbf16>
    %c24 = arith.constant 24 : index
    %c0_22 = arith.constant 0 : index
    %42 = vector.load %arg4[%c24, %c0_22] : memref<152x128xf32, #tpu.memory_space<vmem>>, vector<1x32xf32>
    %c224 = arith.constant 224 : index
    %c0_23 = arith.constant 0 : index
    %43 = vector.load %arg3[%c224, %c0_23] : memref<1568x128xbf16, #tpu.memory_space<vmem>>, vector<96x32xbf16>
    %c32 = arith.constant 32 : index
    %c0_24 = arith.constant 0 : index
    %44 = vector.load %arg4[%c32, %c0_24] : memref<152x128xf32, #tpu.memory_space<vmem>>, vector<1x32xf32>
    %cst_25 = arith.constant 0.000000e+00 : f32
    %45 = vector.broadcast %cst_25 : f32 to vector<4x32xf32>
    %46 = tpu.concatenate %45, %40 in 0 : vector<4x32xf32>, vector<16x32xf32> -> vector<20x32xf32>
    %47 = vector.extract_strided_slice %46 {offsets = [0, 0], sizes = [16, 32], strides = [1, 1]} : vector<20x32xf32> to vector<16x32xf32>
    %48 = vector.extract_strided_slice %46 {offsets = [2, 0], sizes = [16, 32], strides = [1, 1]} : vector<20x32xf32> to vector<16x32xf32>
    %49 = vector.extract_strided_slice %46 {offsets = [4, 0], sizes = [16, 32], strides = [1, 1]} : vector<20x32xf32> to vector<16x32xf32>
    %50 = tpu.concatenate %47, %48, %49 in 1 : vector<16x32xf32>, vector<16x32xf32>, vector<16x32xf32> -> vector<16x96xf32>
    %51 = arith.truncf %50 : vector<16x96xf32> to vector<16x96xbf16>
    %cst_26 = arith.constant dense<0.000000e+00> : vector<16x32xf32>
    %52 = tpu.matmul %51, %41, %cst_26 {dimension_numbers = #tpu.dot_dimension_numbers<[1], [0], [0], [1], [0, 0, 1, 1], [], []>} : vector<16x96xbf16>, vector<96x32xbf16>, vector<16x32xf32> -> vector<16x32xf32>
    %53 = vector.broadcast %42 : vector<1x32xf32> to vector<16x32xf32>
    %54 = arith.addf %52, %53 : vector<16x32xf32>
    %cst_27 = arith.constant 0.000000e+00 : f32
    %55 = vector.broadcast %cst_27 : f32 to vector<16x32xf32>
    %56 = arith.maximumf %54, %55 : vector<16x32xf32>
    %cst_28 = arith.constant 0.000000e+00 : f32
    %57 = vector.broadcast %cst_28 : f32 to vector<4x32xf32>
    %58 = tpu.concatenate %57, %56 in 0 : vector<4x32xf32>, vector<16x32xf32> -> vector<20x32xf32>
    %59 = vector.extract_strided_slice %58 {offsets = [0, 0], sizes = [16, 32], strides = [1, 1]} : vector<20x32xf32> to vector<16x32xf32>
    %60 = vector.extract_strided_slice %58 {offsets = [2, 0], sizes = [16, 32], strides = [1, 1]} : vector<20x32xf32> to vector<16x32xf32>
    %61 = vector.extract_strided_slice %58 {offsets = [4, 0], sizes = [16, 32], strides = [1, 1]} : vector<20x32xf32> to vector<16x32xf32>
    %62 = tpu.concatenate %59, %60, %61 in 1 : vector<16x32xf32>, vector<16x32xf32>, vector<16x32xf32> -> vector<16x96xf32>
    %63 = arith.truncf %62 : vector<16x96xf32> to vector<16x96xbf16>
    %cst_29 = arith.constant dense<0.000000e+00> : vector<16x32xf32>
    %64 = tpu.matmul %63, %43, %cst_29 {dimension_numbers = #tpu.dot_dimension_numbers<[1], [0], [0], [1], [0, 0, 1, 1], [], []>} : vector<16x96xbf16>, vector<96x32xbf16>, vector<16x32xf32> -> vector<16x32xf32>
    %65 = vector.broadcast %44 : vector<1x32xf32> to vector<16x32xf32>
    %66 = arith.addf %64, %65 : vector<16x32xf32>
    %cst_30 = arith.constant 0.000000e+00 : f32
    %67 = vector.broadcast %cst_30 : f32 to vector<16x32xf32>
    %68 = arith.maximumf %66, %67 : vector<16x32xf32>
    %69 = arith.addf %68, %40 : vector<16x32xf32>
    %cst_31 = arith.constant 0.000000e+00 : f32
    %70 = vector.broadcast %cst_31 : f32 to vector<16x32xf32>
    %71 = arith.maximumf %69, %70 : vector<16x32xf32>
    %c320 = arith.constant 320 : index
    %c0_32 = arith.constant 0 : index
    %72 = vector.load %arg3[%c320, %c0_32] : memref<1568x128xbf16, #tpu.memory_space<vmem>>, vector<12x32xbf16>
    %c40 = arith.constant 40 : index
    %c0_33 = arith.constant 0 : index
    %73 = vector.load %arg4[%c40, %c0_33] : memref<152x128xf32, #tpu.memory_space<vmem>>, vector<1x32xf32>
    %c336 = arith.constant 336 : index
    %c0_34 = arith.constant 0 : index
    %74 = vector.load %arg3[%c336, %c0_34] : memref<1568x128xbf16, #tpu.memory_space<vmem>>, vector<96x32xbf16>
    %c48 = arith.constant 48 : index
    %c0_35 = arith.constant 0 : index
    %75 = vector.load %arg4[%c48, %c0_35] : memref<152x128xf32, #tpu.memory_space<vmem>>, vector<1x32xf32>
    %cst_36 = arith.constant 0.000000e+00 : f32
    %76 = vector.broadcast %cst_36 : f32 to vector<2x4xf32>
    %77 = tpu.concatenate %76, %3 in 0 : vector<2x4xf32>, vector<8x4xf32> -> vector<10x4xf32>
    %78 = vector.extract_strided_slice %77 {offsets = [0, 0], sizes = [8, 4], strides = [1, 1]} : vector<10x4xf32> to vector<8x4xf32>
    %79 = vector.extract_strided_slice %77 {offsets = [1, 0], sizes = [8, 4], strides = [1, 1]} : vector<10x4xf32> to vector<8x4xf32>
    %80 = vector.extract_strided_slice %77 {offsets = [2, 0], sizes = [8, 4], strides = [1, 1]} : vector<10x4xf32> to vector<8x4xf32>
    %81 = tpu.concatenate %78, %79, %80 in 1 : vector<8x4xf32>, vector<8x4xf32>, vector<8x4xf32> -> vector<8x12xf32>
    %82 = arith.truncf %81 : vector<8x12xf32> to vector<8x12xbf16>
    %cst_37 = arith.constant dense<0.000000e+00> : vector<8x32xf32>
    %83 = tpu.matmul %82, %72, %cst_37 {dimension_numbers = #tpu.dot_dimension_numbers<[1], [0], [0], [1], [0, 0, 1, 1], [], []>} : vector<8x12xbf16>, vector<12x32xbf16>, vector<8x32xf32> -> vector<8x32xf32>
    %84 = vector.broadcast %73 : vector<1x32xf32> to vector<8x32xf32>
    %85 = arith.addf %83, %84 : vector<8x32xf32>
    %cst_38 = arith.constant 0.000000e+00 : f32
    %86 = vector.broadcast %cst_38 : f32 to vector<8x32xf32>
    %87 = arith.maximumf %85, %86 : vector<8x32xf32>
    %cst_39 = arith.constant 0.000000e+00 : f32
    %88 = vector.broadcast %cst_39 : f32 to vector<2x32xf32>
    %89 = tpu.concatenate %88, %87 in 0 : vector<2x32xf32>, vector<8x32xf32> -> vector<10x32xf32>
    %90 = vector.extract_strided_slice %89 {offsets = [0, 0], sizes = [8, 32], strides = [1, 1]} : vector<10x32xf32> to vector<8x32xf32>
    %91 = vector.extract_strided_slice %89 {offsets = [1, 0], sizes = [8, 32], strides = [1, 1]} : vector<10x32xf32> to vector<8x32xf32>
    %92 = vector.extract_strided_slice %89 {offsets = [2, 0], sizes = [8, 32], strides = [1, 1]} : vector<10x32xf32> to vector<8x32xf32>
    %93 = tpu.concatenate %90, %91, %92 in 1 : vector<8x32xf32>, vector<8x32xf32>, vector<8x32xf32> -> vector<8x96xf32>
    %94 = arith.truncf %93 : vector<8x96xf32> to vector<8x96xbf16>
    %cst_40 = arith.constant dense<0.000000e+00> : vector<8x32xf32>
    %95 = tpu.matmul %94, %74, %cst_40 {dimension_numbers = #tpu.dot_dimension_numbers<[1], [0], [0], [1], [0, 0, 1, 1], [], []>} : vector<8x96xbf16>, vector<96x32xbf16>, vector<8x32xf32> -> vector<8x32xf32>
    %96 = vector.broadcast %75 : vector<1x32xf32> to vector<8x32xf32>
    %97 = arith.addf %95, %96 : vector<8x32xf32>
    %cst_41 = arith.constant 0.000000e+00 : f32
    %98 = vector.broadcast %cst_41 : f32 to vector<8x32xf32>
    %99 = arith.maximumf %97, %98 : vector<8x32xf32>
    %c432 = arith.constant 432 : index
    %c0_42 = arith.constant 0 : index
    %100 = vector.load %arg3[%c432, %c0_42] : memref<1568x128xbf16, #tpu.memory_space<vmem>>, vector<4x32xbf16>
    %c56 = arith.constant 56 : index
    %c0_43 = arith.constant 0 : index
    %101 = vector.load %arg4[%c56, %c0_43] : memref<152x128xf32, #tpu.memory_space<vmem>>, vector<1x32xf32>
    %102 = arith.truncf %3 : vector<8x4xf32> to vector<8x4xbf16>
    %cst_44 = arith.constant dense<0.000000e+00> : vector<8x32xf32>
    %103 = tpu.matmul %102, %100, %cst_44 {dimension_numbers = #tpu.dot_dimension_numbers<[1], [0], [0], [1], [0, 0, 1, 1], [], []>} : vector<8x4xbf16>, vector<4x32xbf16>, vector<8x32xf32> -> vector<8x32xf32>
    %104 = vector.broadcast %101 : vector<1x32xf32> to vector<8x32xf32>
    %105 = arith.addf %103, %104 : vector<8x32xf32>
    %106 = arith.addf %99, %105 : vector<8x32xf32>
    %cst_45 = arith.constant 0.000000e+00 : f32
    %107 = vector.broadcast %cst_45 : f32 to vector<8x32xf32>
    %108 = arith.maximumf %106, %107 : vector<8x32xf32>
    %c448 = arith.constant 448 : index
    %c0_46 = arith.constant 0 : index
    %109 = vector.load %arg3[%c448, %c0_46] : memref<1568x128xbf16, #tpu.memory_space<vmem>>, vector<96x32xbf16>
    %c64 = arith.constant 64 : index
    %c0_47 = arith.constant 0 : index
    %110 = vector.load %arg4[%c64, %c0_47] : memref<152x128xf32, #tpu.memory_space<vmem>>, vector<1x32xf32>
    %c544 = arith.constant 544 : index
    %c0_48 = arith.constant 0 : index
    %111 = vector.load %arg3[%c544, %c0_48] : memref<1568x128xbf16, #tpu.memory_space<vmem>>, vector<96x32xbf16>
    %c72 = arith.constant 72 : index
    %c0_49 = arith.constant 0 : index
    %112 = vector.load %arg4[%c72, %c0_49] : memref<152x128xf32, #tpu.memory_space<vmem>>, vector<1x32xf32>
    %cst_50 = arith.constant 0.000000e+00 : f32
    %113 = vector.broadcast %cst_50 : f32 to vector<4x32xf32>
    %114 = tpu.concatenate %113, %108 in 0 : vector<4x32xf32>, vector<8x32xf32> -> vector<12x32xf32>
    %115 = vector.extract_strided_slice %114 {offsets = [0, 0], sizes = [8, 32], strides = [1, 1]} : vector<12x32xf32> to vector<8x32xf32>
    %116 = vector.extract_strided_slice %114 {offsets = [2, 0], sizes = [8, 32], strides = [1, 1]} : vector<12x32xf32> to vector<8x32xf32>
    %117 = vector.extract_strided_slice %114 {offsets = [4, 0], sizes = [8, 32], strides = [1, 1]} : vector<12x32xf32> to vector<8x32xf32>
    %118 = tpu.concatenate %115, %116, %117 in 1 : vector<8x32xf32>, vector<8x32xf32>, vector<8x32xf32> -> vector<8x96xf32>
    %119 = arith.truncf %118 : vector<8x96xf32> to vector<8x96xbf16>
    %cst_51 = arith.constant dense<0.000000e+00> : vector<8x32xf32>
    %120 = tpu.matmul %119, %109, %cst_51 {dimension_numbers = #tpu.dot_dimension_numbers<[1], [0], [0], [1], [0, 0, 1, 1], [], []>} : vector<8x96xbf16>, vector<96x32xbf16>, vector<8x32xf32> -> vector<8x32xf32>
    %121 = vector.broadcast %110 : vector<1x32xf32> to vector<8x32xf32>
    %122 = arith.addf %120, %121 : vector<8x32xf32>
    %cst_52 = arith.constant 0.000000e+00 : f32
    %123 = vector.broadcast %cst_52 : f32 to vector<8x32xf32>
    %124 = arith.maximumf %122, %123 : vector<8x32xf32>
    %cst_53 = arith.constant 0.000000e+00 : f32
    %125 = vector.broadcast %cst_53 : f32 to vector<4x32xf32>
    %126 = tpu.concatenate %125, %124 in 0 : vector<4x32xf32>, vector<8x32xf32> -> vector<12x32xf32>
    %127 = vector.extract_strided_slice %126 {offsets = [0, 0], sizes = [8, 32], strides = [1, 1]} : vector<12x32xf32> to vector<8x32xf32>
    %128 = vector.extract_strided_slice %126 {offsets = [2, 0], sizes = [8, 32], strides = [1, 1]} : vector<12x32xf32> to vector<8x32xf32>
    %129 = vector.extract_strided_slice %126 {offsets = [4, 0], sizes = [8, 32], strides = [1, 1]} : vector<12x32xf32> to vector<8x32xf32>
    %130 = tpu.concatenate %127, %128, %129 in 1 : vector<8x32xf32>, vector<8x32xf32>, vector<8x32xf32> -> vector<8x96xf32>
    %131 = arith.truncf %130 : vector<8x96xf32> to vector<8x96xbf16>
    %cst_54 = arith.constant dense<0.000000e+00> : vector<8x32xf32>
    %132 = tpu.matmul %131, %111, %cst_54 {dimension_numbers = #tpu.dot_dimension_numbers<[1], [0], [0], [1], [0, 0, 1, 1], [], []>} : vector<8x96xbf16>, vector<96x32xbf16>, vector<8x32xf32> -> vector<8x32xf32>
    %133 = vector.broadcast %112 : vector<1x32xf32> to vector<8x32xf32>
    %134 = arith.addf %132, %133 : vector<8x32xf32>
    %cst_55 = arith.constant 0.000000e+00 : f32
    %135 = vector.broadcast %cst_55 : f32 to vector<8x32xf32>
    %136 = arith.maximumf %134, %135 : vector<8x32xf32>
    %137 = arith.addf %136, %108 : vector<8x32xf32>
    %cst_56 = arith.constant 0.000000e+00 : f32
    %138 = vector.broadcast %cst_56 : f32 to vector<8x32xf32>
    %139 = arith.maximumf %137, %138 : vector<8x32xf32>
    %c80 = arith.constant 80 : index
    %c0_57 = arith.constant 0 : index
    %140 = vector.load %arg4[%c80, %c0_57] : memref<152x128xf32, #tpu.memory_space<vmem>>, vector<1x32xf32>
    %c88 = arith.constant 88 : index
    %c0_58 = arith.constant 0 : index
    %141 = vector.load %arg4[%c88, %c0_58] : memref<152x128xf32, #tpu.memory_space<vmem>>, vector<1x32xf32>
    %c96 = arith.constant 96 : index
    %c0_59 = arith.constant 0 : index
    %142 = vector.load %arg4[%c96, %c0_59] : memref<152x128xf32, #tpu.memory_space<vmem>>, vector<1x32xf32>
    %c104 = arith.constant 104 : index
    %c0_60 = arith.constant 0 : index
    %143 = vector.load %arg4[%c104, %c0_60] : memref<152x128xf32, #tpu.memory_space<vmem>>, vector<1x32xf32>
    %144 = arith.truncf %139 : vector<8x32xf32> to vector<8x32xbf16>
    %145 = arith.truncf %139 : vector<8x32xf32> to vector<8x32xbf16>
    %146 = tpu.iota {dimensions = array<i32: 0>} : vector<8x8xi32>
    %147 = tpu.iota {dimensions = array<i32: 1>} : vector<8x8xi32>
    %148 = arith.cmpi sle, %147, %146 : vector<8x8xi32>
    %cst_61 = arith.constant 0.000000e+00 : f32
    %149 = vector.broadcast %cst_61 : f32 to vector<8x32xf32>
    %150 = vector.broadcast %143 : vector<1x32xf32> to vector<8x32xf32>
    %151 = arith.addf %149, %150 : vector<8x32xf32>
    %cst_62 = arith.constant 0.000000e+00 : f32
    %152 = vector.broadcast %cst_62 : f32 to vector<8x8xf32>
    %c640 = arith.constant 640 : index
    %c0_63 = arith.constant 0 : index
    %153 = vector.load %arg3[%c640, %c0_63] : memref<1568x128xbf16, #tpu.memory_space<vmem>>, vector<32x8xbf16>
    %c672 = arith.constant 672 : index
    %c0_64 = arith.constant 0 : index
    %154 = vector.load %arg3[%c672, %c0_64] : memref<1568x128xbf16, #tpu.memory_space<vmem>>, vector<32x8xbf16>
    %c704 = arith.constant 704 : index
    %c0_65 = arith.constant 0 : index
    %155 = vector.load %arg3[%c704, %c0_65] : memref<1568x128xbf16, #tpu.memory_space<vmem>>, vector<32x8xbf16>
    %c736 = arith.constant 736 : index
    %c0_66 = arith.constant 0 : index
    %156 = vector.load %arg3[%c736, %c0_66] : memref<1568x128xbf16, #tpu.memory_space<vmem>>, vector<8x32xbf16>
    %cst_67 = arith.constant dense<0.000000e+00> : vector<8x8xf32>
    %157 = tpu.matmul %144, %153, %cst_67 {dimension_numbers = #tpu.dot_dimension_numbers<[1], [0], [0], [1], [0, 0, 1, 1], [], []>} : vector<8x32xbf16>, vector<32x8xbf16>, vector<8x8xf32> -> vector<8x8xf32>
    %158 = vector.extract_strided_slice %140 {offsets = [0, 0], sizes = [1, 8], strides = [1, 1]} : vector<1x32xf32> to vector<1x8xf32>
    %159 = vector.broadcast %158 : vector<1x8xf32> to vector<8x8xf32>
    %160 = arith.addf %157, %159 : vector<8x8xf32>
    %cst_68 = arith.constant dense<0.000000e+00> : vector<8x8xf32>
    %161 = tpu.matmul %145, %154, %cst_68 {dimension_numbers = #tpu.dot_dimension_numbers<[1], [0], [0], [1], [0, 0, 1, 1], [], []>} : vector<8x32xbf16>, vector<32x8xbf16>, vector<8x8xf32> -> vector<8x8xf32>
    %162 = vector.extract_strided_slice %141 {offsets = [0, 0], sizes = [1, 8], strides = [1, 1]} : vector<1x32xf32> to vector<1x8xf32>
    %163 = vector.broadcast %162 : vector<1x8xf32> to vector<8x8xf32>
    %164 = arith.addf %161, %163 : vector<8x8xf32>
    %cst_69 = arith.constant dense<0.000000e+00> : vector<8x8xf32>
    %165 = tpu.matmul %145, %155, %cst_69 {dimension_numbers = #tpu.dot_dimension_numbers<[1], [0], [0], [1], [0, 0, 1, 1], [], []>} : vector<8x32xbf16>, vector<32x8xbf16>, vector<8x8xf32> -> vector<8x8xf32>
    %166 = vector.extract_strided_slice %142 {offsets = [0, 0], sizes = [1, 8], strides = [1, 1]} : vector<1x32xf32> to vector<1x8xf32>
    %167 = vector.broadcast %166 : vector<1x8xf32> to vector<8x8xf32>
    %168 = arith.addf %165, %167 : vector<8x8xf32>
    %169 = arith.truncf %160 : vector<8x8xf32> to vector<8x8xbf16>
    %170 = arith.truncf %164 : vector<8x8xf32> to vector<8x8xbf16>
    %cst_70 = arith.constant dense<0.000000e+00> : vector<8x8xf32>
    %171 = tpu.matmul %169, %170, %cst_70 {dimension_numbers = #tpu.dot_dimension_numbers<[1], [1], [0], [0], [0, 0, 1, 0], [], []>} : vector<8x8xbf16>, vector<8x8xbf16>, vector<8x8xf32> -> vector<8x8xf32>
    %cst_71 = arith.constant 0.353553385 : f32
    %172 = vector.broadcast %cst_71 : f32 to vector<8x8xf32>
    %173 = arith.mulf %171, %172 : vector<8x8xf32>
    %cst_72 = arith.constant -1.000000e+30 : f32
    %174 = vector.broadcast %cst_72 : f32 to vector<8x8xf32>
    %175 = arith.select %148, %173, %174 : vector<8x8xi1>, vector<8x8xf32>
    %cst_73 = arith.constant dense<0xFF800000> : vector<8xf32>
    %176 = vector.multi_reduction <maximumf>, %175, %cst_73 [1] : vector<8x8xf32> to vector<8xf32>
    %177 = vector.shape_cast %176 : vector<8xf32> to vector<8x1xf32>
    %178 = vector.broadcast %177 : vector<8x1xf32> to vector<8x8xf32>
    %179 = arith.subf %175, %178 : vector<8x8xf32>
    %180 = math.exp %179 : vector<8x8xf32>
    %cst_74 = arith.constant dense<0.000000e+00> : vector<8xf32>
    %181 = vector.multi_reduction <add>, %180, %cst_74 [1] : vector<8x8xf32> to vector<8xf32>
    %182 = vector.shape_cast %181 : vector<8xf32> to vector<8x1xf32>
    %183 = tpu.reciprocal %182 {approx = true} : vector<8x1xf32> -> vector<8x1xf32>
    %184 = arith.mulf %182, %183 : vector<8x1xf32>
    %cst_75 = arith.constant 2.000000e+00 : f32
    %185 = vector.broadcast %cst_75 : f32 to vector<8x1xf32>
    %186 = arith.subf %185, %184 : vector<8x1xf32>
    %187 = arith.mulf %183, %186 : vector<8x1xf32>
    %188 = vector.broadcast %187 : vector<8x1xf32> to vector<8x8xf32>
    %189 = arith.mulf %180, %188 : vector<8x8xf32>
    %190 = arith.addf %152, %189 : vector<8x8xf32>
    %191 = arith.truncf %189 : vector<8x8xf32> to vector<8x8xbf16>
    %192 = arith.truncf %168 : vector<8x8xf32> to vector<8x8xbf16>
    %cst_76 = arith.constant dense<0.000000e+00> : vector<8x8xf32>
    %193 = tpu.matmul %191, %192, %cst_76 {dimension_numbers = #tpu.dot_dimension_numbers<[1], [0], [0], [1], [0, 0, 1, 1], [], []>} : vector<8x8xbf16>, vector<8x8xbf16>, vector<8x8xf32> -> vector<8x8xf32>
    %194 = arith.truncf %193 : vector<8x8xf32> to vector<8x8xbf16>
    %cst_77 = arith.constant dense<0.000000e+00> : vector<8x32xf32>
    %195 = tpu.matmul %194, %156, %cst_77 {dimension_numbers = #tpu.dot_dimension_numbers<[1], [0], [0], [1], [0, 0, 1, 1], [], []>} : vector<8x8xbf16>, vector<8x32xbf16>, vector<8x32xf32> -> vector<8x32xf32>
    %196 = arith.addf %151, %195 : vector<8x32xf32>
    %c752 = arith.constant 752 : index
    %c0_78 = arith.constant 0 : index
    %197 = vector.load %arg3[%c752, %c0_78] : memref<1568x128xbf16, #tpu.memory_space<vmem>>, vector<32x8xbf16>
    %c784 = arith.constant 784 : index
    %c0_79 = arith.constant 0 : index
    %198 = vector.load %arg3[%c784, %c0_79] : memref<1568x128xbf16, #tpu.memory_space<vmem>>, vector<32x8xbf16>
    %c816 = arith.constant 816 : index
    %c0_80 = arith.constant 0 : index
    %199 = vector.load %arg3[%c816, %c0_80] : memref<1568x128xbf16, #tpu.memory_space<vmem>>, vector<32x8xbf16>
    %c848 = arith.constant 848 : index
    %c0_81 = arith.constant 0 : index
    %200 = vector.load %arg3[%c848, %c0_81] : memref<1568x128xbf16, #tpu.memory_space<vmem>>, vector<8x32xbf16>
    %cst_82 = arith.constant dense<0.000000e+00> : vector<8x8xf32>
    %201 = tpu.matmul %144, %197, %cst_82 {dimension_numbers = #tpu.dot_dimension_numbers<[1], [0], [0], [1], [0, 0, 1, 1], [], []>} : vector<8x32xbf16>, vector<32x8xbf16>, vector<8x8xf32> -> vector<8x8xf32>
    %202 = vector.extract_strided_slice %140 {offsets = [0, 8], sizes = [1, 8], strides = [1, 1]} : vector<1x32xf32> to vector<1x8xf32>
    %203 = vector.broadcast %202 : vector<1x8xf32> to vector<8x8xf32>
    %204 = arith.addf %201, %203 : vector<8x8xf32>
    %cst_83 = arith.constant dense<0.000000e+00> : vector<8x8xf32>
    %205 = tpu.matmul %145, %198, %cst_83 {dimension_numbers = #tpu.dot_dimension_numbers<[1], [0], [0], [1], [0, 0, 1, 1], [], []>} : vector<8x32xbf16>, vector<32x8xbf16>, vector<8x8xf32> -> vector<8x8xf32>
    %206 = vector.extract_strided_slice %141 {offsets = [0, 8], sizes = [1, 8], strides = [1, 1]} : vector<1x32xf32> to vector<1x8xf32>
    %207 = vector.broadcast %206 : vector<1x8xf32> to vector<8x8xf32>
    %208 = arith.addf %205, %207 : vector<8x8xf32>
    %cst_84 = arith.constant dense<0.000000e+00> : vector<8x8xf32>
    %209 = tpu.matmul %145, %199, %cst_84 {dimension_numbers = #tpu.dot_dimension_numbers<[1], [0], [0], [1], [0, 0, 1, 1], [], []>} : vector<8x32xbf16>, vector<32x8xbf16>, vector<8x8xf32> -> vector<8x8xf32>
    %210 = vector.extract_strided_slice %142 {offsets = [0, 8], sizes = [1, 8], strides = [1, 1]} : vector<1x32xf32> to vector<1x8xf32>
    %211 = vector.broadcast %210 : vector<1x8xf32> to vector<8x8xf32>
    %212 = arith.addf %209, %211 : vector<8x8xf32>
    %213 = arith.truncf %204 : vector<8x8xf32> to vector<8x8xbf16>
    %214 = arith.truncf %208 : vector<8x8xf32> to vector<8x8xbf16>
    %cst_85 = arith.constant dense<0.000000e+00> : vector<8x8xf32>
    %215 = tpu.matmul %213, %214, %cst_85 {dimension_numbers = #tpu.dot_dimension_numbers<[1], [1], [0], [0], [0, 0, 1, 0], [], []>} : vector<8x8xbf16>, vector<8x8xbf16>, vector<8x8xf32> -> vector<8x8xf32>
    %cst_86 = arith.constant 0.353553385 : f32
    %216 = vector.broadcast %cst_86 : f32 to vector<8x8xf32>
    %217 = arith.mulf %215, %216 : vector<8x8xf32>
    %cst_87 = arith.constant -1.000000e+30 : f32
    %218 = vector.broadcast %cst_87 : f32 to vector<8x8xf32>
    %219 = arith.select %148, %217, %218 : vector<8x8xi1>, vector<8x8xf32>
    %cst_88 = arith.constant dense<0xFF800000> : vector<8xf32>
    %220 = vector.multi_reduction <maximumf>, %219, %cst_88 [1] : vector<8x8xf32> to vector<8xf32>
    %221 = vector.shape_cast %220 : vector<8xf32> to vector<8x1xf32>
    %222 = vector.broadcast %221 : vector<8x1xf32> to vector<8x8xf32>
    %223 = arith.subf %219, %222 : vector<8x8xf32>
    %224 = math.exp %223 : vector<8x8xf32>
    %cst_89 = arith.constant dense<0.000000e+00> : vector<8xf32>
    %225 = vector.multi_reduction <add>, %224, %cst_89 [1] : vector<8x8xf32> to vector<8xf32>
    %226 = vector.shape_cast %225 : vector<8xf32> to vector<8x1xf32>
    %227 = tpu.reciprocal %226 {approx = true} : vector<8x1xf32> -> vector<8x1xf32>
    %228 = arith.mulf %226, %227 : vector<8x1xf32>
    %cst_90 = arith.constant 2.000000e+00 : f32
    %229 = vector.broadcast %cst_90 : f32 to vector<8x1xf32>
    %230 = arith.subf %229, %228 : vector<8x1xf32>
    %231 = arith.mulf %227, %230 : vector<8x1xf32>
    %232 = vector.broadcast %231 : vector<8x1xf32> to vector<8x8xf32>
    %233 = arith.mulf %224, %232 : vector<8x8xf32>
    %234 = arith.addf %190, %233 : vector<8x8xf32>
    %235 = arith.truncf %233 : vector<8x8xf32> to vector<8x8xbf16>
    %236 = arith.truncf %212 : vector<8x8xf32> to vector<8x8xbf16>
    %cst_91 = arith.constant dense<0.000000e+00> : vector<8x8xf32>
    %237 = tpu.matmul %235, %236, %cst_91 {dimension_numbers = #tpu.dot_dimension_numbers<[1], [0], [0], [1], [0, 0, 1, 1], [], []>} : vector<8x8xbf16>, vector<8x8xbf16>, vector<8x8xf32> -> vector<8x8xf32>
    %238 = arith.truncf %237 : vector<8x8xf32> to vector<8x8xbf16>
    %cst_92 = arith.constant dense<0.000000e+00> : vector<8x32xf32>
    %239 = tpu.matmul %238, %200, %cst_92 {dimension_numbers = #tpu.dot_dimension_numbers<[1], [0], [0], [1], [0, 0, 1, 1], [], []>} : vector<8x8xbf16>, vector<8x32xbf16>, vector<8x32xf32> -> vector<8x32xf32>
    %240 = arith.addf %196, %239 : vector<8x32xf32>
    %c864 = arith.constant 864 : index
    %c0_93 = arith.constant 0 : index
    %241 = vector.load %arg3[%c864, %c0_93] : memref<1568x128xbf16, #tpu.memory_space<vmem>>, vector<32x8xbf16>
    %c896 = arith.constant 896 : index
    %c0_94 = arith.constant 0 : index
    %242 = vector.load %arg3[%c896, %c0_94] : memref<1568x128xbf16, #tpu.memory_space<vmem>>, vector<32x8xbf16>
    %c928 = arith.constant 928 : index
    %c0_95 = arith.constant 0 : index
    %243 = vector.load %arg3[%c928, %c0_95] : memref<1568x128xbf16, #tpu.memory_space<vmem>>, vector<32x8xbf16>
    %c960 = arith.constant 960 : index
    %c0_96 = arith.constant 0 : index
    %244 = vector.load %arg3[%c960, %c0_96] : memref<1568x128xbf16, #tpu.memory_space<vmem>>, vector<8x32xbf16>
    %cst_97 = arith.constant dense<0.000000e+00> : vector<8x8xf32>
    %245 = tpu.matmul %144, %241, %cst_97 {dimension_numbers = #tpu.dot_dimension_numbers<[1], [0], [0], [1], [0, 0, 1, 1], [], []>} : vector<8x32xbf16>, vector<32x8xbf16>, vector<8x8xf32> -> vector<8x8xf32>
    %246 = vector.extract_strided_slice %140 {offsets = [0, 16], sizes = [1, 8], strides = [1, 1]} : vector<1x32xf32> to vector<1x8xf32>
    %247 = vector.broadcast %246 : vector<1x8xf32> to vector<8x8xf32>
    %248 = arith.addf %245, %247 : vector<8x8xf32>
    %cst_98 = arith.constant dense<0.000000e+00> : vector<8x8xf32>
    %249 = tpu.matmul %145, %242, %cst_98 {dimension_numbers = #tpu.dot_dimension_numbers<[1], [0], [0], [1], [0, 0, 1, 1], [], []>} : vector<8x32xbf16>, vector<32x8xbf16>, vector<8x8xf32> -> vector<8x8xf32>
    %250 = vector.extract_strided_slice %141 {offsets = [0, 16], sizes = [1, 8], strides = [1, 1]} : vector<1x32xf32> to vector<1x8xf32>
    %251 = vector.broadcast %250 : vector<1x8xf32> to vector<8x8xf32>
    %252 = arith.addf %249, %251 : vector<8x8xf32>
    %cst_99 = arith.constant dense<0.000000e+00> : vector<8x8xf32>
    %253 = tpu.matmul %145, %243, %cst_99 {dimension_numbers = #tpu.dot_dimension_numbers<[1], [0], [0], [1], [0, 0, 1, 1], [], []>} : vector<8x32xbf16>, vector<32x8xbf16>, vector<8x8xf32> -> vector<8x8xf32>
    %254 = vector.extract_strided_slice %142 {offsets = [0, 16], sizes = [1, 8], strides = [1, 1]} : vector<1x32xf32> to vector<1x8xf32>
    %255 = vector.broadcast %254 : vector<1x8xf32> to vector<8x8xf32>
    %256 = arith.addf %253, %255 : vector<8x8xf32>
    %257 = arith.truncf %248 : vector<8x8xf32> to vector<8x8xbf16>
    %258 = arith.truncf %252 : vector<8x8xf32> to vector<8x8xbf16>
    %cst_100 = arith.constant dense<0.000000e+00> : vector<8x8xf32>
    %259 = tpu.matmul %257, %258, %cst_100 {dimension_numbers = #tpu.dot_dimension_numbers<[1], [1], [0], [0], [0, 0, 1, 0], [], []>} : vector<8x8xbf16>, vector<8x8xbf16>, vector<8x8xf32> -> vector<8x8xf32>
    %cst_101 = arith.constant 0.353553385 : f32
    %260 = vector.broadcast %cst_101 : f32 to vector<8x8xf32>
    %261 = arith.mulf %259, %260 : vector<8x8xf32>
    %cst_102 = arith.constant -1.000000e+30 : f32
    %262 = vector.broadcast %cst_102 : f32 to vector<8x8xf32>
    %263 = arith.select %148, %261, %262 : vector<8x8xi1>, vector<8x8xf32>
    %cst_103 = arith.constant dense<0xFF800000> : vector<8xf32>
    %264 = vector.multi_reduction <maximumf>, %263, %cst_103 [1] : vector<8x8xf32> to vector<8xf32>
    %265 = vector.shape_cast %264 : vector<8xf32> to vector<8x1xf32>
    %266 = vector.broadcast %265 : vector<8x1xf32> to vector<8x8xf32>
    %267 = arith.subf %263, %266 : vector<8x8xf32>
    %268 = math.exp %267 : vector<8x8xf32>
    %cst_104 = arith.constant dense<0.000000e+00> : vector<8xf32>
    %269 = vector.multi_reduction <add>, %268, %cst_104 [1] : vector<8x8xf32> to vector<8xf32>
    %270 = vector.shape_cast %269 : vector<8xf32> to vector<8x1xf32>
    %271 = tpu.reciprocal %270 {approx = true} : vector<8x1xf32> -> vector<8x1xf32>
    %272 = arith.mulf %270, %271 : vector<8x1xf32>
    %cst_105 = arith.constant 2.000000e+00 : f32
    %273 = vector.broadcast %cst_105 : f32 to vector<8x1xf32>
    %274 = arith.subf %273, %272 : vector<8x1xf32>
    %275 = arith.mulf %271, %274 : vector<8x1xf32>
    %276 = vector.broadcast %275 : vector<8x1xf32> to vector<8x8xf32>
    %277 = arith.mulf %268, %276 : vector<8x8xf32>
    %278 = arith.addf %234, %277 : vector<8x8xf32>
    %279 = arith.truncf %277 : vector<8x8xf32> to vector<8x8xbf16>
    %280 = arith.truncf %256 : vector<8x8xf32> to vector<8x8xbf16>
    %cst_106 = arith.constant dense<0.000000e+00> : vector<8x8xf32>
    %281 = tpu.matmul %279, %280, %cst_106 {dimension_numbers = #tpu.dot_dimension_numbers<[1], [0], [0], [1], [0, 0, 1, 1], [], []>} : vector<8x8xbf16>, vector<8x8xbf16>, vector<8x8xf32> -> vector<8x8xf32>
    %282 = arith.truncf %281 : vector<8x8xf32> to vector<8x8xbf16>
    %cst_107 = arith.constant dense<0.000000e+00> : vector<8x32xf32>
    %283 = tpu.matmul %282, %244, %cst_107 {dimension_numbers = #tpu.dot_dimension_numbers<[1], [0], [0], [1], [0, 0, 1, 1], [], []>} : vector<8x8xbf16>, vector<8x32xbf16>, vector<8x32xf32> -> vector<8x32xf32>
    %284 = arith.addf %240, %283 : vector<8x32xf32>
    %c976 = arith.constant 976 : index
    %c0_108 = arith.constant 0 : index
    %285 = vector.load %arg3[%c976, %c0_108] : memref<1568x128xbf16, #tpu.memory_space<vmem>>, vector<32x8xbf16>
    %c1008 = arith.constant 1008 : index
    %c0_109 = arith.constant 0 : index
    %286 = vector.load %arg3[%c1008, %c0_109] : memref<1568x128xbf16, #tpu.memory_space<vmem>>, vector<32x8xbf16>
    %c1040 = arith.constant 1040 : index
    %c0_110 = arith.constant 0 : index
    %287 = vector.load %arg3[%c1040, %c0_110] : memref<1568x128xbf16, #tpu.memory_space<vmem>>, vector<32x8xbf16>
    %c1072 = arith.constant 1072 : index
    %c0_111 = arith.constant 0 : index
    %288 = vector.load %arg3[%c1072, %c0_111] : memref<1568x128xbf16, #tpu.memory_space<vmem>>, vector<8x32xbf16>
    %cst_112 = arith.constant dense<0.000000e+00> : vector<8x8xf32>
    %289 = tpu.matmul %144, %285, %cst_112 {dimension_numbers = #tpu.dot_dimension_numbers<[1], [0], [0], [1], [0, 0, 1, 1], [], []>} : vector<8x32xbf16>, vector<32x8xbf16>, vector<8x8xf32> -> vector<8x8xf32>
    %290 = vector.extract_strided_slice %140 {offsets = [0, 24], sizes = [1, 8], strides = [1, 1]} : vector<1x32xf32> to vector<1x8xf32>
    %291 = vector.broadcast %290 : vector<1x8xf32> to vector<8x8xf32>
    %292 = arith.addf %289, %291 : vector<8x8xf32>
    %cst_113 = arith.constant dense<0.000000e+00> : vector<8x8xf32>
    %293 = tpu.matmul %145, %286, %cst_113 {dimension_numbers = #tpu.dot_dimension_numbers<[1], [0], [0], [1], [0, 0, 1, 1], [], []>} : vector<8x32xbf16>, vector<32x8xbf16>, vector<8x8xf32> -> vector<8x8xf32>
    %294 = vector.extract_strided_slice %141 {offsets = [0, 24], sizes = [1, 8], strides = [1, 1]} : vector<1x32xf32> to vector<1x8xf32>
    %295 = vector.broadcast %294 : vector<1x8xf32> to vector<8x8xf32>
    %296 = arith.addf %293, %295 : vector<8x8xf32>
    %cst_114 = arith.constant dense<0.000000e+00> : vector<8x8xf32>
    %297 = tpu.matmul %145, %287, %cst_114 {dimension_numbers = #tpu.dot_dimension_numbers<[1], [0], [0], [1], [0, 0, 1, 1], [], []>} : vector<8x32xbf16>, vector<32x8xbf16>, vector<8x8xf32> -> vector<8x8xf32>
    %298 = vector.extract_strided_slice %142 {offsets = [0, 24], sizes = [1, 8], strides = [1, 1]} : vector<1x32xf32> to vector<1x8xf32>
    %299 = vector.broadcast %298 : vector<1x8xf32> to vector<8x8xf32>
    %300 = arith.addf %297, %299 : vector<8x8xf32>
    %301 = arith.truncf %292 : vector<8x8xf32> to vector<8x8xbf16>
    %302 = arith.truncf %296 : vector<8x8xf32> to vector<8x8xbf16>
    %cst_115 = arith.constant dense<0.000000e+00> : vector<8x8xf32>
    %303 = tpu.matmul %301, %302, %cst_115 {dimension_numbers = #tpu.dot_dimension_numbers<[1], [1], [0], [0], [0, 0, 1, 0], [], []>} : vector<8x8xbf16>, vector<8x8xbf16>, vector<8x8xf32> -> vector<8x8xf32>
    %cst_116 = arith.constant 0.353553385 : f32
    %304 = vector.broadcast %cst_116 : f32 to vector<8x8xf32>
    %305 = arith.mulf %303, %304 : vector<8x8xf32>
    %cst_117 = arith.constant -1.000000e+30 : f32
    %306 = vector.broadcast %cst_117 : f32 to vector<8x8xf32>
    %307 = arith.select %148, %305, %306 : vector<8x8xi1>, vector<8x8xf32>
    %cst_118 = arith.constant dense<0xFF800000> : vector<8xf32>
    %308 = vector.multi_reduction <maximumf>, %307, %cst_118 [1] : vector<8x8xf32> to vector<8xf32>
    %309 = vector.shape_cast %308 : vector<8xf32> to vector<8x1xf32>
    %310 = vector.broadcast %309 : vector<8x1xf32> to vector<8x8xf32>
    %311 = arith.subf %307, %310 : vector<8x8xf32>
    %312 = math.exp %311 : vector<8x8xf32>
    %cst_119 = arith.constant dense<0.000000e+00> : vector<8xf32>
    %313 = vector.multi_reduction <add>, %312, %cst_119 [1] : vector<8x8xf32> to vector<8xf32>
    %314 = vector.shape_cast %313 : vector<8xf32> to vector<8x1xf32>
    %315 = tpu.reciprocal %314 {approx = true} : vector<8x1xf32> -> vector<8x1xf32>
    %316 = arith.mulf %314, %315 : vector<8x1xf32>
    %cst_120 = arith.constant 2.000000e+00 : f32
    %317 = vector.broadcast %cst_120 : f32 to vector<8x1xf32>
    %318 = arith.subf %317, %316 : vector<8x1xf32>
    %319 = arith.mulf %315, %318 : vector<8x1xf32>
    %320 = vector.broadcast %319 : vector<8x1xf32> to vector<8x8xf32>
    %321 = arith.mulf %312, %320 : vector<8x8xf32>
    %322 = arith.addf %278, %321 : vector<8x8xf32>
    %323 = arith.truncf %321 : vector<8x8xf32> to vector<8x8xbf16>
    %324 = arith.truncf %300 : vector<8x8xf32> to vector<8x8xbf16>
    %cst_121 = arith.constant dense<0.000000e+00> : vector<8x8xf32>
    %325 = tpu.matmul %323, %324, %cst_121 {dimension_numbers = #tpu.dot_dimension_numbers<[1], [0], [0], [1], [0, 0, 1, 1], [], []>} : vector<8x8xbf16>, vector<8x8xbf16>, vector<8x8xf32> -> vector<8x8xf32>
    %326 = arith.truncf %325 : vector<8x8xf32> to vector<8x8xbf16>
    %cst_122 = arith.constant dense<0.000000e+00> : vector<8x32xf32>
    %327 = tpu.matmul %326, %288, %cst_122 {dimension_numbers = #tpu.dot_dimension_numbers<[1], [0], [0], [1], [0, 0, 1, 1], [], []>} : vector<8x8xbf16>, vector<8x32xbf16>, vector<8x32xf32> -> vector<8x32xf32>
    %328 = arith.addf %284, %327 : vector<8x32xf32>
    %cst_123 = arith.constant 2.500000e-01 : f32
    %329 = vector.broadcast %cst_123 : f32 to vector<8x8xf32>
    %330 = arith.mulf %322, %329 : vector<8x8xf32>
    %331 = arith.addf %139, %328 : vector<8x32xf32>
    %c112_124 = arith.constant 112 : index
    %c0_125 = arith.constant 0 : index
    %332 = vector.load %arg4[%c112_124, %c0_125] : memref<152x128xf32, #tpu.memory_space<vmem>>, vector<1x32xf32>
    %c120 = arith.constant 120 : index
    %c0_126 = arith.constant 0 : index
    %333 = vector.load %arg4[%c120, %c0_126] : memref<152x128xf32, #tpu.memory_space<vmem>>, vector<1x32xf32>
    %c128_127 = arith.constant 128 : index
    %c0_128 = arith.constant 0 : index
    %334 = vector.load %arg4[%c128_127, %c0_128] : memref<152x128xf32, #tpu.memory_space<vmem>>, vector<1x32xf32>
    %c136 = arith.constant 136 : index
    %c0_129 = arith.constant 0 : index
    %335 = vector.load %arg4[%c136, %c0_129] : memref<152x128xf32, #tpu.memory_space<vmem>>, vector<1x32xf32>
    %336 = arith.truncf %331 : vector<8x32xf32> to vector<8x32xbf16>
    %337 = arith.truncf %71 : vector<16x32xf32> to vector<16x32xbf16>
    %cst_130 = arith.constant 0.000000e+00 : f32
    %338 = vector.broadcast %cst_130 : f32 to vector<8x32xf32>
    %339 = vector.broadcast %335 : vector<1x32xf32> to vector<8x32xf32>
    %340 = arith.addf %338, %339 : vector<8x32xf32>
    %cst_131 = arith.constant 0.000000e+00 : f32
    %341 = vector.broadcast %cst_131 : f32 to vector<8x16xf32>
    %c1088 = arith.constant 1088 : index
    %c0_132 = arith.constant 0 : index
    %342 = vector.load %arg3[%c1088, %c0_132] : memref<1568x128xbf16, #tpu.memory_space<vmem>>, vector<32x8xbf16>
    %c1120 = arith.constant 1120 : index
    %c0_133 = arith.constant 0 : index
    %343 = vector.load %arg3[%c1120, %c0_133] : memref<1568x128xbf16, #tpu.memory_space<vmem>>, vector<32x8xbf16>
    %c1152 = arith.constant 1152 : index
    %c0_134 = arith.constant 0 : index
    %344 = vector.load %arg3[%c1152, %c0_134] : memref<1568x128xbf16, #tpu.memory_space<vmem>>, vector<32x8xbf16>
    %c1184 = arith.constant 1184 : index
    %c0_135 = arith.constant 0 : index
    %345 = vector.load %arg3[%c1184, %c0_135] : memref<1568x128xbf16, #tpu.memory_space<vmem>>, vector<8x32xbf16>
    %cst_136 = arith.constant dense<0.000000e+00> : vector<8x8xf32>
    %346 = tpu.matmul %336, %342, %cst_136 {dimension_numbers = #tpu.dot_dimension_numbers<[1], [0], [0], [1], [0, 0, 1, 1], [], []>} : vector<8x32xbf16>, vector<32x8xbf16>, vector<8x8xf32> -> vector<8x8xf32>
    %347 = vector.extract_strided_slice %332 {offsets = [0, 0], sizes = [1, 8], strides = [1, 1]} : vector<1x32xf32> to vector<1x8xf32>
    %348 = vector.broadcast %347 : vector<1x8xf32> to vector<8x8xf32>
    %349 = arith.addf %346, %348 : vector<8x8xf32>
    %cst_137 = arith.constant dense<0.000000e+00> : vector<16x8xf32>
    %350 = tpu.matmul %337, %343, %cst_137 {dimension_numbers = #tpu.dot_dimension_numbers<[1], [0], [0], [1], [0, 0, 1, 1], [], []>} : vector<16x32xbf16>, vector<32x8xbf16>, vector<16x8xf32> -> vector<16x8xf32>
    %351 = vector.extract_strided_slice %333 {offsets = [0, 0], sizes = [1, 8], strides = [1, 1]} : vector<1x32xf32> to vector<1x8xf32>
    %352 = vector.broadcast %351 : vector<1x8xf32> to vector<16x8xf32>
    %353 = arith.addf %350, %352 : vector<16x8xf32>
    %cst_138 = arith.constant dense<0.000000e+00> : vector<16x8xf32>
    %354 = tpu.matmul %337, %344, %cst_138 {dimension_numbers = #tpu.dot_dimension_numbers<[1], [0], [0], [1], [0, 0, 1, 1], [], []>} : vector<16x32xbf16>, vector<32x8xbf16>, vector<16x8xf32> -> vector<16x8xf32>
    %355 = vector.extract_strided_slice %334 {offsets = [0, 0], sizes = [1, 8], strides = [1, 1]} : vector<1x32xf32> to vector<1x8xf32>
    %356 = vector.broadcast %355 : vector<1x8xf32> to vector<16x8xf32>
    %357 = arith.addf %354, %356 : vector<16x8xf32>
    %358 = arith.truncf %349 : vector<8x8xf32> to vector<8x8xbf16>
    %359 = arith.truncf %353 : vector<16x8xf32> to vector<16x8xbf16>
    %cst_139 = arith.constant dense<0.000000e+00> : vector<8x16xf32>
    %360 = tpu.matmul %358, %359, %cst_139 {dimension_numbers = #tpu.dot_dimension_numbers<[1], [1], [0], [0], [0, 0, 1, 0], [], []>} : vector<8x8xbf16>, vector<16x8xbf16>, vector<8x16xf32> -> vector<8x16xf32>
    %cst_140 = arith.constant 0.353553385 : f32
    %361 = vector.broadcast %cst_140 : f32 to vector<8x16xf32>
    %362 = arith.mulf %360, %361 : vector<8x16xf32>
    %cst_141 = arith.constant dense<0xFF800000> : vector<8xf32>
    %363 = vector.multi_reduction <maximumf>, %362, %cst_141 [1] : vector<8x16xf32> to vector<8xf32>
    %364 = vector.shape_cast %363 : vector<8xf32> to vector<8x1xf32>
    %365 = vector.broadcast %364 : vector<8x1xf32> to vector<8x16xf32>
    %366 = arith.subf %362, %365 : vector<8x16xf32>
    %367 = math.exp %366 : vector<8x16xf32>
    %cst_142 = arith.constant dense<0.000000e+00> : vector<8xf32>
    %368 = vector.multi_reduction <add>, %367, %cst_142 [1] : vector<8x16xf32> to vector<8xf32>
    %369 = vector.shape_cast %368 : vector<8xf32> to vector<8x1xf32>
    %370 = tpu.reciprocal %369 {approx = true} : vector<8x1xf32> -> vector<8x1xf32>
    %371 = arith.mulf %369, %370 : vector<8x1xf32>
    %cst_143 = arith.constant 2.000000e+00 : f32
    %372 = vector.broadcast %cst_143 : f32 to vector<8x1xf32>
    %373 = arith.subf %372, %371 : vector<8x1xf32>
    %374 = arith.mulf %370, %373 : vector<8x1xf32>
    %375 = vector.broadcast %374 : vector<8x1xf32> to vector<8x16xf32>
    %376 = arith.mulf %367, %375 : vector<8x16xf32>
    %377 = arith.addf %341, %376 : vector<8x16xf32>
    %378 = arith.truncf %376 : vector<8x16xf32> to vector<8x16xbf16>
    %379 = arith.truncf %357 : vector<16x8xf32> to vector<16x8xbf16>
    %cst_144 = arith.constant dense<0.000000e+00> : vector<8x8xf32>
    %380 = tpu.matmul %378, %379, %cst_144 {dimension_numbers = #tpu.dot_dimension_numbers<[1], [0], [0], [1], [0, 0, 1, 1], [], []>} : vector<8x16xbf16>, vector<16x8xbf16>, vector<8x8xf32> -> vector<8x8xf32>
    %381 = arith.truncf %380 : vector<8x8xf32> to vector<8x8xbf16>
    %cst_145 = arith.constant dense<0.000000e+00> : vector<8x32xf32>
    %382 = tpu.matmul %381, %345, %cst_145 {dimension_numbers = #tpu.dot_dimension_numbers<[1], [0], [0], [1], [0, 0, 1, 1], [], []>} : vector<8x8xbf16>, vector<8x32xbf16>, vector<8x32xf32> -> vector<8x32xf32>
    %383 = arith.addf %340, %382 : vector<8x32xf32>
    %c1200 = arith.constant 1200 : index
    %c0_146 = arith.constant 0 : index
    %384 = vector.load %arg3[%c1200, %c0_146] : memref<1568x128xbf16, #tpu.memory_space<vmem>>, vector<32x8xbf16>
    %c1232 = arith.constant 1232 : index
    %c0_147 = arith.constant 0 : index
    %385 = vector.load %arg3[%c1232, %c0_147] : memref<1568x128xbf16, #tpu.memory_space<vmem>>, vector<32x8xbf16>
    %c1264 = arith.constant 1264 : index
    %c0_148 = arith.constant 0 : index
    %386 = vector.load %arg3[%c1264, %c0_148] : memref<1568x128xbf16, #tpu.memory_space<vmem>>, vector<32x8xbf16>
    %c1296 = arith.constant 1296 : index
    %c0_149 = arith.constant 0 : index
    %387 = vector.load %arg3[%c1296, %c0_149] : memref<1568x128xbf16, #tpu.memory_space<vmem>>, vector<8x32xbf16>
    %cst_150 = arith.constant dense<0.000000e+00> : vector<8x8xf32>
    %388 = tpu.matmul %336, %384, %cst_150 {dimension_numbers = #tpu.dot_dimension_numbers<[1], [0], [0], [1], [0, 0, 1, 1], [], []>} : vector<8x32xbf16>, vector<32x8xbf16>, vector<8x8xf32> -> vector<8x8xf32>
    %389 = vector.extract_strided_slice %332 {offsets = [0, 8], sizes = [1, 8], strides = [1, 1]} : vector<1x32xf32> to vector<1x8xf32>
    %390 = vector.broadcast %389 : vector<1x8xf32> to vector<8x8xf32>
    %391 = arith.addf %388, %390 : vector<8x8xf32>
    %cst_151 = arith.constant dense<0.000000e+00> : vector<16x8xf32>
    %392 = tpu.matmul %337, %385, %cst_151 {dimension_numbers = #tpu.dot_dimension_numbers<[1], [0], [0], [1], [0, 0, 1, 1], [], []>} : vector<16x32xbf16>, vector<32x8xbf16>, vector<16x8xf32> -> vector<16x8xf32>
    %393 = vector.extract_strided_slice %333 {offsets = [0, 8], sizes = [1, 8], strides = [1, 1]} : vector<1x32xf32> to vector<1x8xf32>
    %394 = vector.broadcast %393 : vector<1x8xf32> to vector<16x8xf32>
    %395 = arith.addf %392, %394 : vector<16x8xf32>
    %cst_152 = arith.constant dense<0.000000e+00> : vector<16x8xf32>
    %396 = tpu.matmul %337, %386, %cst_152 {dimension_numbers = #tpu.dot_dimension_numbers<[1], [0], [0], [1], [0, 0, 1, 1], [], []>} : vector<16x32xbf16>, vector<32x8xbf16>, vector<16x8xf32> -> vector<16x8xf32>
    %397 = vector.extract_strided_slice %334 {offsets = [0, 8], sizes = [1, 8], strides = [1, 1]} : vector<1x32xf32> to vector<1x8xf32>
    %398 = vector.broadcast %397 : vector<1x8xf32> to vector<16x8xf32>
    %399 = arith.addf %396, %398 : vector<16x8xf32>
    %400 = arith.truncf %391 : vector<8x8xf32> to vector<8x8xbf16>
    %401 = arith.truncf %395 : vector<16x8xf32> to vector<16x8xbf16>
    %cst_153 = arith.constant dense<0.000000e+00> : vector<8x16xf32>
    %402 = tpu.matmul %400, %401, %cst_153 {dimension_numbers = #tpu.dot_dimension_numbers<[1], [1], [0], [0], [0, 0, 1, 0], [], []>} : vector<8x8xbf16>, vector<16x8xbf16>, vector<8x16xf32> -> vector<8x16xf32>
    %cst_154 = arith.constant 0.353553385 : f32
    %403 = vector.broadcast %cst_154 : f32 to vector<8x16xf32>
    %404 = arith.mulf %402, %403 : vector<8x16xf32>
    %cst_155 = arith.constant dense<0xFF800000> : vector<8xf32>
    %405 = vector.multi_reduction <maximumf>, %404, %cst_155 [1] : vector<8x16xf32> to vector<8xf32>
    %406 = vector.shape_cast %405 : vector<8xf32> to vector<8x1xf32>
    %407 = vector.broadcast %406 : vector<8x1xf32> to vector<8x16xf32>
    %408 = arith.subf %404, %407 : vector<8x16xf32>
    %409 = math.exp %408 : vector<8x16xf32>
    %cst_156 = arith.constant dense<0.000000e+00> : vector<8xf32>
    %410 = vector.multi_reduction <add>, %409, %cst_156 [1] : vector<8x16xf32> to vector<8xf32>
    %411 = vector.shape_cast %410 : vector<8xf32> to vector<8x1xf32>
    %412 = tpu.reciprocal %411 {approx = true} : vector<8x1xf32> -> vector<8x1xf32>
    %413 = arith.mulf %411, %412 : vector<8x1xf32>
    %cst_157 = arith.constant 2.000000e+00 : f32
    %414 = vector.broadcast %cst_157 : f32 to vector<8x1xf32>
    %415 = arith.subf %414, %413 : vector<8x1xf32>
    %416 = arith.mulf %412, %415 : vector<8x1xf32>
    %417 = vector.broadcast %416 : vector<8x1xf32> to vector<8x16xf32>
    %418 = arith.mulf %409, %417 : vector<8x16xf32>
    %419 = arith.addf %377, %418 : vector<8x16xf32>
    %420 = arith.truncf %418 : vector<8x16xf32> to vector<8x16xbf16>
    %421 = arith.truncf %399 : vector<16x8xf32> to vector<16x8xbf16>
    %cst_158 = arith.constant dense<0.000000e+00> : vector<8x8xf32>
    %422 = tpu.matmul %420, %421, %cst_158 {dimension_numbers = #tpu.dot_dimension_numbers<[1], [0], [0], [1], [0, 0, 1, 1], [], []>} : vector<8x16xbf16>, vector<16x8xbf16>, vector<8x8xf32> -> vector<8x8xf32>
    %423 = arith.truncf %422 : vector<8x8xf32> to vector<8x8xbf16>
    %cst_159 = arith.constant dense<0.000000e+00> : vector<8x32xf32>
    %424 = tpu.matmul %423, %387, %cst_159 {dimension_numbers = #tpu.dot_dimension_numbers<[1], [0], [0], [1], [0, 0, 1, 1], [], []>} : vector<8x8xbf16>, vector<8x32xbf16>, vector<8x32xf32> -> vector<8x32xf32>
    %425 = arith.addf %383, %424 : vector<8x32xf32>
    %c1312 = arith.constant 1312 : index
    %c0_160 = arith.constant 0 : index
    %426 = vector.load %arg3[%c1312, %c0_160] : memref<1568x128xbf16, #tpu.memory_space<vmem>>, vector<32x8xbf16>
    %c1344 = arith.constant 1344 : index
    %c0_161 = arith.constant 0 : index
    %427 = vector.load %arg3[%c1344, %c0_161] : memref<1568x128xbf16, #tpu.memory_space<vmem>>, vector<32x8xbf16>
    %c1376 = arith.constant 1376 : index
    %c0_162 = arith.constant 0 : index
    %428 = vector.load %arg3[%c1376, %c0_162] : memref<1568x128xbf16, #tpu.memory_space<vmem>>, vector<32x8xbf16>
    %c1408 = arith.constant 1408 : index
    %c0_163 = arith.constant 0 : index
    %429 = vector.load %arg3[%c1408, %c0_163] : memref<1568x128xbf16, #tpu.memory_space<vmem>>, vector<8x32xbf16>
    %cst_164 = arith.constant dense<0.000000e+00> : vector<8x8xf32>
    %430 = tpu.matmul %336, %426, %cst_164 {dimension_numbers = #tpu.dot_dimension_numbers<[1], [0], [0], [1], [0, 0, 1, 1], [], []>} : vector<8x32xbf16>, vector<32x8xbf16>, vector<8x8xf32> -> vector<8x8xf32>
    %431 = vector.extract_strided_slice %332 {offsets = [0, 16], sizes = [1, 8], strides = [1, 1]} : vector<1x32xf32> to vector<1x8xf32>
    %432 = vector.broadcast %431 : vector<1x8xf32> to vector<8x8xf32>
    %433 = arith.addf %430, %432 : vector<8x8xf32>
    %cst_165 = arith.constant dense<0.000000e+00> : vector<16x8xf32>
    %434 = tpu.matmul %337, %427, %cst_165 {dimension_numbers = #tpu.dot_dimension_numbers<[1], [0], [0], [1], [0, 0, 1, 1], [], []>} : vector<16x32xbf16>, vector<32x8xbf16>, vector<16x8xf32> -> vector<16x8xf32>
    %435 = vector.extract_strided_slice %333 {offsets = [0, 16], sizes = [1, 8], strides = [1, 1]} : vector<1x32xf32> to vector<1x8xf32>
    %436 = vector.broadcast %435 : vector<1x8xf32> to vector<16x8xf32>
    %437 = arith.addf %434, %436 : vector<16x8xf32>
    %cst_166 = arith.constant dense<0.000000e+00> : vector<16x8xf32>
    %438 = tpu.matmul %337, %428, %cst_166 {dimension_numbers = #tpu.dot_dimension_numbers<[1], [0], [0], [1], [0, 0, 1, 1], [], []>} : vector<16x32xbf16>, vector<32x8xbf16>, vector<16x8xf32> -> vector<16x8xf32>
    %439 = vector.extract_strided_slice %334 {offsets = [0, 16], sizes = [1, 8], strides = [1, 1]} : vector<1x32xf32> to vector<1x8xf32>
    %440 = vector.broadcast %439 : vector<1x8xf32> to vector<16x8xf32>
    %441 = arith.addf %438, %440 : vector<16x8xf32>
    %442 = arith.truncf %433 : vector<8x8xf32> to vector<8x8xbf16>
    %443 = arith.truncf %437 : vector<16x8xf32> to vector<16x8xbf16>
    %cst_167 = arith.constant dense<0.000000e+00> : vector<8x16xf32>
    %444 = tpu.matmul %442, %443, %cst_167 {dimension_numbers = #tpu.dot_dimension_numbers<[1], [1], [0], [0], [0, 0, 1, 0], [], []>} : vector<8x8xbf16>, vector<16x8xbf16>, vector<8x16xf32> -> vector<8x16xf32>
    %cst_168 = arith.constant 0.353553385 : f32
    %445 = vector.broadcast %cst_168 : f32 to vector<8x16xf32>
    %446 = arith.mulf %444, %445 : vector<8x16xf32>
    %cst_169 = arith.constant dense<0xFF800000> : vector<8xf32>
    %447 = vector.multi_reduction <maximumf>, %446, %cst_169 [1] : vector<8x16xf32> to vector<8xf32>
    %448 = vector.shape_cast %447 : vector<8xf32> to vector<8x1xf32>
    %449 = vector.broadcast %448 : vector<8x1xf32> to vector<8x16xf32>
    %450 = arith.subf %446, %449 : vector<8x16xf32>
    %451 = math.exp %450 : vector<8x16xf32>
    %cst_170 = arith.constant dense<0.000000e+00> : vector<8xf32>
    %452 = vector.multi_reduction <add>, %451, %cst_170 [1] : vector<8x16xf32> to vector<8xf32>
    %453 = vector.shape_cast %452 : vector<8xf32> to vector<8x1xf32>
    %454 = tpu.reciprocal %453 {approx = true} : vector<8x1xf32> -> vector<8x1xf32>
    %455 = arith.mulf %453, %454 : vector<8x1xf32>
    %cst_171 = arith.constant 2.000000e+00 : f32
    %456 = vector.broadcast %cst_171 : f32 to vector<8x1xf32>
    %457 = arith.subf %456, %455 : vector<8x1xf32>
    %458 = arith.mulf %454, %457 : vector<8x1xf32>
    %459 = vector.broadcast %458 : vector<8x1xf32> to vector<8x16xf32>
    %460 = arith.mulf %451, %459 : vector<8x16xf32>
    %461 = arith.addf %419, %460 : vector<8x16xf32>
    %462 = arith.truncf %460 : vector<8x16xf32> to vector<8x16xbf16>
    %463 = arith.truncf %441 : vector<16x8xf32> to vector<16x8xbf16>
    %cst_172 = arith.constant dense<0.000000e+00> : vector<8x8xf32>
    %464 = tpu.matmul %462, %463, %cst_172 {dimension_numbers = #tpu.dot_dimension_numbers<[1], [0], [0], [1], [0, 0, 1, 1], [], []>} : vector<8x16xbf16>, vector<16x8xbf16>, vector<8x8xf32> -> vector<8x8xf32>
    %465 = arith.truncf %464 : vector<8x8xf32> to vector<8x8xbf16>
    %cst_173 = arith.constant dense<0.000000e+00> : vector<8x32xf32>
    %466 = tpu.matmul %465, %429, %cst_173 {dimension_numbers = #tpu.dot_dimension_numbers<[1], [0], [0], [1], [0, 0, 1, 1], [], []>} : vector<8x8xbf16>, vector<8x32xbf16>, vector<8x32xf32> -> vector<8x32xf32>
    %467 = arith.addf %425, %466 : vector<8x32xf32>
    %c1424 = arith.constant 1424 : index
    %c0_174 = arith.constant 0 : index
    %468 = vector.load %arg3[%c1424, %c0_174] : memref<1568x128xbf16, #tpu.memory_space<vmem>>, vector<32x8xbf16>
    %c1456 = arith.constant 1456 : index
    %c0_175 = arith.constant 0 : index
    %469 = vector.load %arg3[%c1456, %c0_175] : memref<1568x128xbf16, #tpu.memory_space<vmem>>, vector<32x8xbf16>
    %c1488 = arith.constant 1488 : index
    %c0_176 = arith.constant 0 : index
    %470 = vector.load %arg3[%c1488, %c0_176] : memref<1568x128xbf16, #tpu.memory_space<vmem>>, vector<32x8xbf16>
    %c1520 = arith.constant 1520 : index
    %c0_177 = arith.constant 0 : index
    %471 = vector.load %arg3[%c1520, %c0_177] : memref<1568x128xbf16, #tpu.memory_space<vmem>>, vector<8x32xbf16>
    %cst_178 = arith.constant dense<0.000000e+00> : vector<8x8xf32>
    %472 = tpu.matmul %336, %468, %cst_178 {dimension_numbers = #tpu.dot_dimension_numbers<[1], [0], [0], [1], [0, 0, 1, 1], [], []>} : vector<8x32xbf16>, vector<32x8xbf16>, vector<8x8xf32> -> vector<8x8xf32>
    %473 = vector.extract_strided_slice %332 {offsets = [0, 24], sizes = [1, 8], strides = [1, 1]} : vector<1x32xf32> to vector<1x8xf32>
    %474 = vector.broadcast %473 : vector<1x8xf32> to vector<8x8xf32>
    %475 = arith.addf %472, %474 : vector<8x8xf32>
    %cst_179 = arith.constant dense<0.000000e+00> : vector<16x8xf32>
    %476 = tpu.matmul %337, %469, %cst_179 {dimension_numbers = #tpu.dot_dimension_numbers<[1], [0], [0], [1], [0, 0, 1, 1], [], []>} : vector<16x32xbf16>, vector<32x8xbf16>, vector<16x8xf32> -> vector<16x8xf32>
    %477 = vector.extract_strided_slice %333 {offsets = [0, 24], sizes = [1, 8], strides = [1, 1]} : vector<1x32xf32> to vector<1x8xf32>
    %478 = vector.broadcast %477 : vector<1x8xf32> to vector<16x8xf32>
    %479 = arith.addf %476, %478 : vector<16x8xf32>
    %cst_180 = arith.constant dense<0.000000e+00> : vector<16x8xf32>
    %480 = tpu.matmul %337, %470, %cst_180 {dimension_numbers = #tpu.dot_dimension_numbers<[1], [0], [0], [1], [0, 0, 1, 1], [], []>} : vector<16x32xbf16>, vector<32x8xbf16>, vector<16x8xf32> -> vector<16x8xf32>
    %481 = vector.extract_strided_slice %334 {offsets = [0, 24], sizes = [1, 8], strides = [1, 1]} : vector<1x32xf32> to vector<1x8xf32>
    %482 = vector.broadcast %481 : vector<1x8xf32> to vector<16x8xf32>
    %483 = arith.addf %480, %482 : vector<16x8xf32>
    %484 = arith.truncf %475 : vector<8x8xf32> to vector<8x8xbf16>
    %485 = arith.truncf %479 : vector<16x8xf32> to vector<16x8xbf16>
    %cst_181 = arith.constant dense<0.000000e+00> : vector<8x16xf32>
    %486 = tpu.matmul %484, %485, %cst_181 {dimension_numbers = #tpu.dot_dimension_numbers<[1], [1], [0], [0], [0, 0, 1, 0], [], []>} : vector<8x8xbf16>, vector<16x8xbf16>, vector<8x16xf32> -> vector<8x16xf32>
    %cst_182 = arith.constant 0.353553385 : f32
    %487 = vector.broadcast %cst_182 : f32 to vector<8x16xf32>
    %488 = arith.mulf %486, %487 : vector<8x16xf32>
    %cst_183 = arith.constant dense<0xFF800000> : vector<8xf32>
    %489 = vector.multi_reduction <maximumf>, %488, %cst_183 [1] : vector<8x16xf32> to vector<8xf32>
    %490 = vector.shape_cast %489 : vector<8xf32> to vector<8x1xf32>
    %491 = vector.broadcast %490 : vector<8x1xf32> to vector<8x16xf32>
    %492 = arith.subf %488, %491 : vector<8x16xf32>
    %493 = math.exp %492 : vector<8x16xf32>
    %cst_184 = arith.constant dense<0.000000e+00> : vector<8xf32>
    %494 = vector.multi_reduction <add>, %493, %cst_184 [1] : vector<8x16xf32> to vector<8xf32>
    %495 = vector.shape_cast %494 : vector<8xf32> to vector<8x1xf32>
    %496 = tpu.reciprocal %495 {approx = true} : vector<8x1xf32> -> vector<8x1xf32>
    %497 = arith.mulf %495, %496 : vector<8x1xf32>
    %cst_185 = arith.constant 2.000000e+00 : f32
    %498 = vector.broadcast %cst_185 : f32 to vector<8x1xf32>
    %499 = arith.subf %498, %497 : vector<8x1xf32>
    %500 = arith.mulf %496, %499 : vector<8x1xf32>
    %501 = vector.broadcast %500 : vector<8x1xf32> to vector<8x16xf32>
    %502 = arith.mulf %493, %501 : vector<8x16xf32>
    %503 = arith.addf %461, %502 : vector<8x16xf32>
    %504 = arith.truncf %502 : vector<8x16xf32> to vector<8x16xbf16>
    %505 = arith.truncf %483 : vector<16x8xf32> to vector<16x8xbf16>
    %cst_186 = arith.constant dense<0.000000e+00> : vector<8x8xf32>
    %506 = tpu.matmul %504, %505, %cst_186 {dimension_numbers = #tpu.dot_dimension_numbers<[1], [0], [0], [1], [0, 0, 1, 1], [], []>} : vector<8x16xbf16>, vector<16x8xbf16>, vector<8x8xf32> -> vector<8x8xf32>
    %507 = arith.truncf %506 : vector<8x8xf32> to vector<8x8xbf16>
    %cst_187 = arith.constant dense<0.000000e+00> : vector<8x32xf32>
    %508 = tpu.matmul %507, %471, %cst_187 {dimension_numbers = #tpu.dot_dimension_numbers<[1], [0], [0], [1], [0, 0, 1, 1], [], []>} : vector<8x8xbf16>, vector<8x32xbf16>, vector<8x32xf32> -> vector<8x32xf32>
    %509 = arith.addf %467, %508 : vector<8x32xf32>
    %cst_188 = arith.constant 2.500000e-01 : f32
    %510 = vector.broadcast %cst_188 : f32 to vector<8x16xf32>
    %511 = arith.mulf %503, %510 : vector<8x16xf32>
    %512 = arith.addf %331, %509 : vector<8x32xf32>
    %c1536 = arith.constant 1536 : index
    %c0_189 = arith.constant 0 : index
    %513 = vector.load %arg3[%c1536, %c0_189] : memref<1568x128xbf16, #tpu.memory_space<vmem>>, vector<32x2xbf16>
    %c144 = arith.constant 144 : index
    %c0_190 = arith.constant 0 : index
    %514 = vector.load %arg4[%c144, %c0_190] : memref<152x128xf32, #tpu.memory_space<vmem>>, vector<1x2xf32>
    %515 = arith.truncf %512 : vector<8x32xf32> to vector<8x32xbf16>
    %cst_191 = arith.constant dense<0.000000e+00> : vector<8x2xf32>
    %516 = tpu.matmul %515, %513, %cst_191 {dimension_numbers = #tpu.dot_dimension_numbers<[1], [0], [0], [1], [0, 0, 1, 1], [], []>} : vector<8x32xbf16>, vector<32x2xbf16>, vector<8x2xf32> -> vector<8x2xf32>
    %517 = vector.broadcast %514 : vector<1x2xf32> to vector<8x2xf32>
    %518 = arith.addf %516, %517 : vector<8x2xf32>
    %cst_192 = arith.constant 0.000000e+00 : f32
    %519 = vector.broadcast %cst_192 : f32 to vector<8x102xf32>
    %520 = tpu.concatenate %518, %330, %511, %519 in 1 : vector<8x2xf32>, vector<8x8xf32>, vector<8x16xf32>, vector<8x102xf32> -> vector<8x128xf32>
    %c0_193 = arith.constant 0 : index
    %c0_194 = arith.constant 0 : index
    %c0_195 = arith.constant 0 : index
    %521 = vector.load %arg5[%c0_193, %c0_194, %c0_195] : memref<1x8x128xf32, #tpu.memory_space<vmem>>, vector<1x8x128xf32>
    %522 = vector.shape_cast %521 : vector<1x8x128xf32> to vector<8x128xf32>
    %523 = vector.shape_cast %520 : vector<8x128xf32> to vector<1x8x128xf32>
    tpu.vector_store %arg5[%c0_193, %c0_194, %c0_195], %523 {strides = array<i32>} : memref<1x8x128xf32, #tpu.memory_space<vmem>>, vector<1x8x128xf32>,
    return
  }
  func.func @transform_0(%arg0: i32) -> (i32, i32, i32) {
    %c0_i32 = arith.constant 0 : i32
    %c0_i32_0 = arith.constant 0 : i32
    %c0_i32_1 = arith.constant 0 : i32
    return %arg0, %c0_i32, %c0_i32_0 : i32, i32, i32
  }
  func.func @transform_1(%arg0: i32) -> (i32, i32, i32) {
    %c0_i32 = arith.constant 0 : i32
    %c0_i32_0 = arith.constant 0 : i32
    %c0_i32_1 = arith.constant 0 : i32
    return %arg0, %c0_i32, %c0_i32_0 : i32, i32, i32
  }
  func.func @transform_2(%arg0: i32) -> (i32, i32) {
    %c0_i32 = arith.constant 0 : i32
    %c0_i32_0 = arith.constant 0 : i32
    %c0_i32_1 = arith.constant 0 : i32
    return %c0_i32, %c0_i32_0 : i32, i32
  }
  func.func @transform_3(%arg0: i32) -> (i32, i32) {
    %c0_i32 = arith.constant 0 : i32
    %c0_i32_0 = arith.constant 0 : i32
    %c0_i32_1 = arith.constant 0 : i32
    return %c0_i32, %c0_i32_0 : i32, i32
  }
  func.func @transform_4(%arg0: i32) -> (i32, i32, i32) {
    %c0_i32 = arith.constant 0 : i32
    %c0_i32_0 = arith.constant 0 : i32
    %c0_i32_1 = arith.constant 0 : i32
    return %arg0, %c0_i32, %c0_i32_0 : i32, i32, i32
  }
}

</mosaic_0001>

<llo_original>
// kernel: forward.1
$region0: #{forward.1}
  #allocation0 [shape = 'u32[]', space=smem, size = 0x4, offset = 0x4, fixed_abs, tag = 'smem constant byte address 0x4 - core index']
  #allocation1 [shape = 'u32[144,128]{1,0:T(1,128)}', space=vmem, size = 0x12000, scoped, tag = 'internal scratch']
  %s0 = inlined_call_operand.vmem [shape: f32[2,16,4], index: 0, kind: input, shape index: {}]
  %s1 = inlined_call_operand.vmem [shape: f32[2,8,4], index: 1, kind: input, shape index: {}]
  %s2 = inlined_call_operand.hbm [shape: bf16[1568,128], index: 2, kind: input, shape index: {}]
  %s3 = inlined_call_operand.hbm [shape: f32[152,128], index: 3, kind: input, shape index: {}]
  %s4 = inlined_call_operand.vmem [shape: f32[2,8,128], index: 4, kind: output, shape index: {}]
  %s5 = sld [smem:[#allocation0]]
  $region57: #{forward.1} parent=0
    _
  %s7 = ssub.s32 1, %s5
  %s8 = scalar_select 0, %s7, %s5
  $region1: #{forward.1} parent=0
    #allocation2 [shape = 'u8[401408]{0}', space=vmem, size = 0x62000, scoped, tag = 'input window, operand 2, single buffered']
    #allocation3 [shape = 's32[2]{0}', space=sflag, size = 0x8, scoped, tag = 'scoped memory for forward.1']
    #allocation4 [shape = 'u8[77824]{0}', space=vmem, size = 0x13000, scoped, tag = 'input window, operand 3, single buffered']
    #allocation5 [shape = 's32[1]{0}', space=sflag, size = 0x4, scoped, tag = 'scoped memory for forward.1']
    %9 = vsyncpa [#allocation3], 0
    %10 = vsyncpa [#allocation5], 0
    loop: start=0, step=1, limit=4
    $region2: #{forward.1} parent=1 // loop_pre_header
      _
    $region3: #{forward.1} parent=1 // loop_header
      %s12 = sphi 0, %s16
      %p13 = scmp.ge.s32.totalorder %s12, 4
      %s22 = sphi 0, %s24
      %s25 = sphi 0, %s22
      %s26 = sphi 0, %s25
      %s42 = sphi 0, %s26
      %s48 = sphi 0, %s50
      %s51 = sphi 0, %s48
      %s52 = sphi 0, %s51
      %s68 = sphi 0, %s52
      %s72 = sphi 0, %s72
      %s74 = sphi 0, %s72
      %s75 = sphi 0, %s74
      %s89 = sphi 0, %s75
      %s93 = sphi 0, %s93
      %s95 = sphi 0, %s93
      %s96 = sphi 0, %s95
      %s110 = sphi 0, %s96
      %s116 = sphi 0, %s118
      %s119 = sphi 0, %s116
      %s120 = sphi 0, %s119
      %s136 = sphi 0, %s120
    $region4: #{forward.1} parent=1 // loop_header_branch
      %15 = sbr.rel (%p13) target = $region8
    $region5: #{forward.1} parent=1 // loop_body
      %s17 = ssub.s32 %s12, 1
      %s18 = ssub.s32 %s12, 2
      %s19 = sadd.s32 %s12, 1
      %s20 = ssub.s32 %s12, %s19
      %p21 = scmp.eq.s32.totalorder %s20, 0
      %s23 = sadd.s32 %s22, 1
      %s24 = scalar_select %p21, %s22, %s23
      %p27 = pneg %p21
      %p28 = scmp.eq.s32.totalorder %s12, 1
      %p29 = por %p27, %p28
      %p30 = scmp.ne.s32.totalorder %s22, %s25
      %p31 = scmp.eq.s32.totalorder %s12, 0
      %p32 = por %p30, %p31
      %p33 = scmp.ne.s32.totalorder %s22, %s25
      %p34 = scmp.eq.s32.totalorder %s17, 1
      %p35 = por %p33, %p34
      %p36 = scmp.ne.s32.totalorder %s25, %s26
      %p37 = scmp.eq.s32.totalorder %s17, 0
      %p38 = por %p36, %p37
      %p39 = scmp.ne.s32.totalorder %s25, %s26
      %p40 = scmp.eq.s32.totalorder %s18, 1
      %p41 = por %p39, %p40
      %p43 = scmp.ne.s32.totalorder %s26, %s42
      %p44 = scmp.eq.s32.totalorder %s18, 0
      %p45 = por %p43, %p44
      %s46 = ssub.s32 %s12, %s19
      %p47 = scmp.eq.s32.totalorder %s46, 0
      %s49 = sadd.s32 %s48, 1
      %s50 = scalar_select %p47, %s48, %s49
      %p53 = pneg %p47
      %p54 = scmp.eq.s32.totalorder %s12, 1
      %p55 = por %p53, %p54
      %p56 = scmp.ne.s32.totalorder %s48, %s51
      %p57 = scmp.eq.s32.totalorder %s12, 0
      %p58 = por %p56, %p57
      %p59 = scmp.ne.s32.totalorder %s48, %s51
      %p60 = scmp.eq.s32.totalorder %s17, 1
      %p61 = por %p59, %p60
      %p62 = scmp.ne.s32.totalorder %s51, %s52
      %p63 = scmp.eq.s32.totalorder %s17, 0
      %p64 = por %p62, %p63
      %p65 = scmp.ne.s32.totalorder %s51, %s52
      %p66 = scmp.eq.s32.totalorder %s18, 1
      %p67 = por %p65, %p66
      %p69 = scmp.ne.s32.totalorder %s52, %s68
      %p70 = scmp.eq.s32.totalorder %s18, 0
      %p71 = por %p69, %p70
      %s73 = sadd.s32 %s72, 1
      %p76 = scmp.eq.s32.totalorder %s12, 1
      %p77 = scmp.ne.s32.totalorder %s72, %s74
      %p78 = scmp.eq.s32.totalorder %s12, 0
      %p79 = por %p77, %p78
      %p80 = scmp.ne.s32.totalorder %s72, %s74
      %p81 = scmp.eq.s32.totalorder %s17, 1
      %p82 = por %p80, %p81
      %p83 = scmp.ne.s32.totalorder %s74, %s75
      %p84 = scmp.eq.s32.totalorder %s17, 0
      %p85 = por %p83, %p84
      %p86 = scmp.ne.s32.totalorder %s74, %s75
      %p87 = scmp.eq.s32.totalorder %s18, 1
      %p88 = por %p86, %p87
      %p90 = scmp.ne.s32.totalorder %s75, %s89
      %p91 = scmp.eq.s32.totalorder %s18, 0
      %p92 = por %p90, %p91
      %s94 = sadd.s32 %s93, 1
      %p97 = scmp.eq.s32.totalorder %s12, 1
      %p98 = scmp.ne.s32.totalorder %s93, %s95
      %p99 = scmp.eq.s32.totalorder %s12, 0
      %p100 = por %p98, %p99
      %p101 = scmp.ne.s32.totalorder %s93, %s95
      %p102 = scmp.eq.s32.totalorder %s17, 1
      %p103 = por %p101, %p102
      %p104 = scmp.ne.s32.totalorder %s95, %s96
      %p105 = scmp.eq.s32.totalorder %s17, 0
      %p106 = por %p104, %p105
      %p107 = scmp.ne.s32.totalorder %s95, %s96
      %p108 = scmp.eq.s32.totalorder %s18, 1
      %p109 = por %p107, %p108
      %p111 = scmp.ne.s32.totalorder %s96, %s110
      %p112 = scmp.eq.s32.totalorder %s18, 0
      %p113 = por %p111, %p112
      %s114 = ssub.s32 %s12, %s19
      %p115 = scmp.eq.s32.totalorder %s114, 0
      %s117 = sadd.s32 %s116, 1
      %s118 = scalar_select %p115, %s116, %s117
      %p121 = pneg %p115
      %p122 = scmp.eq.s32.totalorder %s12, 1
      %p123 = por %p121, %p122
      %p124 = scmp.ne.s32.totalorder %s116, %s119
      %p125 = scmp.eq.s32.totalorder %s12, 0
      %p126 = por %p124, %p125
      %p127 = scmp.ne.s32.totalorder %s116, %s119
      %p128 = scmp.eq.s32.totalorder %s17, 1
      %p129 = por %p127, %p128
      %p130 = scmp.ne.s32.totalorder %s119, %s120
      %p131 = scmp.eq.s32.totalorder %s17, 0
      %p132 = por %p130, %p131
      %p133 = scmp.ne.s32.totalorder %s119, %s120
      %p134 = scmp.eq.s32.totalorder %s18, 1
      %p135 = por %p133, %p134
      %p137 = scmp.ne.s32.totalorder %s120, %s136
      %p138 = scmp.eq.s32.totalorder %s18, 0
      %p139 = por %p137, %p138
      %p140 = scmp.le.s32.totalorder 1, %s12
      %p141 = scmp.lt.s32.totalorder %s12, 3
      %p142 = pnand %p140, %p141
      %p143 = pneg %p142
      // Predicated region
      $region9: #{forward.1} parent=5 // pred_check
        _
      $region10: #{forward.1} parent=5 // pred_check_branch
        %145 = sbr.rel (%p142) target = $region12
      $region11: #{forward.1} parent=5 // pred_region
        %s146 = ssub.s32 %s12, 1
        // Predicated region
        $region13: #{forward.1} parent=11 // pred_check
          %p147 = pneg %p85
        $region14: #{forward.1} parent=11 // pred_check_branch
          %149 = sbr.rel (%p147) target = $region16
        $region15: #{forward.1} parent=11 // pred_region
          %s151 = ssub.s32 12544, 12544
          %152 = vsyncadd [#allocation3], %s151
          %s153 = sshll.u32 [#allocation2], 4
          %s154 = int_to_ptr.vmem [resolvable:$true] %s153
          %159 = dma.hbm_to_vmem [thread:$0]  %s2, 12544, %s154, [#allocation3], 64, 64, 4
        $region16: #{forward.1} parent=11 // pred_fallthru
          _
        // Predicated region
        $region17: #{forward.1} parent=11 // pred_check
          %p160 = pneg %p106
        $region18: #{forward.1} parent=11 // pred_check_branch
          %162 = sbr.rel (%p160) target = $region20
        $region19: #{forward.1} parent=11 // pred_region
          %s164 = ssub.s32 2432, 2432
          %165 = vsyncadd [#allocation5], %s164
          %s166 = sshll.u32 [#allocation4], 4
          %s167 = int_to_ptr.vmem [resolvable:$true] %s166
          %172 = dma.hbm_to_vmem [thread:$0]  %s3, 2432, %s167, [#allocation5], 128, 128, 8
        $region20: #{forward.1} parent=11 // pred_fallthru
          _
      $region12: #{forward.1} parent=5 // pred_fallthru
        _
      %p173 = scmp.lt.s32.totalorder %s12, 2
      // Predicated region
      $region21: #{forward.1} parent=5 // pred_check
        %p174 = pneg %p173
      $region22: #{forward.1} parent=5 // pred_check_branch
        %176 = sbr.rel (%p174) target = $region24
      $region23: #{forward.1} parent=5 // pred_region
        // Predicated region
        $region25: #{forward.1} parent=23 // pred_check
          %p177 = pneg %p32
        $region26: #{forward.1} parent=23 // pred_check_branch
          %179 = sbr.rel (%p177) target = $region28
        $region27: #{forward.1} parent=23 // pred_region
          %p180 = scmp.lt.s32.totalorder %s12, 1
          %s181 = scalar_select %p180, %s12, 1
          %s182 = smul.addr %s181, 2
          %s183 = smul.addr %s182, 8
          %s184 = scalar_lea.vmem %s0, %s183
        $region28: #{forward.1} parent=23 // pred_fallthru
          _
        // Predicated region
        $region29: #{forward.1} parent=23 // pred_check
          %p185 = pneg %p58
        $region30: #{forward.1} parent=23 // pred_check_branch
          %187 = sbr.rel (%p185) target = $region32
        $region31: #{forward.1} parent=23 // pred_region
          %p188 = scmp.lt.s32.totalorder %s12, 1
          %s189 = scalar_select %p188, %s12, 1
          %s190 = smul.addr %s189, 8
          %s191 = scalar_lea.vmem %s1, %s190
        $region32: #{forward.1} parent=23 // pred_fallthru
          _
      $region24: #{forward.1} parent=5 // pred_fallthru
        _
      %p192 = scmp.le.s32.totalorder 1, %s12
      %p193 = scmp.lt.s32.totalorder %s12, 3
      %p194 = pnand %p192, %p193
      %p195 = pneg %p194
      // Predicated region
      $region33: #{forward.1} parent=5 // pred_check
        _
      $region34: #{forward.1} parent=5 // pred_check_branch
        %197 = sbr.rel (%p194) target = $region36
      $region35: #{forward.1} parent=5 // pred_region
        %s198 = ssub.s32 %s12, 1
        // Predicated region
        $region37: #{forward.1} parent=35 // pred_check
          %p199 = pneg %p85
        $region38: #{forward.1} parent=35 // pred_check_branch
          %201 = sbr.rel (%p199) target = $region40
        $region39: #{forward.1} parent=35 // pred_region
          %202 = dma.done [#allocation3], 12544
        $region40: #{forward.1} parent=35 // pred_fallthru
          _
        // Predicated region
        $region41: #{forward.1} parent=35 // pred_check
          %p203 = pneg %p106
        $region42: #{forward.1} parent=35 // pred_check_branch
          %205 = sbr.rel (%p203) target = $region44
        $region43: #{forward.1} parent=35 // pred_region
          %206 = dma.done [#allocation5], 2432
        $region44: #{forward.1} parent=35 // pred_fallthru
          _
        %p207 = scmp.lt.s32.totalorder %s17, 1
        %s208 = scalar_select %p207, %s17, 1
        %s209 = smul.addr %s208, 2
        %s210 = smul.addr %s209, 8
        %s211 = scalar_lea.vmem %s0, %s210
        %p212 = pneg %p38
        %p213 = pneg %p35
        %p214 = scmp.lt.s32.totalorder %s17, 1
        %s215 = scalar_select %p214, %s17, 1
        %s216 = smul.addr %s215, 8
        %s217 = scalar_lea.vmem %s1, %s216
        %p218 = pneg %p64
        %p219 = pneg %p61
        %p220 = pneg %p85
        %p221 = pneg %p82
        %p222 = pneg %p106
        %p223 = pneg %p103
        %p224 = pneg %p132
        %p225 = pneg %p129
        %p226 = scmp.lt.s32.totalorder %s17, 1
        %s227 = scalar_select %p226, %s17, 1
        %s228 = smul.addr %s227, 8
        %s229 = scalar_lea.vmem %s4, %s228
        %p230 = scmp.lt.s32.totalorder %s17, 1
        %s231 = scalar_select %p230, %s17, 1
        %s232 = smul.addr %s231, 2
        %s233 = smul.addr %s232, 8
        %s234 = scalar_lea.vmem %s0, %s233
        %p235 = scmp.lt.s32.totalorder %s17, 1
        %s236 = scalar_select %p235, %s17, 1
        %s237 = smul.addr %s236, 8
        %s238 = scalar_lea.vmem %s1, %s237
        %p239 = scmp.lt.s32.totalorder %s17, 1
        %s240 = scalar_select %p239, %s17, 1
        %s241 = smul.addr %s240, 8
        %s242 = scalar_lea.vmem %s4, %s241
        %v244 = vld [vmem:[%s234] sm:$0xff]
        %v245 = vld [vmem:[%s234 + $0x8] sm:$0xff]
        %v246 = vld [vmem:[%s238] sm:$0xff]
        %v247 = vld [vmem:[#allocation2] sm:$0xf]
        %v248 = vld [vmem:[#allocation2 + $0x4] sm:$0x3]
        %v249 = vld [vmem:[#allocation4] sm:$0x1]
        %v250 = vld [vmem:[#allocation2 + $0x8] sm:$0xf]
        %v251 = vld [vmem:[#allocation2 + $0xc] sm:$0xf]
        %v252 = vld [vmem:[#allocation2 + $0x10] sm:$0xf]
        %v253 = vld [vmem:[#allocation2 + $0x14] sm:$0xf]
        %v254 = vld [vmem:[#allocation2 + $0x18] sm:$0xf]
        %v255 = vld [vmem:[#allocation2 + $0x1c] sm:$0xf]
        %v256 = vld [vmem:[#allocation2 + $0x20] sm:$0xf]
        %v257 = vld [vmem:[#allocation2 + $0x24] sm:$0xf]
        %v258 = vld [vmem:[#allocation2 + $0x28] sm:$0xf]
        %v259 = vld [vmem:[#allocation2 + $0x2c] sm:$0xf]
        %v260 = vld [vmem:[#allocation2 + $0x30] sm:$0xf]
        %v261 = vld [vmem:[#allocation2 + $0x34] sm:$0xf]
        %v262 = vld [vmem:[#allocation4 + $0x8] sm:$0x1]
        %vm265 = vcmask 1041408
        %v266 = vrot.slane %v244, 6
        %v267 = vrot.slane %v245, 6
        %v268 = vsel %vm265, %v266, %v267
        %v271 = vsel %vm265, 0.0, %v266
        %vm273 = vcmask 1046528
        %v274 = vrot.slane %v271, 1
        %v275 = vrot.slane %v268, 1
        %v276 = vsel %vm273, %v274, %v275
        %v277 = vrot.slane %v267, 1
        %v278 = vsel %vm273, %v275, %v277
        %279 = vrot.lane.b32.xlu0 %v276, 4
        %v280 = vpop.permute.xlu0 %279
        %281 = vrot.lane.b32.xlu0 %v278, 4
        %v282 = vpop.permute.xlu0 %281
        %vm285 = vcmask 1045504
        %v286 = vrot.slane %v271, 2
        %v287 = vrot.slane %v268, 2
        %v288 = vsel %vm285, %v286, %v287
        %v289 = vrot.slane %v267, 2
        %v290 = vsel %vm285, %v287, %v289
        %291 = vrot.lane.b32.xlu0 %v288, 8
        %v292 = vpop.permute.xlu0 %291
        %293 = vrot.lane.b32.xlu0 %v290, 8
        %v294 = vpop.permute.xlu0 %293
        %vm297 = vcmask 31744
        %v298 = vsel %vm297, %v271, %v280
        %v299 = vsel %vm297, %v268, %v282
        %vm300 = vcmask 64512
        %v301 = vsel %vm300, %v298, %v292
        %v302 = vsel %vm300, %v299, %v294
        %v303 = vpack.c.bf16 %v302, %v301
        %v304 = vlaneseq
        %v305 = vshrl.u32 %v304, 7
        %v306 = vsub.s32 0, %v305
        %v307 = vrot.slane %v249, %v306
        %v310 = vunpack.c.l.b16 %v247
        %v311 = vunpack.c.l.b16 %v248
        %v312 = vpack.c.b16 %v311, %v310
        %vm313 = vcmask 97280
        %v315 = vsel %vm313, %v303, 0
        %v318 = vsel %vm285, %v312, 0
        %320 = vmatprep.subr.bf16.mxu0 0
        %321 = vmatpush1.bf16.msra.mxu0 0
        %322 = vmatprep.subr.bf16.mxu0 0
        %323 = vmatpush1.bf16.msra.mxu0 0
        %324 = vmatprep.subr.bf16.mxu0 0
        %325 = vmatpush1.bf16.msra.mxu0 0
        %326 = vmatprep.subr.bf16.mxu0 0
        %327 = vmatpush1.bf16.msra.mxu0 0
        %328 = vmatprep.subr.bf16.mxu0 0
        %329 = vmatpush1.bf16.msra.mxu0 0
        %330 = vmatprep.subr.bf16.mxu0 0
        %331 = vmatpush1.bf16.msra.mxu0 0
        %332 = vmatprep.subr.bf16.mxu0 0
        %333 = vmatpush1.bf16.msra.mxu0 0
        %334 = vmatprep.subr.bf16.mxu0 0
        %335 = vmatpush1.bf16.msra.mxu0 %v318
        %336 = vmatprep.subr.bf16.mxu0 0
        %337 = vmatpush2.bf16.msra.mxu0 0
        %338 = vmatprep.subr.bf16.mxu0 0
        %339 = vmatpush2.bf16.msra.mxu0 0
        %340 = vmatprep.subr.bf16.mxu0 0
        %341 = vmatpush2.bf16.msra.mxu0 0
        %342 = vmatprep.subr.bf16.mxu0 0
        %343 = vmatpush2.bf16.msra.mxu0 0
        %344 = vmatprep.subr.bf16.mxu0 0
        %345 = vmatpush2.bf16.msra.mxu0 0
        %346 = vmatprep.subr.bf16.mxu0 0
        %347 = vmatpush2.bf16.msra.mxu0 0
        %348 = vmatprep.subr.bf16.mxu0 0
        %349 = vmatpush2.bf16.msra.mxu0 0
        %350 = vmatprep.subr.bf16.mxu0 0
        %351 = vmatpush2.bf16.msra.mxu0 0
        %352 = vmatprep.mubr.bf16.mxu0 0
        %353 = vmatmul.mubr.bf16.gmra.mxu0 %v315
        %v354 = vpop.f32.mrf.mxu0
        %v355 = vadd.f32 %v307, %v354
        %v356 = vpop.f32.mrf.mxu0
        %v357 = vpop.f32.mrf.mxu0
        %v358 = vadd.f32 %v307, %v357
        %v359 = vpop.f32.mrf.mxu0
        %360 = vdwg.mxu0
        %v361 = vmax.f32 %v355, 0.0
        %v362 = vmax.f32 %v358, 0.0
        %v365 = vrot.slane %v361, 6
        %v366 = vrot.slane %v362, 6
        %v367 = vsel %vm265, %v365, %v366
        %v370 = vsel %vm265, 0.0, %v365
        %v372 = vrot.slane %v370, 1
        %v373 = vrot.slane %v367, 1
        %v374 = vsel %vm273, %v372, %v373
        %v375 = vrot.slane %v366, 1
        %v376 = vsel %vm273, %v373, %v375
        %377 = vrot.lane.b32.xlu0 %v374, 32
        %v378 = vpop.permute.xlu0 %377
        %379 = vrot.lane.b32.xlu0 %v376, 32
        %v380 = vpop.permute.xlu0 %379
        %v383 = vrot.slane %v370, 2
        %v384 = vrot.slane %v367, 2
        %v385 = vsel %vm285, %v383, %v384
        %v386 = vrot.slane %v366, 2
        %v387 = vsel %vm285, %v384, %v386
        %388 = vrot.lane.b32.xlu0 %v385, 64
        %v389 = vpop.permute.xlu0 %388
        %390 = vrot.lane.b32.xlu0 %v387, 64
        %v391 = vpop.permute.xlu0 %390
        %vm394 = vcmask 261120
        %v395 = vsel %vm394, %v370, %v378
        %v396 = vsel %vm394, %v367, %v380
        %vm397 = vcmask 523264
        %v398 = vsel %vm397, %v395, %v389
        %v399 = vsel %vm397, %v396, %v391
        %v400 = vpack.c.bf16 %v399, %v398
        %v401 = vlaneseq
        %v402 = vshrl.u32 %v401, 7
        %v403 = vsub.s32 0, %v402
        %v404 = vrot.slane %v262, %v403
        %v417 = vunpack.c.l.b16 %v250
        %v418 = vunpack.c.l.b16 %v251
        %v419 = vunpack.c.l.b16 %v252
        %v420 = vunpack.c.l.b16 %v253
        %v421 = vunpack.c.l.b16 %v254
        %v422 = vunpack.c.l.b16 %v255
        %v423 = vunpack.c.l.b16 %v256
        %v424 = vunpack.c.l.b16 %v257
        %v425 = vunpack.c.l.b16 %v258
        %v426 = vunpack.c.l.b16 %v259
        %v427 = vunpack.c.l.b16 %v260
        %v428 = vunpack.c.l.b16 %v261
        %v429 = vpack.c.b16 %v418, %v417
        %v430 = vpack.c.b16 %v420, %v419
        %v431 = vpack.c.b16 %v422, %v421
        %v432 = vpack.c.b16 %v424, %v423
        %v433 = vpack.c.b16 %v426, %v425
        %v434 = vpack.c.b16 %v428, %v427
        %vm441 = vcmask 785408
        %v443 = vsel %vm441, %v400, 0
        %445 = vmatprep.subr.bf16.mxu0 0
        %446 = vmatpush1.bf16.msra.mxu0 0
        %447 = vmatprep.subr.bf16.mxu0 0
        %448 = vmatpush1.bf16.msra.mxu0 0
        %449 = vmatprep.subr.bf16.mxu0 0
        %450 = vmatpush1.bf16.msra.mxu0 %v434
        %451 = vmatprep.subr.bf16.mxu0 0
        %452 = vmatpush1.bf16.msra.mxu0 %v433
        %453 = vmatprep.subr.bf16.mxu0 0
        %454 = vmatpush1.bf16.msra.mxu0 %v432
        %455 = vmatprep.subr.bf16.mxu0 0
        %456 = vmatpush1.bf16.msra.mxu0 %v431
        %457 = vmatprep.subr.bf16.mxu0 0
        %458 = vmatpush1.bf16.msra.mxu0 %v430
        %459 = vmatprep.subr.bf16.mxu0 0
        %460 = vmatpush1.bf16.msra.mxu0 %v429
        %461 = vmatprep.subr.bf16.mxu0 0
        %462 = vmatpush2.bf16.msra.mxu0 0
        %463 = vmatprep.subr.bf16.mxu0 0
        %464 = vmatpush2.bf16.msra.mxu0 0
        %465 = vmatprep.subr.bf16.mxu0 0
        %466 = vmatpush2.bf16.msra.mxu0 0
        %467 = vmatprep.subr.bf16.mxu0 0
        %468 = vmatpush2.bf16.msra.mxu0 0
        %469 = vmatprep.subr.bf16.mxu0 0
        %470 = vmatpush2.bf16.msra.mxu0 0
        %471 = vmatprep.subr.bf16.mxu0 0
        %472 = vmatpush2.bf16.msra.mxu0 0
        %473 = vmatprep.subr.bf16.mxu0 0
        %474 = vmatpush2.bf16.msra.mxu0 0
        %475 = vmatprep.subr.bf16.mxu0 0
        %476 = vmatpush2.bf16.msra.mxu0 0
        %477 = vmatprep.mubr.bf16.mxu0 0
        %478 = vmatmul.mubr.bf16.gmra.mxu0 %v443
        %v479 = vpop.f32.mrf.mxu0
        %v480 = vadd.f32 %v404, %v479
        %v481 = vpop.f32.mrf.mxu0
        %v482 = vpop.f32.mrf.mxu0
        %v483 = vadd.f32 %v404, %v482
        %v484 = vpop.f32.mrf.mxu0
        %485 = vdwg.mxu0
        %v486 = vmax.f32 %v480, 0.0
        %v487 = vmax.f32 %v483, 0.0
        %v488 = vld [vmem:[#allocation2 + $0x38] sm:$0x3]
        %v489 = vld [vmem:[#allocation4 + $0x10] sm:$0x1]
        %v490 = vpack.c.bf16 %v245, %v244
        %v491 = vlaneseq
        %v492 = vshrl.u32 %v491, 7
        %v493 = vsub.s32 0, %v492
        %v494 = vrot.slane %v489, %v493
        %v496 = vsel %vm297, %v490, 0
        %v499 = vsel %vm265, %v488, 0
        %501 = vmatprep.subr.bf16.mxu0 0
        %502 = vmatpush1.bf16.msra.mxu0 0
        %503 = vmatprep.subr.bf16.mxu0 0
        %504 = vmatpush1.bf16.msra.mxu0 0
        %505 = vmatprep.subr.bf16.mxu0 0
        %506 = vmatpush1.bf16.msra.mxu0 0
        %507 = vmatprep.subr.bf16.mxu0 0
        %508 = vmatpush1.bf16.msra.mxu0 0
        %509 = vmatprep.subr.bf16.mxu0 0
        %510 = vmatpush1.bf16.msra.mxu0 0
        %511 = vmatprep.subr.bf16.mxu0 0
        %512 = vmatpush1.bf16.msra.mxu0 0
        %513 = vmatprep.subr.bf16.mxu0 0
        %514 = vmatpush1.bf16.msra.mxu0 0
        %515 = vmatprep.subr.bf16.mxu0 0
        %516 = vmatpush1.bf16.msra.mxu0 %v499
        %517 = vmatprep.subr.bf16.mxu0 0
        %518 = vmatpush2.bf16.msra.mxu0 0
        %519 = vmatprep.subr.bf16.mxu0 0
        %520 = vmatpush2.bf16.msra.mxu0 0
        %521 = vmatprep.subr.bf16.mxu0 0
        %522 = vmatpush2.bf16.msra.mxu0 0
        %523 = vmatprep.subr.bf16.mxu0 0
        %524 = vmatpush2.bf16.msra.mxu0 0
        %525 = vmatprep.subr.bf16.mxu0 0
        %526 = vmatpush2.bf16.msra.mxu0 0
        %527 = vmatprep.subr.bf16.mxu0 0
        %528 = vmatpush2.bf16.msra.mxu0 0
        %529 = vmatprep.subr.bf16.mxu0 0
        %530 = vmatpush2.bf16.msra.mxu0 0
        %531 = vmatprep.subr.bf16.mxu0 0
        %532 = vmatpush2.bf16.msra.mxu0 0
        %533 = vmatprep.mubr.bf16.mxu0 0
        %534 = vmatmul.mubr.bf16.gmra.mxu0 %v496
        %v535 = vpop.f32.mrf.mxu0
        %v536 = vadd.f32 %v494, %v535
        %v537 = vpop.f32.mrf.mxu0
        %v538 = vpop.f32.mrf.mxu0
        %v539 = vadd.f32 %v494, %v538
        %v540 = vpop.f32.mrf.mxu0
        %541 = vdwg.mxu0
        %v542 = vadd.f32 %v486, %v536
        %v543 = vadd.f32 %v487, %v539
        %v544 = vmax.f32 %v542, 0.0
        %v545 = vmax.f32 %v543, 0.0
        %v546 = vld [vmem:[#allocation2 + $0x40] sm:$0xf]
        %v547 = vld [vmem:[#allocation2 + $0x44] sm:$0xf]
        %v548 = vld [vmem:[#allocation2 + $0x48] sm:$0xf]
        %v549 = vld [vmem:[#allocation2 + $0x4c] sm:$0xf]
        %v550 = vld [vmem:[#allocation2 + $0x50] sm:$0xf]
        %v551 = vld [vmem:[#allocation2 + $0x54] sm:$0xf]
        %v552 = vld [vmem:[#allocation2 + $0x58] sm:$0xf]
        %v553 = vld [vmem:[#allocation2 + $0x5c] sm:$0xf]
        %v554 = vld [vmem:[#allocation2 + $0x60] sm:$0xf]
        %v555 = vld [vmem:[#allocation2 + $0x64] sm:$0xf]
        %v556 = vld [vmem:[#allocation2 + $0x68] sm:$0xf]
        %v557 = vld [vmem:[#allocation2 + $0x6c] sm:$0xf]
        %v558 = vld [vmem:[#allocation4 + $0x18] sm:$0x1]
        %v559 = vld [vmem:[#allocation2 + $0x70] sm:$0xf]
        %v560 = vld [vmem:[#allocation2 + $0x74] sm:$0xf]
        %v561 = vld [vmem:[#allocation2 + $0x78] sm:$0xf]
        %v562 = vld [vmem:[#allocation2 + $0x7c] sm:$0xf]
        %v563 = vld [vmem:[#allocation2 + $0x80] sm:$0xf]
        %v564 = vld [vmem:[#allocation2 + $0x84] sm:$0xf]
        %v565 = vld [vmem:[#allocation2 + $0x88] sm:$0xf]
        %v566 = vld [vmem:[#allocation2 + $0x8c] sm:$0xf]
        %v567 = vld [vmem:[#allocation2 + $0x90] sm:$0xf]
        %v568 = vld [vmem:[#allocation2 + $0x94] sm:$0xf]
        %v569 = vld [vmem:[#allocation2 + $0x98] sm:$0xf]
        %v570 = vld [vmem:[#allocation2 + $0x9c] sm:$0xf]
        %v571 = vld [vmem:[#allocation4 + $0x20] sm:$0x1]
        %vm574 = vcmask 1043456
        %v575 = vrot.slane %v544, 4
        %v576 = vrot.slane %v545, 4
        %v577 = vsel %vm574, %v575, %v576
        %v580 = vsel %vm574, 0.0, %v575
        %v582 = vrot.slane %v580, 2
        %v583 = vrot.slane %v577, 2
        %v584 = vsel %vm285, %v582, %v583
        %v585 = vrot.slane %v576, 2
        %v586 = vsel %vm285, %v583, %v585
        %587 = vrot.lane.b32.xlu0 %v584, 32
        %v588 = vpop.permute.xlu0 %587
        %589 = vrot.lane.b32.xlu0 %v586, 32
        %v590 = vpop.permute.xlu0 %589
        %v593 = vrot.slane %v580, 4
        %v594 = vrot.slane %v577, 4
        %v595 = vsel %vm574, %v593, %v594
        %v596 = vrot.slane %v576, 4
        %v597 = vsel %vm574, %v594, %v596
        %598 = vrot.lane.b32.xlu0 %v595, 64
        %v599 = vpop.permute.xlu0 %598
        %600 = vrot.lane.b32.xlu0 %v597, 64
        %v601 = vpop.permute.xlu0 %600
        %v604 = vsel %vm394, %v580, %v588
        %v605 = vsel %vm394, %v577, %v590
        %v606 = vsel %vm397, %v604, %v599
        %v607 = vsel %vm397, %v605, %v601
        %v608 = vpack.c.bf16 %v607, %v606
        %v609 = vlaneseq
        %v610 = vshrl.u32 %v609, 7
        %v611 = vsub.s32 0, %v610
        %v612 = vrot.slane %v558, %v611
        %v625 = vunpack.c.l.b16 %v546
        %v626 = vunpack.c.l.b16 %v547
        %v627 = vunpack.c.l.b16 %v548
        %v628 = vunpack.c.l.b16 %v549
        %v629 = vunpack.c.l.b16 %v550
        %v630 = vunpack.c.l.b16 %v551
        %v631 = vunpack.c.l.b16 %v552
        %v632 = vunpack.c.l.b16 %v553
        %v633 = vunpack.c.l.b16 %v554
        %v634 = vunpack.c.l.b16 %v555
        %v635 = vunpack.c.l.b16 %v556
        %v636 = vunpack.c.l.b16 %v557
        %v637 = vpack.c.b16 %v626, %v625
        %v638 = vpack.c.b16 %v628, %v627
        %v639 = vpack.c.b16 %v630, %v629
        %v640 = vpack.c.b16 %v632, %v631
        %v641 = vpack.c.b16 %v634, %v633
        %v642 = vpack.c.b16 %v636, %v635
        %v650 = vsel %vm441, %v608, 0
        %652 = vmatprep.subr.bf16.mxu0 0
        %653 = vmatpush1.bf16.msra.mxu0 0
        %654 = vmatprep.subr.bf16.mxu0 0
        %655 = vmatpush1.bf16.msra.mxu0 0
        %656 = vmatprep.subr.bf16.mxu0 0
        %657 = vmatpush1.bf16.msra.mxu0 %v642
        %658 = vmatprep.subr.bf16.mxu0 0
        %659 = vmatpush1.bf16.msra.mxu0 %v641
        %660 = vmatprep.subr.bf16.mxu0 0
        %661 = vmatpush1.bf16.msra.mxu0 %v640
        %662 = vmatprep.subr.bf16.mxu0 0
        %663 = vmatpush1.bf16.msra.mxu0 %v639
        %664 = vmatprep.subr.bf16.mxu0 0
        %665 = vmatpush1.bf16.msra.mxu0 %v638
        %666 = vmatprep.subr.bf16.mxu0 0
        %667 = vmatpush1.bf16.msra.mxu0 %v637
        %668 = vmatprep.subr.bf16.mxu0 0
        %669 = vmatpush2.bf16.msra.mxu0 0
        %670 = vmatprep.subr.bf16.mxu0 0
        %671 = vmatpush2.bf16.msra.mxu0 0
        %672 = vmatprep.subr.bf16.mxu0 0
        %673 = vmatpush2.bf16.msra.mxu0 0
        %674 = vmatprep.subr.bf16.mxu0 0
        %675 = vmatpush2.bf16.msra.mxu0 0
        %676 = vmatprep.subr.bf16.mxu0 0
        %677 = vmatpush2.bf16.msra.mxu0 0
        %678 = vmatprep.subr.bf16.mxu0 0
        %679 = vmatpush2.bf16.msra.mxu0 0
        %680 = vmatprep.subr.bf16.mxu0 0
        %681 = vmatpush2.bf16.msra.mxu0 0
        %682 = vmatprep.subr.bf16.mxu0 0
        %683 = vmatpush2.bf16.msra.mxu0 0
        %684 = vmatprep.mubr.bf16.mxu0 0
        %685 = vmatmul.mubr.bf16.gmra.mxu0 %v650
        %v686 = vpop.f32.mrf.mxu0
        %v687 = vadd.f32 %v612, %v686
        %v688 = vpop.f32.mrf.mxu0
        %v689 = vpop.f32.mrf.mxu0
        %v690 = vadd.f32 %v612, %v689
        %v691 = vpop.f32.mrf.mxu0
        %692 = vdwg.mxu0
        %v693 = vmax.f32 %v687, 0.0
        %v694 = vmax.f32 %v690, 0.0
        %v697 = vrot.slane %v693, 4
        %v698 = vrot.slane %v694, 4
        %v699 = vsel %vm574, %v697, %v698
        %v702 = vsel %vm574, 0.0, %v697
        %v704 = vrot.slane %v702, 2
        %v705 = vrot.slane %v699, 2
        %v706 = vsel %vm285, %v704, %v705
        %v707 = vrot.slane %v698, 2
        %v708 = vsel %vm285, %v705, %v707
        %709 = vrot.lane.b32.xlu0 %v706, 32
        %v710 = vpop.permute.xlu0 %709
        %711 = vrot.lane.b32.xlu0 %v708, 32
        %v712 = vpop.permute.xlu0 %711
        %v715 = vrot.slane %v702, 4
        %v716 = vrot.slane %v699, 4
        %v717 = vsel %vm574, %v715, %v716
        %v718 = vrot.slane %v698, 4
        %v719 = vsel %vm574, %v716, %v718
        %720 = vrot.lane.b32.xlu0 %v717, 64
        %v721 = vpop.permute.xlu0 %720
        %722 = vrot.lane.b32.xlu0 %v719, 64
        %v723 = vpop.permute.xlu0 %722
        %v726 = vsel %vm394, %v702, %v710
        %v727 = vsel %vm394, %v699, %v712
        %v728 = vsel %vm397, %v726, %v721
        %v729 = vsel %vm397, %v727, %v723
        %v730 = vpack.c.bf16 %v729, %v728
        %v731 = vlaneseq
        %v732 = vshrl.u32 %v731, 7
        %v733 = vsub.s32 0, %v732
        %v734 = vrot.slane %v571, %v733
        %v747 = vunpack.c.l.b16 %v559
        %v748 = vunpack.c.l.b16 %v560
        %v749 = vunpack.c.l.b16 %v561
        %v750 = vunpack.c.l.b16 %v562
        %v751 = vunpack.c.l.b16 %v563
        %v752 = vunpack.c.l.b16 %v564
        %v753 = vunpack.c.l.b16 %v565
        %v754 = vunpack.c.l.b16 %v566
        %v755 = vunpack.c.l.b16 %v567
        %v756 = vunpack.c.l.b16 %v568
        %v757 = vunpack.c.l.b16 %v569
        %v758 = vunpack.c.l.b16 %v570
        %v759 = vpack.c.b16 %v748, %v747
        %v760 = vpack.c.b16 %v750, %v749
        %v761 = vpack.c.b16 %v752, %v751
        %v762 = vpack.c.b16 %v754, %v753
        %v763 = vpack.c.b16 %v756, %v755
        %v764 = vpack.c.b16 %v758, %v757
        %v772 = vsel %vm441, %v730, 0
        %774 = vmatprep.subr.bf16.mxu0 0
        %775 = vmatpush1.bf16.msra.mxu0 0
        %776 = vmatprep.subr.bf16.mxu0 0
        %777 = vmatpush1.bf16.msra.mxu0 0
        %778 = vmatprep.subr.bf16.mxu0 0
        %779 = vmatpush1.bf16.msra.mxu0 %v764
        %780 = vmatprep.subr.bf16.mxu0 0
        %781 = vmatpush1.bf16.msra.mxu0 %v763
        %782 = vmatprep.subr.bf16.mxu0 0
        %783 = vmatpush1.bf16.msra.mxu0 %v762
        %784 = vmatprep.subr.bf16.mxu0 0
        %785 = vmatpush1.bf16.msra.mxu0 %v761
        %786 = vmatprep.subr.bf16.mxu0 0
        %787 = vmatpush1.bf16.msra.mxu0 %v760
        %788 = vmatprep.subr.bf16.mxu0 0
        %789 = vmatpush1.bf16.msra.mxu0 %v759
        %790 = vmatprep.subr.bf16.mxu0 0
        %791 = vmatpush2.bf16.msra.mxu0 0
        %792 = vmatprep.subr.bf16.mxu0 0
        %793 = vmatpush2.bf16.msra.mxu0 0
        %794 = vmatprep.subr.bf16.mxu0 0
        %795 = vmatpush2.bf16.msra.mxu0 0
        %796 = vmatprep.subr.bf16.mxu0 0
        %797 = vmatpush2.bf16.msra.mxu0 0
        %798 = vmatprep.subr.bf16.mxu0 0
        %799 = vmatpush2.bf16.msra.mxu0 0
        %800 = vmatprep.subr.bf16.mxu0 0
        %801 = vmatpush2.bf16.msra.mxu0 0
        %802 = vmatprep.subr.bf16.mxu0 0
        %803 = vmatpush2.bf16.msra.mxu0 0
        %804 = vmatprep.subr.bf16.mxu0 0
        %805 = vmatpush2.bf16.msra.mxu0 0
        %806 = vmatprep.mubr.bf16.mxu0 0
        %807 = vmatmul.mubr.bf16.gmra.mxu0 %v772
        %v808 = vpop.f32.mrf.mxu0
        %v809 = vadd.f32 %v734, %v808
        %v810 = vpop.f32.mrf.mxu0
        %v811 = vpop.f32.mrf.mxu0
        %v812 = vadd.f32 %v734, %v811
        %v813 = vpop.f32.mrf.mxu0
        %814 = vdwg.mxu0
        %v815 = vmax.f32 %v809, 0.0
        %v816 = vmax.f32 %v812, 0.0
        %v817 = vadd.f32 %v815, %v544
        %v818 = vadd.f32 %v816, %v545
        %v819 = vmax.f32 %v817, 0.0
        %v820 = vmax.f32 %v818, 0.0
        %v821 = vld [vmem:[#allocation2 + $0xa0] sm:$0xf]
        %v822 = vld [vmem:[#allocation2 + $0xa4] sm:$0x3]
        %v823 = vld [vmem:[#allocation4 + $0x28] sm:$0x1]
        %v824 = vld [vmem:[#allocation2 + $0xa8] sm:$0xf]
        %v825 = vld [vmem:[#allocation2 + $0xac] sm:$0xf]
        %v826 = vld [vmem:[#allocation2 + $0xb0] sm:$0xf]
        %v827 = vld [vmem:[#allocation2 + $0xb4] sm:$0xf]
        %v828 = vld [vmem:[#allocation2 + $0xb8] sm:$0xf]
        %v829 = vld [vmem:[#allocation2 + $0xbc] sm:$0xf]
        %v830 = vld [vmem:[#allocation2 + $0xc0] sm:$0xf]
        %v831 = vld [vmem:[#allocation2 + $0xc4] sm:$0xf]
        %v832 = vld [vmem:[#allocation2 + $0xc8] sm:$0xf]
        %v833 = vld [vmem:[#allocation2 + $0xcc] sm:$0xf]
        %v834 = vld [vmem:[#allocation2 + $0xd0] sm:$0xf]
        %v835 = vld [vmem:[#allocation2 + $0xd4] sm:$0xf]
        %v836 = vld [vmem:[#allocation4 + $0x30] sm:$0x1]
        %v838 = vrot.slane %v246, 6
        %v840 = vsel %vm265, 0.0, %v838
        %v842 = vrot.slane %v840, 1
        %v843 = vrot.slane %v838, 1
        %v844 = vsel %vm273, %v842, %v843
        %845 = vrot.lane.b32.xlu0 %v844, 4
        %v846 = vpop.permute.xlu0 %845
        %v848 = vrot.slane %v840, 2
        %v849 = vrot.slane %v838, 2
        %v850 = vsel %vm285, %v848, %v849
        %851 = vrot.lane.b32.xlu0 %v850, 8
        %v852 = vpop.permute.xlu0 %851
        %v854 = vsel %vm297, %v840, %v846
        %v855 = vsel %vm300, %v854, %v852
        %v856 = vpack.c.bf16 %v855, %v855
        %v857 = vlaneseq
        %v858 = vshrl.u32 %v857, 7
        %v859 = vsub.s32 0, %v858
        %v860 = vrot.slane %v823, %v859
        %v863 = vunpack.c.l.b16 %v821
        %v864 = vunpack.c.l.b16 %v822
        %v865 = vpack.c.b16 %v864, %v863
        %v867 = vsel %vm313, %v856, 0
        %v870 = vsel %vm285, %v865, 0
        %872 = vmatprep.subr.bf16.mxu0 0
        %873 = vmatpush1.bf16.msra.mxu0 0
        %874 = vmatprep.subr.bf16.mxu0 0
        %875 = vmatpush1.bf16.msra.mxu0 0
        %876 = vmatprep.subr.bf16.mxu0 0
        %877 = vmatpush1.bf16.msra.mxu0 0
        %878 = vmatprep.subr.bf16.mxu0 0
        %879 = vmatpush1.bf16.msra.mxu0 0
        %880 = vmatprep.subr.bf16.mxu0 0
        %881 = vmatpush1.bf16.msra.mxu0 0
        %882 = vmatprep.subr.bf16.mxu0 0
        %883 = vmatpush1.bf16.msra.mxu0 0
        %884 = vmatprep.subr.bf16.mxu0 0
        %885 = vmatpush1.bf16.msra.mxu0 0
        %886 = vmatprep.subr.bf16.mxu0 0
        %887 = vmatpush1.bf16.msra.mxu0 %v870
        %888 = vmatprep.subr.bf16.mxu0 0
        %889 = vmatpush2.bf16.msra.mxu0 0
        %890 = vmatprep.subr.bf16.mxu0 0
        %891 = vmatpush2.bf16.msra.mxu0 0
        %892 = vmatprep.subr.bf16.mxu0 0
        %893 = vmatpush2.bf16.msra.mxu0 0
        %894 = vmatprep.subr.bf16.mxu0 0
        %895 = vmatpush2.bf16.msra.mxu0 0
        %896 = vmatprep.subr.bf16.mxu0 0
        %897 = vmatpush2.bf16.msra.mxu0 0
        %898 = vmatprep.subr.bf16.mxu0 0
        %899 = vmatpush2.bf16.msra.mxu0 0
        %900 = vmatprep.subr.bf16.mxu0 0
        %901 = vmatpush2.bf16.msra.mxu0 0
        %902 = vmatprep.subr.bf16.mxu0 0
        %903 = vmatpush2.bf16.msra.mxu0 0
        %904 = vmatprep.mubr.bf16.mxu0 0
        %905 = vmatmul.mubr.bf16.gmra.mxu0 %v867
        %v906 = vpop.f32.mrf.mxu0
        %v907 = vadd.f32 %v860, %v906
        %v908 = vpop.f32.mrf.mxu0
        %v909 = vpop.f32.mrf.mxu0
        %v910 = vpop.f32.mrf.mxu0
        %911 = vdwg.mxu0
        %v912 = vmax.f32 %v907, 0.0
        %v914 = vrot.slane %v912, 6
        %v916 = vsel %vm265, 0.0, %v914
        %v918 = vrot.slane %v916, 1
        %v919 = vrot.slane %v914, 1
        %v920 = vsel %vm273, %v918, %v919
        %921 = vrot.lane.b32.xlu0 %v920, 32
        %v922 = vpop.permute.xlu0 %921
        %v924 = vrot.slane %v916, 2
        %v925 = vrot.slane %v914, 2
        %v926 = vsel %vm285, %v924, %v925
        %927 = vrot.lane.b32.xlu0 %v926, 64
        %v928 = vpop.permute.xlu0 %927
        %v930 = vsel %vm394, %v916, %v922
        %v931 = vsel %vm397, %v930, %v928
        %v932 = vpack.c.bf16 %v931, %v931
        %v933 = vlaneseq
        %v934 = vshrl.u32 %v933, 7
        %v935 = vsub.s32 0, %v934
        %v936 = vrot.slane %v836, %v935
        %v949 = vunpack.c.l.b16 %v824
        %v950 = vunpack.c.l.b16 %v825
        %v951 = vunpack.c.l.b16 %v826
        %v952 = vunpack.c.l.b16 %v827
        %v953 = vunpack.c.l.b16 %v828
        %v954 = vunpack.c.l.b16 %v829
        %v955 = vunpack.c.l.b16 %v830
        %v956 = vunpack.c.l.b16 %v831
        %v957 = vunpack.c.l.b16 %v832
        %v958 = vunpack.c.l.b16 %v833
        %v959 = vunpack.c.l.b16 %v834
        %v960 = vunpack.c.l.b16 %v835
        %v961 = vpack.c.b16 %v950, %v949
        %v962 = vpack.c.b16 %v952, %v951
        %v963 = vpack.c.b16 %v954, %v953
        %v964 = vpack.c.b16 %v956, %v955
        %v965 = vpack.c.b16 %v958, %v957
        %v966 = vpack.c.b16 %v960, %v959
        %v974 = vsel %vm441, %v932, 0
        %976 = vmatprep.subr.bf16.mxu0 0
        %977 = vmatpush1.bf16.msra.mxu0 0
        %978 = vmatprep.subr.bf16.mxu0 0
        %979 = vmatpush1.bf16.msra.mxu0 0
        %980 = vmatprep.subr.bf16.mxu0 0
        %981 = vmatpush1.bf16.msra.mxu0 %v966
        %982 = vmatprep.subr.bf16.mxu0 0
        %983 = vmatpush1.bf16.msra.mxu0 %v965
        %984 = vmatprep.subr.bf16.mxu0 0
        %985 = vmatpush1.bf16.msra.mxu0 %v964
        %986 = vmatprep.subr.bf16.mxu0 0
        %987 = vmatpush1.bf16.msra.mxu0 %v963
        %988 = vmatprep.subr.bf16.mxu0 0
        %989 = vmatpush1.bf16.msra.mxu0 %v962
        %990 = vmatprep.subr.bf16.mxu0 0
        %991 = vmatpush1.bf16.msra.mxu0 %v961
        %992 = vmatprep.subr.bf16.mxu0 0
        %993 = vmatpush2.bf16.msra.mxu0 0
        %994 = vmatprep.subr.bf16.mxu0 0
        %995 = vmatpush2.bf16.msra.mxu0 0
        %996 = vmatprep.subr.bf16.mxu0 0
        %997 = vmatpush2.bf16.msra.mxu0 0
        %998 = vmatprep.subr.bf16.mxu0 0
        %999 = vmatpush2.bf16.msra.mxu0 0
        %1000 = vmatprep.subr.bf16.mxu0 0
        %1001 = vmatpush2.bf16.msra.mxu0 0
        %1002 = vmatprep.subr.bf16.mxu0 0
        %1003 = vmatpush2.bf16.msra.mxu0 0
        %1004 = vmatprep.subr.bf16.mxu0 0
        %1005 = vmatpush2.bf16.msra.mxu0 0
        %1006 = vmatprep.subr.bf16.mxu0 0
        %1007 = vmatpush2.bf16.msra.mxu0 0
        %1008 = vmatprep.mubr.bf16.mxu0 0
        %1009 = vmatmul.mubr.bf16.gmra.mxu0 %v974
        %v1010 = vpop.f32.mrf.mxu0
        %v1011 = vadd.f32 %v936, %v1010
        %v1012 = vpop.f32.mrf.mxu0
        %v1013 = vpop.f32.mrf.mxu0
        %v1014 = vpop.f32.mrf.mxu0
        %1015 = vdwg.mxu0
        %v1016 = vmax.f32 %v1011, 0.0
        %v1017 = vld [vmem:[#allocation2 + $0xd8] sm:$0x3]
        %v1018 = vld [vmem:[#allocation4 + $0x38] sm:$0x1]
        %v1019 = vpack.c.bf16 %v246, %v246
        %v1020 = vlaneseq
        %v1021 = vshrl.u32 %v1020, 7
        %v1022 = vsub.s32 0, %v1021
        %v1023 = vrot.slane %v1018, %v1022
        %v1025 = vsel %vm297, %v1019, 0
        %v1028 = vsel %vm265, %v1017, 0
        %1030 = vmatprep.subr.bf16.mxu0 0
        %1031 = vmatpush1.bf16.msra.mxu0 0
        %1032 = vmatprep.subr.bf16.mxu0 0
        %1033 = vmatpush1.bf16.msra.mxu0 0
        %1034 = vmatprep.subr.bf16.mxu0 0
        %1035 = vmatpush1.bf16.msra.mxu0 0
        %1036 = vmatprep.subr.bf16.mxu0 0
        %1037 = vmatpush1.bf16.msra.mxu0 0
        %1038 = vmatprep.subr.bf16.mxu0 0
        %1039 = vmatpush1.bf16.msra.mxu0 0
        %1040 = vmatprep.subr.bf16.mxu0 0
        %1041 = vmatpush1.bf16.msra.mxu0 0
        %1042 = vmatprep.subr.bf16.mxu0 0
        %1043 = vmatpush1.bf16.msra.mxu0 0
        %1044 = vmatprep.subr.bf16.mxu0 0
        %1045 = vmatpush1.bf16.msra.mxu0 %v1028
        %1046 = vmatprep.subr.bf16.mxu0 0
        %1047 = vmatpush2.bf16.msra.mxu0 0
        %1048 = vmatprep.subr.bf16.mxu0 0
        %1049 = vmatpush2.bf16.msra.mxu0 0
        %1050 = vmatprep.subr.bf16.mxu0 0
        %1051 = vmatpush2.bf16.msra.mxu0 0
        %1052 = vmatprep.subr.bf16.mxu0 0
        %1053 = vmatpush2.bf16.msra.mxu0 0
        %1054 = vmatprep.subr.bf16.mxu0 0
        %1055 = vmatpush2.bf16.msra.mxu0 0
        %1056 = vmatprep.subr.bf16.mxu0 0
        %1057 = vmatpush2.bf16.msra.mxu0 0
        %1058 = vmatprep.subr.bf16.mxu0 0
        %1059 = vmatpush2.bf16.msra.mxu0 0
        %1060 = vmatprep.subr.bf16.mxu0 0
        %1061 = vmatpush2.bf16.msra.mxu0 0
        %1062 = vmatprep.mubr.bf16.mxu0 0
        %1063 = vmatmul.mubr.bf16.gmra.mxu0 %v1025
        %v1064 = vpop.f32.mrf.mxu0
        %v1065 = vadd.f32 %v1023, %v1064
        %v1066 = vpop.f32.mrf.mxu0
        %v1067 = vpop.f32.mrf.mxu0
        %v1068 = vpop.f32.mrf.mxu0
        %1069 = vdwg.mxu0
        %v1070 = vadd.f32 %v1016, %v1065
        %v1071 = vmax.f32 %v1070, 0.0
        %v1072 = vld [vmem:[#allocation2 + $0xe0] sm:$0xf]
        %v1073 = vld [vmem:[#allocation2 + $0xe4] sm:$0xf]
        %v1074 = vld [vmem:[#allocation2 + $0xe8] sm:$0xf]
        %v1075 = vld [vmem:[#allocation2 + $0xec] sm:$0xf]
        %v1076 = vld [vmem:[#allocation2 + $0xf0] sm:$0xf]
        %v1077 = vld [vmem:[#allocation2 + $0xf4] sm:$0xf]
        %v1078 = vld [vmem:[#allocation2 + $0xf8] sm:$0xf]
        %v1079 = vld [vmem:[#allocation2 + $0xfc] sm:$0xf]
        %v1080 = vld [vmem:[#allocation2 + $0x100] sm:$0xf]
        %v1081 = vld [vmem:[#allocation2 + $0x104] sm:$0xf]
        %v1082 = vld [vmem:[#allocation2 + $0x108] sm:$0xf]
        %v1083 = vld [vmem:[#allocation2 + $0x10c] sm:$0xf]
        %v1084 = vld [vmem:[#allocation4 + $0x40] sm:$0x1]
        %v1085 = vld [vmem:[#allocation2 + $0x110] sm:$0xf]
        %v1086 = vld [vmem:[#allocation2 + $0x114] sm:$0xf]
        %v1087 = vld [vmem:[#allocation2 + $0x118] sm:$0xf]
        %v1088 = vld [vmem:[#allocation2 + $0x11c] sm:$0xf]
        %v1089 = vld [vmem:[#allocation2 + $0x120] sm:$0xf]
        %v1090 = vld [vmem:[#allocation2 + $0x124] sm:$0xf]
        %v1091 = vld [vmem:[#allocation2 + $0x128] sm:$0xf]
        %v1092 = vld [vmem:[#allocation2 + $0x12c] sm:$0xf]
        %v1093 = vld [vmem:[#allocation2 + $0x130] sm:$0xf]
        %v1094 = vld [vmem:[#allocation2 + $0x134] sm:$0xf]
        %v1095 = vld [vmem:[#allocation2 + $0x138] sm:$0xf]
        %v1096 = vld [vmem:[#allocation2 + $0x13c] sm:$0xf]
        %v1097 = vld [vmem:[#allocation4 + $0x48] sm:$0x1]
        %v1099 = vrot.slane %v1071, 4
        %v1101 = vsel %vm574, 0.0, %v1099
        %v1103 = vrot.slane %v1101, 2
        %v1104 = vrot.slane %v1099, 2
        %v1105 = vsel %vm285, %v1103, %v1104
        %1106 = vrot.lane.b32.xlu0 %v1105, 32
        %v1107 = vpop.permute.xlu0 %1106
        %v1109 = vrot.slane %v1101, 4
        %v1110 = vrot.slane %v1099, 4
        %v1111 = vsel %vm574, %v1109, %v1110
        %1112 = vrot.lane.b32.xlu0 %v1111, 64
        %v1113 = vpop.permute.xlu0 %1112
        %v1115 = vsel %vm394, %v1101, %v1107
        %v1116 = vsel %vm397, %v1115, %v1113
        %v1117 = vpack.c.bf16 %v1116, %v1116
        %v1118 = vlaneseq
        %v1119 = vshrl.u32 %v1118, 7
        %v1120 = vsub.s32 0, %v1119
        %v1121 = vrot.slane %v1084, %v1120
        %v1134 = vunpack.c.l.b16 %v1072
        %v1135 = vunpack.c.l.b16 %v1073
        %v1136 = vunpack.c.l.b16 %v1074
        %v1137 = vunpack.c.l.b16 %v1075
        %v1138 = vunpack.c.l.b16 %v1076
        %v1139 = vunpack.c.l.b16 %v1077
        %v1140 = vunpack.c.l.b16 %v1078
        %v1141 = vunpack.c.l.b16 %v1079
        %v1142 = vunpack.c.l.b16 %v1080
        %v1143 = vunpack.c.l.b16 %v1081
        %v1144 = vunpack.c.l.b16 %v1082
        %v1145 = vunpack.c.l.b16 %v1083
        %v1146 = vpack.c.b16 %v1135, %v1134
        %v1147 = vpack.c.b16 %v1137, %v1136
        %v1148 = vpack.c.b16 %v1139, %v1138
        %v1149 = vpack.c.b16 %v1141, %v1140
        %v1150 = vpack.c.b16 %v1143, %v1142
        %v1151 = vpack.c.b16 %v1145, %v1144
        %v1159 = vsel %vm441, %v1117, 0
        %1161 = vmatprep.subr.bf16.mxu0 0
        %1162 = vmatpush1.bf16.msra.mxu0 0
        %1163 = vmatprep.subr.bf16.mxu0 0
        %1164 = vmatpush1.bf16.msra.mxu0 0
        %1165 = vmatprep.subr.bf16.mxu0 0
        %1166 = vmatpush1.bf16.msra.mxu0 %v1151
        %1167 = vmatprep.subr.bf16.mxu0 0
        %1168 = vmatpush1.bf16.msra.mxu0 %v1150
        %1169 = vmatprep.subr.bf16.mxu0 0
        %1170 = vmatpush1.bf16.msra.mxu0 %v1149
        %1171 = vmatprep.subr.bf16.mxu0 0
        %1172 = vmatpush1.bf16.msra.mxu0 %v1148
        %1173 = vmatprep.subr.bf16.mxu0 0
        %1174 = vmatpush1.bf16.msra.mxu0 %v1147
        %1175 = vmatprep.subr.bf16.mxu0 0
        %1176 = vmatpush1.bf16.msra.mxu0 %v1146
        %1177 = vmatprep.subr.bf16.mxu0 0
        %1178 = vmatpush2.bf16.msra.mxu0 0
        %1179 = vmatprep.subr.bf16.mxu0 0
        %1180 = vmatpush2.bf16.msra.mxu0 0
        %1181 = vmatprep.subr.bf16.mxu0 0
        %1182 = vmatpush2.bf16.msra.mxu0 0
        %1183 = vmatprep.subr.bf16.mxu0 0
        %1184 = vmatpush2.bf16.msra.mxu0 0
        %1185 = vmatprep.subr.bf16.mxu0 0
        %1186 = vmatpush2.bf16.msra.mxu0 0
        %1187 = vmatprep.subr.bf16.mxu0 0
        %1188 = vmatpush2.bf16.msra.mxu0 0
        %1189 = vmatprep.subr.bf16.mxu0 0
        %1190 = vmatpush2.bf16.msra.mxu0 0
        %1191 = vmatprep.subr.bf16.mxu0 0
        %1192 = vmatpush2.bf16.msra.mxu0 0
        %1193 = vmatprep.mubr.bf16.mxu0 0
        %1194 = vmatmul.mubr.bf16.gmra.mxu0 %v1159
        %v1195 = vpop.f32.mrf.mxu0
        %v1196 = vadd.f32 %v1121, %v1195
        %v1197 = vpop.f32.mrf.mxu0
        %v1198 = vpop.f32.mrf.mxu0
        %v1199 = vpop.f32.mrf.mxu0
        %1200 = vdwg.mxu0
        %v1201 = vmax.f32 %v1196, 0.0
        %v1203 = vrot.slane %v1201, 4
        %v1205 = vsel %vm574, 0.0, %v1203
        %v1207 = vrot.slane %v1205, 2
        %v1208 = vrot.slane %v1203, 2
        %v1209 = vsel %vm285, %v1207, %v1208
        %1210 = vrot.lane.b32.xlu0 %v1209, 32
        %v1211 = vpop.permute.xlu0 %1210
        %v1213 = vrot.slane %v1205, 4
        %v1214 = vrot.slane %v1203, 4
        %v1215 = vsel %vm574, %v1213, %v1214
        %1216 = vrot.lane.b32.xlu0 %v1215, 64
        %v1217 = vpop.permute.xlu0 %1216
        %v1219 = vsel %vm394, %v1205, %v1211
        %v1220 = vsel %vm397, %v1219, %v1217
        %v1221 = vpack.c.bf16 %v1220, %v1220
        %v1222 = vlaneseq
        %v1223 = vshrl.u32 %v1222, 7
        %v1224 = vsub.s32 0, %v1223
        %v1225 = vrot.slane %v1097, %v1224
        %v1238 = vunpack.c.l.b16 %v1085
        %v1239 = vunpack.c.l.b16 %v1086
        %v1240 = vunpack.c.l.b16 %v1087
        %v1241 = vunpack.c.l.b16 %v1088
        %v1242 = vunpack.c.l.b16 %v1089
        %v1243 = vunpack.c.l.b16 %v1090
        %v1244 = vunpack.c.l.b16 %v1091
        %v1245 = vunpack.c.l.b16 %v1092
        %v1246 = vunpack.c.l.b16 %v1093
        %v1247 = vunpack.c.l.b16 %v1094
        %v1248 = vunpack.c.l.b16 %v1095
        %v1249 = vunpack.c.l.b16 %v1096
        %v1250 = vpack.c.b16 %v1239, %v1238
        %v1251 = vpack.c.b16 %v1241, %v1240
        %v1252 = vpack.c.b16 %v1243, %v1242
        %v1253 = vpack.c.b16 %v1245, %v1244
        %v1254 = vpack.c.b16 %v1247, %v1246
        %v1255 = vpack.c.b16 %v1249, %v1248
        %v1263 = vsel %vm441, %v1221, 0
        %1265 = vmatprep.subr.bf16.mxu0 0
        %1266 = vmatpush1.bf16.msra.mxu0 0
        %1267 = vmatprep.subr.bf16.mxu0 0
        %1268 = vmatpush1.bf16.msra.mxu0 0
        %1269 = vmatprep.subr.bf16.mxu0 0
        %1270 = vmatpush1.bf16.msra.mxu0 %v1255
        %1271 = vmatprep.subr.bf16.mxu0 0
        %1272 = vmatpush1.bf16.msra.mxu0 %v1254
        %1273 = vmatprep.subr.bf16.mxu0 0
        %1274 = vmatpush1.bf16.msra.mxu0 %v1253
        %1275 = vmatprep.subr.bf16.mxu0 0
        %1276 = vmatpush1.bf16.msra.mxu0 %v1252
        %1277 = vmatprep.subr.bf16.mxu0 0
        %1278 = vmatpush1.bf16.msra.mxu0 %v1251
        %1279 = vmatprep.subr.bf16.mxu0 0
        %1280 = vmatpush1.bf16.msra.mxu0 %v1250
        %1281 = vmatprep.subr.bf16.mxu0 0
        %1282 = vmatpush2.bf16.msra.mxu0 0
        %1283 = vmatprep.subr.bf16.mxu0 0
        %1284 = vmatpush2.bf16.msra.mxu0 0
        %1285 = vmatprep.subr.bf16.mxu0 0
        %1286 = vmatpush2.bf16.msra.mxu0 0
        %1287 = vmatprep.subr.bf16.mxu0 0
        %1288 = vmatpush2.bf16.msra.mxu0 0
        %1289 = vmatprep.subr.bf16.mxu0 0
        %1290 = vmatpush2.bf16.msra.mxu0 0
        %1291 = vmatprep.subr.bf16.mxu0 0
        %1292 = vmatpush2.bf16.msra.mxu0 0
        %1293 = vmatprep.subr.bf16.mxu0 0
        %1294 = vmatpush2.bf16.msra.mxu0 0
        %1295 = vmatprep.subr.bf16.mxu0 0
        %1296 = vmatpush2.bf16.msra.mxu0 0
        %1297 = vmatprep.mubr.bf16.mxu0 0
        %1298 = vmatmul.mubr.bf16.gmra.mxu0 %v1263
        %v1299 = vpop.f32.mrf.mxu0
        %v1300 = vadd.f32 %v1225, %v1299
        %v1301 = vpop.f32.mrf.mxu0
        %v1302 = vpop.f32.mrf.mxu0
        %v1303 = vpop.f32.mrf.mxu0
        %1304 = vdwg.mxu0
        %v1305 = vmax.f32 %v1300, 0.0
        %v1306 = vadd.f32 %v1305, %v1071
        %v1307 = vmax.f32 %v1306, 0.0
        %v1308 = vld [vmem:[#allocation4 + $0x50] sm:$0x1]
        %v1309 = vld [vmem:[#allocation4 + $0x58] sm:$0x1]
        %v1310 = vld [vmem:[#allocation4 + $0x60] sm:$0x1]
        %v1311 = vld [vmem:[#allocation4 + $0x68] sm:$0x1]
        %v1312 = vpack.c.bf16 %v1307, %v1307
        %v1313 = vlaneseq
        %v1314 = vshrl.u32 %v1313, 7
        %v1315 = vlaneseq
        %v1316 = vand.u32 %v1315, 127
        %vm1317 = vcmp.le.s32.totalorder %v1316, %v1314
        %v1318 = vlaneseq
        %v1319 = vshrl.u32 %v1318, 7
        %v1320 = vsub.s32 0, %v1319
        %v1321 = vrot.slane %v1311, %v1320
        %v1322 = vadd.f32 %v1321, 0.0
        %v1323 = vld [vmem:[#allocation2 + $0x140] sm:$0xf]
        %v1324 = vld [vmem:[#allocation2 + $0x144] sm:$0xf]
        %v1325 = vld [vmem:[#allocation2 + $0x148] sm:$0xf]
        %v1326 = vld [vmem:[#allocation2 + $0x14c] sm:$0xf]
        %v1327 = vld [vmem:[#allocation2 + $0x150] sm:$0xf]
        %v1328 = vld [vmem:[#allocation2 + $0x154] sm:$0xf]
        %v1329 = vld [vmem:[#allocation2 + $0x158] sm:$0xf]
        %v1330 = vld [vmem:[#allocation2 + $0x15c] sm:$0xf]
        %v1331 = vld [vmem:[#allocation2 + $0x160] sm:$0xf]
        %v1332 = vld [vmem:[#allocation2 + $0x164] sm:$0xf]
        %v1333 = vld [vmem:[#allocation2 + $0x168] sm:$0xf]
        %v1334 = vld [vmem:[#allocation2 + $0x16c] sm:$0xf]
        %v1335 = vld [vmem:[#allocation2 + $0x170] sm:$0xf]
        %v1336 = vlaneseq
        %v1337 = vshrl.u32 %v1336, 7
        %v1338 = vsub.s32 0, %v1337
        %v1339 = vrot.slane %v1308, %v1338
        %v1344 = vunpack.c.l.b16 %v1323
        %v1345 = vunpack.c.l.b16 %v1324
        %v1346 = vunpack.c.l.b16 %v1325
        %v1347 = vunpack.c.l.b16 %v1326
        %v1348 = vpack.c.b16 %v1345, %v1344
        %v1349 = vpack.c.b16 %v1347, %v1346
        %v1353 = vsel %vm394, %v1312, 0
        %1355 = vmatprep.subr.bf16.mxu0 0
        %1356 = vmatpush1.bf16.msra.mxu0 0
        %1357 = vmatprep.subr.bf16.mxu0 0
        %1358 = vmatpush1.bf16.msra.mxu0 0
        %1359 = vmatprep.subr.bf16.mxu0 0
        %1360 = vmatpush1.bf16.msra.mxu0 0
        %1361 = vmatprep.subr.bf16.mxu0 0
        %1362 = vmatpush1.bf16.msra.mxu0 0
        %1363 = vmatprep.subr.bf16.mxu0 0
        %1364 = vmatpush1.bf16.msra.mxu0 0
        %1365 = vmatprep.subr.bf16.mxu0 0
        %1366 = vmatpush1.bf16.msra.mxu0 0
        %1367 = vmatprep.subr.bf16.mxu0 0
        %1368 = vmatpush1.bf16.msra.mxu0 %v1349
        %1369 = vmatprep.subr.bf16.mxu0 0
        %1370 = vmatpush1.bf16.msra.mxu0 %v1348
        %1371 = vmatprep.subr.bf16.mxu0 0
        %1372 = vmatpush2.bf16.msra.mxu0 0
        %1373 = vmatprep.subr.bf16.mxu0 0
        %1374 = vmatpush2.bf16.msra.mxu0 0
        %1375 = vmatprep.subr.bf16.mxu0 0
        %1376 = vmatpush2.bf16.msra.mxu0 0
        %1377 = vmatprep.subr.bf16.mxu0 0
        %1378 = vmatpush2.bf16.msra.mxu0 0
        %1379 = vmatprep.subr.bf16.mxu0 0
        %1380 = vmatpush2.bf16.msra.mxu0 0
        %1381 = vmatprep.subr.bf16.mxu0 0
        %1382 = vmatpush2.bf16.msra.mxu0 0
        %1383 = vmatprep.subr.bf16.mxu0 0
        %1384 = vmatpush2.bf16.msra.mxu0 0
        %1385 = vmatprep.subr.bf16.mxu0 0
        %1386 = vmatpush2.bf16.msra.mxu0 0
        %1387 = vmatprep.mubr.bf16.mxu0 0
        %1388 = vmatmul.mubr.bf16.gmra.mxu0 %v1353
        %v1389 = vpop.f32.mrf.mxu0
        %v1390 = vadd.f32 %v1339, %v1389
        %v1391 = vpop.f32.mrf.mxu0
        %v1392 = vpop.f32.mrf.mxu0
        %v1393 = vpop.f32.mrf.mxu0
        %1394 = vdwg.mxu0
        %v1395 = vlaneseq
        %v1396 = vshrl.u32 %v1395, 7
        %v1397 = vsub.s32 0, %v1396
        %v1398 = vrot.slane %v1309, %v1397
        %v1403 = vunpack.c.l.b16 %v1327
        %v1404 = vunpack.c.l.b16 %v1328
        %v1405 = vunpack.c.l.b16 %v1329
        %v1406 = vunpack.c.l.b16 %v1330
        %v1407 = vpack.c.b16 %v1404, %v1403
        %v1408 = vpack.c.b16 %v1406, %v1405
        %1411 = vmatprep.subr.bf16.mxu0 0
        %1412 = vmatpush1.bf16.msra.mxu0 0
        %1413 = vmatprep.subr.bf16.mxu0 0
        %1414 = vmatpush1.bf16.msra.mxu0 0
        %1415 = vmatprep.subr.bf16.mxu0 0
        %1416 = vmatpush1.bf16.msra.mxu0 0
        %1417 = vmatprep.subr.bf16.mxu0 0
        %1418 = vmatpush1.bf16.msra.mxu0 0
        %1419 = vmatprep.subr.bf16.mxu0 0
        %1420 = vmatpush1.bf16.msra.mxu0 0
        %1421 = vmatprep.subr.bf16.mxu0 0
        %1422 = vmatpush1.bf16.msra.mxu0 0
        %1423 = vmatprep.subr.bf16.mxu0 0
        %1424 = vmatpush1.bf16.msra.mxu0 %v1408
        %1425 = vmatprep.subr.bf16.mxu0 0
        %1426 = vmatpush1.bf16.msra.mxu0 %v1407
        %1427 = vmatprep.subr.bf16.mxu0 0
        %1428 = vmatpush2.bf16.msra.mxu0 0
        %1429 = vmatprep.subr.bf16.mxu0 0
        %1430 = vmatpush2.bf16.msra.mxu0 0
        %1431 = vmatprep.subr.bf16.mxu0 0
        %1432 = vmatpush2.bf16.msra.mxu0 0
        %1433 = vmatprep.subr.bf16.mxu0 0
        %1434 = vmatpush2.bf16.msra.mxu0 0
        %1435 = vmatprep.subr.bf16.mxu0 0
        %1436 = vmatpush2.bf16.msra.mxu0 0
        %1437 = vmatprep.subr.bf16.mxu0 0
        %1438 = vmatpush2.bf16.msra.mxu0 0
        %1439 = vmatprep.subr.bf16.mxu0 0
        %1440 = vmatpush2.bf16.msra.mxu0 0
        %1441 = vmatprep.subr.bf16.mxu0 0
        %1442 = vmatpush2.bf16.msra.mxu0 0
        %1443 = vmatprep.mubr.bf16.mxu0 0
        %1444 = vmatmul.mubr.bf16.gmra.mxu0 %v1353
        %v1445 = vpop.f32.mrf.mxu0
        %v1446 = vadd.f32 %v1398, %v1445
        %v1447 = vpop.f32.mrf.mxu0
        %v1448 = vpop.f32.mrf.mxu0
        %v1449 = vpop.f32.mrf.mxu0
        %1450 = vdwg.mxu0
        %v1451 = vlaneseq
        %v1452 = vshrl.u32 %v1451, 7
        %v1453 = vsub.s32 0, %v1452
        %v1454 = vrot.slane %v1310, %v1453
        %v1459 = vunpack.c.l.b16 %v1331
        %v1460 = vunpack.c.l.b16 %v1332
        %v1461 = vunpack.c.l.b16 %v1333
        %v1462 = vunpack.c.l.b16 %v1334
        %v1463 = vpack.c.b16 %v1460, %v1459
        %v1464 = vpack.c.b16 %v1462, %v1461
        %1467 = vmatprep.subr.bf16.mxu0 0
        %1468 = vmatpush1.bf16.msra.mxu0 0
        %1469 = vmatprep.subr.bf16.mxu0 0
        %1470 = vmatpush1.bf16.msra.mxu0 0
        %1471 = vmatprep.subr.bf16.mxu0 0
        %1472 = vmatpush1.bf16.msra.mxu0 0
        %1473 = vmatprep.subr.bf16.mxu0 0
        %1474 = vmatpush1.bf16.msra.mxu0 0
        %1475 = vmatprep.subr.bf16.mxu0 0
        %1476 = vmatpush1.bf16.msra.mxu0 0
        %1477 = vmatprep.subr.bf16.mxu0 0
        %1478 = vmatpush1.bf16.msra.mxu0 0
        %1479 = vmatprep.subr.bf16.mxu0 0
        %1480 = vmatpush1.bf16.msra.mxu0 %v1464
        %1481 = vmatprep.subr.bf16.mxu0 0
        %1482 = vmatpush1.bf16.msra.mxu0 %v1463
        %1483 = vmatprep.subr.bf16.mxu0 0
        %1484 = vmatpush2.bf16.msra.mxu0 0
        %1485 = vmatprep.subr.bf16.mxu0 0
        %1486 = vmatpush2.bf16.msra.mxu0 0
        %1487 = vmatprep.subr.bf16.mxu0 0
        %1488 = vmatpush2.bf16.msra.mxu0 0
        %1489 = vmatprep.subr.bf16.mxu0 0
        %1490 = vmatpush2.bf16.msra.mxu0 0
        %1491 = vmatprep.subr.bf16.mxu0 0
        %1492 = vmatpush2.bf16.msra.mxu0 0
        %1493 = vmatprep.subr.bf16.mxu0 0
        %1494 = vmatpush2.bf16.msra.mxu0 0
        %1495 = vmatprep.subr.bf16.mxu0 0
        %1496 = vmatpush2.bf16.msra.mxu0 0
        %1497 = vmatprep.subr.bf16.mxu0 0
        %1498 = vmatpush2.bf16.msra.mxu0 0
        %1499 = vmatprep.mubr.bf16.mxu0 0
        %1500 = vmatmul.mubr.bf16.gmra.mxu0 %v1353
        %v1501 = vpop.f32.mrf.mxu0
        %v1502 = vadd.f32 %v1454, %v1501
        %v1503 = vpop.f32.mrf.mxu0
        %v1504 = vpop.f32.mrf.mxu0
        %v1505 = vpop.f32.mrf.mxu0
        %1506 = vdwg.mxu0
        %v1507 = vpack.c.bf16 %v1390, %v1390
        %v1508 = vpack.c.bf16 %v1446, %v1446
        %v1510 = vsel %vm300, %v1507, 0
        %v1513 = vsel %vm300, %v1508, 0
        %1515 = vmatprep.subr.bf16.mxu0 0
        %1516 = vmatpush1.bf16.xpose.msra.mxu0 0
        %1517 = vmatprep.subr.bf16.mxu0 0
        %1518 = vmatpush1.bf16.xpose.msra.mxu0 0
        %1519 = vmatprep.subr.bf16.mxu0 0
        %1520 = vmatpush1.bf16.xpose.msra.mxu0 0
        %1521 = vmatprep.subr.bf16.mxu0 0
        %1522 = vmatpush1.bf16.xpose.msra.mxu0 0
        %1523 = vmatprep.subr.bf16.mxu0 0
        %1524 = vmatpush1.bf16.xpose.msra.mxu0 0
        %1525 = vmatprep.subr.bf16.mxu0 0
        %1526 = vmatpush1.bf16.xpose.msra.mxu0 0
        %1527 = vmatprep.subr.bf16.mxu0 0
        %1528 = vmatpush1.bf16.xpose.msra.mxu0 0
        %1529 = vmatprep.subr.bf16.mxu0 0
        %1530 = vmatpush1.bf16.xpose.msra.mxu0 %v1513
        %1531 = vmatprep.subr.bf16.mxu0 0
        %1532 = vmatpush2.bf16.xpose.msra.mxu0 0
        %1533 = vmatprep.subr.bf16.mxu0 0
        %1534 = vmatpush2.bf16.xpose.msra.mxu0 0
        %1535 = vmatprep.subr.bf16.mxu0 0
        %1536 = vmatpush2.bf16.xpose.msra.mxu0 0
        %1537 = vmatprep.subr.bf16.mxu0 0
        %1538 = vmatpush2.bf16.xpose.msra.mxu0 0
        %1539 = vmatprep.subr.bf16.mxu0 0
        %1540 = vmatpush2.bf16.xpose.msra.mxu0 0
        %1541 = vmatprep.subr.bf16.mxu0 0
        %1542 = vmatpush2.bf16.xpose.msra.mxu0 0
        %1543 = vmatprep.subr.bf16.mxu0 0
        %1544 = vmatpush2.bf16.xpose.msra.mxu0 0
        %1545 = vmatprep.subr.bf16.mxu0 0
        %1546 = vmatpush2.bf16.xpose.msra.mxu0 0
        %1547 = vmatprep.mubr.bf16.mxu0 0
        %1548 = vmatmul.mubr.bf16.gmra.mxu0 %v1510
        %v1549 = vpop.f32.mrf.mxu0
        %v1550 = vadd.f32 0.0, %v1549
        %v1551 = vpop.f32.mrf.mxu0
        %v1552 = vpop.f32.mrf.mxu0
        %v1553 = vpop.f32.mrf.mxu0
        %1554 = vdwg.mxu0
        %v1555 = vmul.f32 %v1550, 0.35355338
        %v1556 = vsel %vm1317, %v1555, -1e+30
        %v1557 = vsel %vm300, %v1556, -inf
        %1558 = vmax.xlane.f32.xlu0 %v1557
        %v1559 = vpop.xlane.xlu0 %1558
        %v1560 = vsub.f32 %v1556, %v1559
        %v1561 = vmul.f32 %v1560, 1.442695
        %v1562 = vpow.pop %v1561
        %v1563 = vsel %vm300, %v1562, 0.0
        %1564 = vadd.xlane.f32.xlu0 %v1563
        %v1565 = vpop.xlane.xlu0 %1564
        %v1566 = vrcp.pop %v1565
        %v1567 = vmul.f32 %v1565, %v1566
        %v1568 = vsub.f32 2.0, %v1567
        %v1569 = vmul.f32 %v1566, %v1568
        %v1570 = vmul.f32 %v1562, %v1569
        %v1571 = vadd.f32 %v1570, 0.0
        %v1572 = vpack.c.bf16 %v1570, %v1570
        %v1573 = vpack.c.bf16 %v1502, %v1502
        %v1575 = vsel %vm300, %v1572, 0
        %v1578 = vsel %vm574, %v1573, 0
        %1580 = vmatprep.subr.bf16.mxu0 0
        %1581 = vmatpush1.bf16.msra.mxu0 0
        %1582 = vmatprep.subr.bf16.mxu0 0
        %1583 = vmatpush1.bf16.msra.mxu0 0
        %1584 = vmatprep.subr.bf16.mxu0 0
        %1585 = vmatpush1.bf16.msra.mxu0 0
        %1586 = vmatprep.subr.bf16.mxu0 0
        %1587 = vmatpush1.bf16.msra.mxu0 0
        %1588 = vmatprep.subr.bf16.mxu0 0
        %1589 = vmatpush1.bf16.msra.mxu0 0
        %1590 = vmatprep.subr.bf16.mxu0 0
        %1591 = vmatpush1.bf16.msra.mxu0 0
        %1592 = vmatprep.subr.bf16.mxu0 0
        %1593 = vmatpush1.bf16.msra.mxu0 0
        %1594 = vmatprep.subr.bf16.mxu0 0
        %1595 = vmatpush1.bf16.msra.mxu0 %v1578
        %1596 = vmatprep.subr.bf16.mxu0 0
        %1597 = vmatpush2.bf16.msra.mxu0 0
        %1598 = vmatprep.subr.bf16.mxu0 0
        %1599 = vmatpush2.bf16.msra.mxu0 0
        %1600 = vmatprep.subr.bf16.mxu0 0
        %1601 = vmatpush2.bf16.msra.mxu0 0
        %1602 = vmatprep.subr.bf16.mxu0 0
        %1603 = vmatpush2.bf16.msra.mxu0 0
        %1604 = vmatprep.subr.bf16.mxu0 0
        %1605 = vmatpush2.bf16.msra.mxu0 0
        %1606 = vmatprep.subr.bf16.mxu0 0
        %1607 = vmatpush2.bf16.msra.mxu0 0
        %1608 = vmatprep.subr.bf16.mxu0 0
        %1609 = vmatpush2.bf16.msra.mxu0 0
        %1610 = vmatprep.subr.bf16.mxu0 0
        %1611 = vmatpush2.bf16.msra.mxu0 0
        %1612 = vmatprep.mubr.bf16.mxu0 0
        %1613 = vmatmul.mubr.bf16.gmra.mxu0 %v1575
        %v1614 = vpop.f32.mrf.mxu0
        %v1615 = vadd.f32 0.0, %v1614
        %v1616 = vpop.f32.mrf.mxu0
        %v1617 = vpop.f32.mrf.mxu0
        %v1618 = vpop.f32.mrf.mxu0
        %1619 = vdwg.mxu0
        %v1620 = vpack.c.bf16 %v1615, %v1615
        %v1622 = vsel %vm300, %v1620, 0
        %v1625 = vsel %vm574, %v1335, 0
        %1627 = vmatprep.subr.bf16.mxu0 0
        %1628 = vmatpush1.bf16.msra.mxu0 0
        %1629 = vmatprep.subr.bf16.mxu0 0
        %1630 = vmatpush1.bf16.msra.mxu0 0
        %1631 = vmatprep.subr.bf16.mxu0 0
        %1632 = vmatpush1.bf16.msra.mxu0 0
        %1633 = vmatprep.subr.bf16.mxu0 0
        %1634 = vmatpush1.bf16.msra.mxu0 0
        %1635 = vmatprep.subr.bf16.mxu0 0
        %1636 = vmatpush1.bf16.msra.mxu0 0
        %1637 = vmatprep.subr.bf16.mxu0 0
        %1638 = vmatpush1.bf16.msra.mxu0 0
        %1639 = vmatprep.subr.bf16.mxu0 0
        %1640 = vmatpush1.bf16.msra.mxu0 0
        %1641 = vmatprep.subr.bf16.mxu0 0
        %1642 = vmatpush1.bf16.msra.mxu0 %v1625
        %1643 = vmatprep.subr.bf16.mxu0 0
        %1644 = vmatpush2.bf16.msra.mxu0 0
        %1645 = vmatprep.subr.bf16.mxu0 0
        %1646 = vmatpush2.bf16.msra.mxu0 0
        %1647 = vmatprep.subr.bf16.mxu0 0
        %1648 = vmatpush2.bf16.msra.mxu0 0
        %1649 = vmatprep.subr.bf16.mxu0 0
        %1650 = vmatpush2.bf16.msra.mxu0 0
        %1651 = vmatprep.subr.bf16.mxu0 0
        %1652 = vmatpush2.bf16.msra.mxu0 0
        %1653 = vmatprep.subr.bf16.mxu0 0
        %1654 = vmatpush2.bf16.msra.mxu0 0
        %1655 = vmatprep.subr.bf16.mxu0 0
        %1656 = vmatpush2.bf16.msra.mxu0 0
        %1657 = vmatprep.subr.bf16.mxu0 0
        %1658 = vmatpush2.bf16.msra.mxu0 0
        %1659 = vmatprep.mubr.bf16.mxu0 0
        %1660 = vmatmul.mubr.bf16.gmra.mxu0 %v1622
        %v1661 = vpop.f32.mrf.mxu0
        %v1662 = vadd.f32 0.0, %v1661
        %v1663 = vpop.f32.mrf.mxu0
        %v1664 = vpop.f32.mrf.mxu0
        %v1665 = vpop.f32.mrf.mxu0
        %1666 = vdwg.mxu0
        %v1667 = vadd.f32 %v1322, %v1662
        %v1668 = vld [vmem:[#allocation2 + $0x178] sm:$0xf]
        %v1669 = vld [vmem:[#allocation2 + $0x17c] sm:$0xf]
        %v1670 = vld [vmem:[#allocation2 + $0x180] sm:$0xf]
        %v1671 = vld [vmem:[#allocation2 + $0x184] sm:$0xf]
        %v1672 = vld [vmem:[#allocation2 + $0x188] sm:$0xf]
        %v1673 = vld [vmem:[#allocation2 + $0x18c] sm:$0xf]
        %v1674 = vld [vmem:[#allocation2 + $0x190] sm:$0xf]
        %v1675 = vld [vmem:[#allocation2 + $0x194] sm:$0xf]
        %v1676 = vld [vmem:[#allocation2 + $0x198] sm:$0xf]
        %v1677 = vld [vmem:[#allocation2 + $0x19c] sm:$0xf]
        %v1678 = vld [vmem:[#allocation2 + $0x1a0] sm:$0xf]
        %v1679 = vld [vmem:[#allocation2 + $0x1a4] sm:$0xf]
        %v1680 = vld [vmem:[#allocation2 + $0x1a8] sm:$0xf]
        %v1685 = vunpack.c.l.b16 %v1668
        %v1686 = vunpack.c.l.b16 %v1669
        %v1687 = vunpack.c.l.b16 %v1670
        %v1688 = vunpack.c.l.b16 %v1671
        %v1689 = vpack.c.b16 %v1686, %v1685
        %v1690 = vpack.c.b16 %v1688, %v1687
        %1694 = vrot.lane.b32.xlu0 %v1339, 120
        %v1695 = vpop.permute.xlu0 %1694
        %1697 = vmatprep.subr.bf16.mxu0 0
        %1698 = vmatpush1.bf16.msra.mxu0 0
        %1699 = vmatprep.subr.bf16.mxu0 0
        %1700 = vmatpush1.bf16.msra.mxu0 0
        %1701 = vmatprep.subr.bf16.mxu0 0
        %1702 = vmatpush1.bf16.msra.mxu0 0
        %1703 = vmatprep.subr.bf16.mxu0 0
        %1704 = vmatpush1.bf16.msra.mxu0 0
        %1705 = vmatprep.subr.bf16.mxu0 0
        %1706 = vmatpush1.bf16.msra.mxu0 0
        %1707 = vmatprep.subr.bf16.mxu0 0
        %1708 = vmatpush1.bf16.msra.mxu0 0
        %1709 = vmatprep.subr.bf16.mxu0 0
        %1710 = vmatpush1.bf16.msra.mxu0 %v1690
        %1711 = vmatprep.subr.bf16.mxu0 0
        %1712 = vmatpush1.bf16.msra.mxu0 %v1689
        %1713 = vmatprep.subr.bf16.mxu0 0
        %1714 = vmatpush2.bf16.msra.mxu0 0
        %1715 = vmatprep.subr.bf16.mxu0 0
        %1716 = vmatpush2.bf16.msra.mxu0 0
        %1717 = vmatprep.subr.bf16.mxu0 0
        %1718 = vmatpush2.bf16.msra.mxu0 0
        %1719 = vmatprep.subr.bf16.mxu0 0
        %1720 = vmatpush2.bf16.msra.mxu0 0
        %1721 = vmatprep.subr.bf16.mxu0 0
        %1722 = vmatpush2.bf16.msra.mxu0 0
        %1723 = vmatprep.subr.bf16.mxu0 0
        %1724 = vmatpush2.bf16.msra.mxu0 0
        %1725 = vmatprep.subr.bf16.mxu0 0
        %1726 = vmatpush2.bf16.msra.mxu0 0
        %1727 = vmatprep.subr.bf16.mxu0 0
        %1728 = vmatpush2.bf16.msra.mxu0 0
        %1729 = vmatprep.mubr.bf16.mxu0 0
        %1730 = vmatmul.mubr.bf16.gmra.mxu0 %v1353
        %v1731 = vpop.f32.mrf.mxu0
        %v1732 = vadd.f32 %v1695, %v1731
        %v1733 = vpop.f32.mrf.mxu0
        %v1734 = vpop.f32.mrf.mxu0
        %v1735 = vpop.f32.mrf.mxu0
        %1736 = vdwg.mxu0
        %v1741 = vunpack.c.l.b16 %v1672
        %v1742 = vunpack.c.l.b16 %v1673
        %v1743 = vunpack.c.l.b16 %v1674
        %v1744 = vunpack.c.l.b16 %v1675
        %v1745 = vpack.c.b16 %v1742, %v1741
        %v1746 = vpack.c.b16 %v1744, %v1743
        %1750 = vrot.lane.b32.xlu0 %v1398, 120
        %v1751 = vpop.permute.xlu0 %1750
        %1753 = vmatprep.subr.bf16.mxu0 0
        %1754 = vmatpush1.bf16.msra.mxu0 0
        %1755 = vmatprep.subr.bf16.mxu0 0
        %1756 = vmatpush1.bf16.msra.mxu0 0
        %1757 = vmatprep.subr.bf16.mxu0 0
        %1758 = vmatpush1.bf16.msra.mxu0 0
        %1759 = vmatprep.subr.bf16.mxu0 0
        %1760 = vmatpush1.bf16.msra.mxu0 0
        %1761 = vmatprep.subr.bf16.mxu0 0
        %1762 = vmatpush1.bf16.msra.mxu0 0
        %1763 = vmatprep.subr.bf16.mxu0 0
        %1764 = vmatpush1.bf16.msra.mxu0 0
        %1765 = vmatprep.subr.bf16.mxu0 0
        %1766 = vmatpush1.bf16.msra.mxu0 %v1746
        %1767 = vmatprep.subr.bf16.mxu0 0
        %1768 = vmatpush1.bf16.msra.mxu0 %v1745
        %1769 = vmatprep.subr.bf16.mxu0 0
        %1770 = vmatpush2.bf16.msra.mxu0 0
        %1771 = vmatprep.subr.bf16.mxu0 0
        %1772 = vmatpush2.bf16.msra.mxu0 0
        %1773 = vmatprep.subr.bf16.mxu0 0
        %1774 = vmatpush2.bf16.msra.mxu0 0
        %1775 = vmatprep.subr.bf16.mxu0 0
        %1776 = vmatpush2.bf16.msra.mxu0 0
        %1777 = vmatprep.subr.bf16.mxu0 0
        %1778 = vmatpush2.bf16.msra.mxu0 0
        %1779 = vmatprep.subr.bf16.mxu0 0
        %1780 = vmatpush2.bf16.msra.mxu0 0
        %1781 = vmatprep.subr.bf16.mxu0 0
        %1782 = vmatpush2.bf16.msra.mxu0 0
        %1783 = vmatprep.subr.bf16.mxu0 0
        %1784 = vmatpush2.bf16.msra.mxu0 0
        %1785 = vmatprep.mubr.bf16.mxu0 0
        %1786 = vmatmul.mubr.bf16.gmra.mxu0 %v1353
        %v1787 = vpop.f32.mrf.mxu0
        %v1788 = vadd.f32 %v1751, %v1787
        %v1789 = vpop.f32.mrf.mxu0
        %v1790 = vpop.f32.mrf.mxu0
        %v1791 = vpop.f32.mrf.mxu0
        %1792 = vdwg.mxu0
        %v1797 = vunpack.c.l.b16 %v1676
        %v1798 = vunpack.c.l.b16 %v1677
        %v1799 = vunpack.c.l.b16 %v1678
        %v1800 = vunpack.c.l.b16 %v1679
        %v1801 = vpack.c.b16 %v1798, %v1797
        %v1802 = vpack.c.b16 %v1800, %v1799
        %1806 = vrot.lane.b32.xlu0 %v1454, 120
        %v1807 = vpop.permute.xlu0 %1806
        %1809 = vmatprep.subr.bf16.mxu0 0
        %1810 = vmatpush1.bf16.msra.mxu0 0
        %1811 = vmatprep.subr.bf16.mxu0 0
        %1812 = vmatpush1.bf16.msra.mxu0 0
        %1813 = vmatprep.subr.bf16.mxu0 0
        %1814 = vmatpush1.bf16.msra.mxu0 0
        %1815 = vmatprep.subr.bf16.mxu0 0
        %1816 = vmatpush1.bf16.msra.mxu0 0
        %1817 = vmatprep.subr.bf16.mxu0 0
        %1818 = vmatpush1.bf16.msra.mxu0 0
        %1819 = vmatprep.subr.bf16.mxu0 0
        %1820 = vmatpush1.bf16.msra.mxu0 0
        %1821 = vmatprep.subr.bf16.mxu0 0
        %1822 = vmatpush1.bf16.msra.mxu0 %v1802
        %1823 = vmatprep.subr.bf16.mxu0 0
        %1824 = vmatpush1.bf16.msra.mxu0 %v1801
        %1825 = vmatprep.subr.bf16.mxu0 0
        %1826 = vmatpush2.bf16.msra.mxu0 0
        %1827 = vmatprep.subr.bf16.mxu0 0
        %1828 = vmatpush2.bf16.msra.mxu0 0
        %1829 = vmatprep.subr.bf16.mxu0 0
        %1830 = vmatpush2.bf16.msra.mxu0 0
        %1831 = vmatprep.subr.bf16.mxu0 0
        %1832 = vmatpush2.bf16.msra.mxu0 0
        %1833 = vmatprep.subr.bf16.mxu0 0
        %1834 = vmatpush2.bf16.msra.mxu0 0
        %1835 = vmatprep.subr.bf16.mxu0 0
        %1836 = vmatpush2.bf16.msra.mxu0 0
        %1837 = vmatprep.subr.bf16.mxu0 0
        %1838 = vmatpush2.bf16.msra.mxu0 0
        %1839 = vmatprep.subr.bf16.mxu0 0
        %1840 = vmatpush2.bf16.msra.mxu0 0
        %1841 = vmatprep.mubr.bf16.mxu0 0
        %1842 = vmatmul.mubr.bf16.gmra.mxu0 %v1353
        %v1843 = vpop.f32.mrf.mxu0
        %v1844 = vadd.f32 %v1807, %v1843
        %v1845 = vpop.f32.mrf.mxu0
        %v1846 = vpop.f32.mrf.mxu0
        %v1847 = vpop.f32.mrf.mxu0
        %1848 = vdwg.mxu0
        %v1849 = vpack.c.bf16 %v1732, %v1732
        %v1850 = vpack.c.bf16 %v1788, %v1788
        %v1852 = vsel %vm300, %v1849, 0
        %v1855 = vsel %vm300, %v1850, 0
        %1857 = vmatprep.subr.bf16.mxu0 0
        %1858 = vmatpush1.bf16.xpose.msra.mxu0 0
        %1859 = vmatprep.subr.bf16.mxu0 0
        %1860 = vmatpush1.bf16.xpose.msra.mxu0 0
        %1861 = vmatprep.subr.bf16.mxu0 0
        %1862 = vmatpush1.bf16.xpose.msra.mxu0 0
        %1863 = vmatprep.subr.bf16.mxu0 0
        %1864 = vmatpush1.bf16.xpose.msra.mxu0 0
        %1865 = vmatprep.subr.bf16.mxu0 0
        %1866 = vmatpush1.bf16.xpose.msra.mxu0 0
        %1867 = vmatprep.subr.bf16.mxu0 0
        %1868 = vmatpush1.bf16.xpose.msra.mxu0 0
        %1869 = vmatprep.subr.bf16.mxu0 0
        %1870 = vmatpush1.bf16.xpose.msra.mxu0 0
        %1871 = vmatprep.subr.bf16.mxu0 0
        %1872 = vmatpush1.bf16.xpose.msra.mxu0 %v1855
        %1873 = vmatprep.subr.bf16.mxu0 0
        %1874 = vmatpush2.bf16.xpose.msra.mxu0 0
        %1875 = vmatprep.subr.bf16.mxu0 0
        %1876 = vmatpush2.bf16.xpose.msra.mxu0 0
        %1877 = vmatprep.subr.bf16.mxu0 0
        %1878 = vmatpush2.bf16.xpose.msra.mxu0 0
        %1879 = vmatprep.subr.bf16.mxu0 0
        %1880 = vmatpush2.bf16.xpose.msra.mxu0 0
        %1881 = vmatprep.subr.bf16.mxu0 0
        %1882 = vmatpush2.bf16.xpose.msra.mxu0 0
        %1883 = vmatprep.subr.bf16.mxu0 0
        %1884 = vmatpush2.bf16.xpose.msra.mxu0 0
        %1885 = vmatprep.subr.bf16.mxu0 0
        %1886 = vmatpush2.bf16.xpose.msra.mxu0 0
        %1887 = vmatprep.subr.bf16.mxu0 0
        %1888 = vmatpush2.bf16.xpose.msra.mxu0 0
        %1889 = vmatprep.mubr.bf16.mxu0 0
        %1890 = vmatmul.mubr.bf16.gmra.mxu0 %v1852
        %v1891 = vpop.f32.mrf.mxu0
        %v1892 = vadd.f32 0.0, %v1891
        %v1893 = vpop.f32.mrf.mxu0
        %v1894 = vpop.f32.mrf.mxu0
        %v1895 = vpop.f32.mrf.mxu0
        %1896 = vdwg.mxu0
        %v1897 = vmul.f32 %v1892, 0.35355338
        %v1898 = vsel %vm1317, %v1897, -1e+30
        %v1899 = vsel %vm300, %v1898, -inf
        %1900 = vmax.xlane.f32.xlu0 %v1899
        %v1901 = vpop.xlane.xlu0 %1900
        %v1902 = vsub.f32 %v1898, %v1901
        %v1903 = vmul.f32 %v1902, 1.442695
        %v1904 = vpow.pop %v1903
        %v1905 = vsel %vm300, %v1904, 0.0
        %1906 = vadd.xlane.f32.xlu0 %v1905
        %v1907 = vpop.xlane.xlu0 %1906
        %v1908 = vrcp.pop %v1907
        %v1909 = vmul.f32 %v1907, %v1908
        %v1910 = vsub.f32 2.0, %v1909
        %v1911 = vmul.f32 %v1908, %v1910
        %v1912 = vmul.f32 %v1904, %v1911
        %v1913 = vadd.f32 %v1571, %v1912
        %v1914 = vpack.c.bf16 %v1912, %v1912
        %v1915 = vpack.c.bf16 %v1844, %v1844
        %v1917 = vsel %vm300, %v1914, 0
        %v1920 = vsel %vm574, %v1915, 0
        %1922 = vmatprep.subr.bf16.mxu0 0
        %1923 = vmatpush1.bf16.msra.mxu0 0
        %1924 = vmatprep.subr.bf16.mxu0 0
        %1925 = vmatpush1.bf16.msra.mxu0 0
        %1926 = vmatprep.subr.bf16.mxu0 0
        %1927 = vmatpush1.bf16.msra.mxu0 0
        %1928 = vmatprep.subr.bf16.mxu0 0
        %1929 = vmatpush1.bf16.msra.mxu0 0
        %1930 = vmatprep.subr.bf16.mxu0 0
        %1931 = vmatpush1.bf16.msra.mxu0 0
        %1932 = vmatprep.subr.bf16.mxu0 0
        %1933 = vmatpush1.bf16.msra.mxu0 0
        %1934 = vmatprep.subr.bf16.mxu0 0
        %1935 = vmatpush1.bf16.msra.mxu0 0
        %1936 = vmatprep.subr.bf16.mxu0 0
        %1937 = vmatpush1.bf16.msra.mxu0 %v1920
        %1938 = vmatprep.subr.bf16.mxu0 0
        %1939 = vmatpush2.bf16.msra.mxu0 0
        %1940 = vmatprep.subr.bf16.mxu0 0
        %1941 = vmatpush2.bf16.msra.mxu0 0
        %1942 = vmatprep.subr.bf16.mxu0 0
        %1943 = vmatpush2.bf16.msra.mxu0 0
        %1944 = vmatprep.subr.bf16.mxu0 0
        %1945 = vmatpush2.bf16.msra.mxu0 0
        %1946 = vmatprep.subr.bf16.mxu0 0
        %1947 = vmatpush2.bf16.msra.mxu0 0
        %1948 = vmatprep.subr.bf16.mxu0 0
        %1949 = vmatpush2.bf16.msra.mxu0 0
        %1950 = vmatprep.subr.bf16.mxu0 0
        %1951 = vmatpush2.bf16.msra.mxu0 0
        %1952 = vmatprep.subr.bf16.mxu0 0
        %1953 = vmatpush2.bf16.msra.mxu0 0
        %1954 = vmatprep.mubr.bf16.mxu0 0
        %1955 = vmatmul.mubr.bf16.gmra.mxu0 %v1917
        %v1956 = vpop.f32.mrf.mxu0
        %v1957 = vadd.f32 0.0, %v1956
        %v1958 = vpop.f32.mrf.mxu0
        %v1959 = vpop.f32.mrf.mxu0
        %v1960 = vpop.f32.mrf.mxu0
        %1961 = vdwg.mxu0
        %v1962 = vpack.c.bf16 %v1957, %v1957
        %v1964 = vsel %vm300, %v1962, 0
        %v1967 = vsel %vm574, %v1680, 0
        %1969 = vmatprep.subr.bf16.mxu0 0
        %1970 = vmatpush1.bf16.msra.mxu0 0
        %1971 = vmatprep.subr.bf16.mxu0 0
        %1972 = vmatpush1.bf16.msra.mxu0 0
        %1973 = vmatprep.subr.bf16.mxu0 0
        %1974 = vmatpush1.bf16.msra.mxu0 0
        %1975 = vmatprep.subr.bf16.mxu0 0
        %1976 = vmatpush1.bf16.msra.mxu0 0
        %1977 = vmatprep.subr.bf16.mxu0 0
        %1978 = vmatpush1.bf16.msra.mxu0 0
        %1979 = vmatprep.subr.bf16.mxu0 0
        %1980 = vmatpush1.bf16.msra.mxu0 0
        %1981 = vmatprep.subr.bf16.mxu0 0
        %1982 = vmatpush1.bf16.msra.mxu0 0
        %1983 = vmatprep.subr.bf16.mxu0 0
        %1984 = vmatpush1.bf16.msra.mxu0 %v1967
        %1985 = vmatprep.subr.bf16.mxu0 0
        %1986 = vmatpush2.bf16.msra.mxu0 0
        %1987 = vmatprep.subr.bf16.mxu0 0
        %1988 = vmatpush2.bf16.msra.mxu0 0
        %1989 = vmatprep.subr.bf16.mxu0 0
        %1990 = vmatpush2.bf16.msra.mxu0 0
        %1991 = vmatprep.subr.bf16.mxu0 0
        %1992 = vmatpush2.bf16.msra.mxu0 0
        %1993 = vmatprep.subr.bf16.mxu0 0
        %1994 = vmatpush2.bf16.msra.mxu0 0
        %1995 = vmatprep.subr.bf16.mxu0 0
        %1996 = vmatpush2.bf16.msra.mxu0 0
        %1997 = vmatprep.subr.bf16.mxu0 0
        %1998 = vmatpush2.bf16.msra.mxu0 0
        %1999 = vmatprep.subr.bf16.mxu0 0
        %2000 = vmatpush2.bf16.msra.mxu0 0
        %2001 = vmatprep.mubr.bf16.mxu0 0
        %2002 = vmatmul.mubr.bf16.gmra.mxu0 %v1964
        %v2003 = vpop.f32.mrf.mxu0
        %v2004 = vadd.f32 0.0, %v2003
        %v2005 = vpop.f32.mrf.mxu0
        %v2006 = vpop.f32.mrf.mxu0
        %v2007 = vpop.f32.mrf.mxu0
        %2008 = vdwg.mxu0
        %v2009 = vadd.f32 %v1667, %v2004
        %v2010 = vld [vmem:[#allocation2 + $0x1b0] sm:$0xf]
        %v2011 = vld [vmem:[#allocation2 + $0x1b4] sm:$0xf]
        %v2012 = vld [vmem:[#allocation2 + $0x1b8] sm:$0xf]
        %v2013 = vld [vmem:[#allocation2 + $0x1bc] sm:$0xf]
        %v2014 = vld [vmem:[#allocation2 + $0x1c0] sm:$0xf]
        %v2015 = vld [vmem:[#allocation2 + $0x1c4] sm:$0xf]
        %v2016 = vld [vmem:[#allocation2 + $0x1c8] sm:$0xf]
        %v2017 = vld [vmem:[#allocation2 + $0x1cc] sm:$0xf]
        %v2018 = vld [vmem:[#allocation2 + $0x1d0] sm:$0xf]
        %v2019 = vld [vmem:[#allocation2 + $0x1d4] sm:$0xf]
        %v2020 = vld [vmem:[#allocation2 + $0x1d8] sm:$0xf]
        %v2021 = vld [vmem:[#allocation2 + $0x1dc] sm:$0xf]
        %v2022 = vld [vmem:[#allocation2 + $0x1e0] sm:$0xf]
        %v2027 = vunpack.c.l.b16 %v2010
        %v2028 = vunpack.c.l.b16 %v2011
        %v2029 = vunpack.c.l.b16 %v2012
        %v2030 = vunpack.c.l.b16 %v2013
        %v2031 = vpack.c.b16 %v2028, %v2027
        %v2032 = vpack.c.b16 %v2030, %v2029
        %2035 = vrot.lane.b32.xlu0 %v1339, 112
        %v2036 = vpop.permute.xlu0 %2035
        %2038 = vmatprep.subr.bf16.mxu0 0
        %2039 = vmatpush1.bf16.msra.mxu0 0
        %2040 = vmatprep.subr.bf16.mxu0 0
        %2041 = vmatpush1.bf16.msra.mxu0 0
        %2042 = vmatprep.subr.bf16.mxu0 0
        %2043 = vmatpush1.bf16.msra.mxu0 0
        %2044 = vmatprep.subr.bf16.mxu0 0
        %2045 = vmatpush1.bf16.msra.mxu0 0
        %2046 = vmatprep.subr.bf16.mxu0 0
        %2047 = vmatpush1.bf16.msra.mxu0 0
        %2048 = vmatprep.subr.bf16.mxu0 0
        %2049 = vmatpush1.bf16.msra.mxu0 0
        %2050 = vmatprep.subr.bf16.mxu0 0
        %2051 = vmatpush1.bf16.msra.mxu0 %v2032
        %2052 = vmatprep.subr.bf16.mxu0 0
        %2053 = vmatpush1.bf16.msra.mxu0 %v2031
        %2054 = vmatprep.subr.bf16.mxu0 0
        %2055 = vmatpush2.bf16.msra.mxu0 0
        %2056 = vmatprep.subr.bf16.mxu0 0
        %2057 = vmatpush2.bf16.msra.mxu0 0
        %2058 = vmatprep.subr.bf16.mxu0 0
        %2059 = vmatpush2.bf16.msra.mxu0 0
        %2060 = vmatprep.subr.bf16.mxu0 0
        %2061 = vmatpush2.bf16.msra.mxu0 0
        %2062 = vmatprep.subr.bf16.mxu0 0
        %2063 = vmatpush2.bf16.msra.mxu0 0
        %2064 = vmatprep.subr.bf16.mxu0 0
        %2065 = vmatpush2.bf16.msra.mxu0 0
        %2066 = vmatprep.subr.bf16.mxu0 0
        %2067 = vmatpush2.bf16.msra.mxu0 0
        %2068 = vmatprep.subr.bf16.mxu0 0
        %2069 = vmatpush2.bf16.msra.mxu0 0
        %2070 = vmatprep.mubr.bf16.mxu0 0
        %2071 = vmatmul.mubr.bf16.gmra.mxu0 %v1353
        %v2072 = vpop.f32.mrf.mxu0
        %v2073 = vadd.f32 %v2036, %v2072
        %v2074 = vpop.f32.mrf.mxu0
        %v2075 = vpop.f32.mrf.mxu0
        %v2076 = vpop.f32.mrf.mxu0
        %2077 = vdwg.mxu0
        %v2082 = vunpack.c.l.b16 %v2014
        %v2083 = vunpack.c.l.b16 %v2015
        %v2084 = vunpack.c.l.b16 %v2016
        %v2085 = vunpack.c.l.b16 %v2017
        %v2086 = vpack.c.b16 %v2083, %v2082
        %v2087 = vpack.c.b16 %v2085, %v2084
        %2090 = vrot.lane.b32.xlu0 %v1398, 112
        %v2091 = vpop.permute.xlu0 %2090
        %2093 = vmatprep.subr.bf16.mxu0 0
        %2094 = vmatpush1.bf16.msra.mxu0 0
        %2095 = vmatprep.subr.bf16.mxu0 0
        %2096 = vmatpush1.bf16.msra.mxu0 0
        %2097 = vmatprep.subr.bf16.mxu0 0
        %2098 = vmatpush1.bf16.msra.mxu0 0
        %2099 = vmatprep.subr.bf16.mxu0 0
        %2100 = vmatpush1.bf16.msra.mxu0 0
        %2101 = vmatprep.subr.bf16.mxu0 0
        %2102 = vmatpush1.bf16.msra.mxu0 0
        %2103 = vmatprep.subr.bf16.mxu0 0
        %2104 = vmatpush1.bf16.msra.mxu0 0
        %2105 = vmatprep.subr.bf16.mxu0 0
        %2106 = vmatpush1.bf16.msra.mxu0 %v2087
        %2107 = vmatprep.subr.bf16.mxu0 0
        %2108 = vmatpush1.bf16.msra.mxu0 %v2086
        %2109 = vmatprep.subr.bf16.mxu0 0
        %2110 = vmatpush2.bf16.msra.mxu0 0
        %2111 = vmatprep.subr.bf16.mxu0 0
        %2112 = vmatpush2.bf16.msra.mxu0 0
        %2113 = vmatprep.subr.bf16.mxu0 0
        %2114 = vmatpush2.bf16.msra.mxu0 0
        %2115 = vmatprep.subr.bf16.mxu0 0
        %2116 = vmatpush2.bf16.msra.mxu0 0
        %2117 = vmatprep.subr.bf16.mxu0 0
        %2118 = vmatpush2.bf16.msra.mxu0 0
        %2119 = vmatprep.subr.bf16.mxu0 0
        %2120 = vmatpush2.bf16.msra.mxu0 0
        %2121 = vmatprep.subr.bf16.mxu0 0
        %2122 = vmatpush2.bf16.msra.mxu0 0
        %2123 = vmatprep.subr.bf16.mxu0 0
        %2124 = vmatpush2.bf16.msra.mxu0 0
        %2125 = vmatprep.mubr.bf16.mxu0 0
        %2126 = vmatmul.mubr.bf16.gmra.mxu0 %v1353
        %v2127 = vpop.f32.mrf.mxu0
        %v2128 = vadd.f32 %v2091, %v2127
        %v2129 = vpop.f32.mrf.mxu0
        %v2130 = vpop.f32.mrf.mxu0
        %v2131 = vpop.f32.mrf.mxu0
        %2132 = vdwg.mxu0
        %v2137 = vunpack.c.l.b16 %v2018
        %v2138 = vunpack.c.l.b16 %v2019
        %v2139 = vunpack.c.l.b16 %v2020
        %v2140 = vunpack.c.l.b16 %v2021
        %v2141 = vpack.c.b16 %v2138, %v2137
        %v2142 = vpack.c.b16 %v2140, %v2139
        %2145 = vrot.lane.b32.xlu0 %v1454, 112
        %v2146 = vpop.permute.xlu0 %2145
        %2148 = vmatprep.subr.bf16.mxu0 0
        %2149 = vmatpush1.bf16.msra.mxu0 0
        %2150 = vmatprep.subr.bf16.mxu0 0
        %2151 = vmatpush1.bf16.msra.mxu0 0
        %2152 = vmatprep.subr.bf16.mxu0 0
        %2153 = vmatpush1.bf16.msra.mxu0 0
        %2154 = vmatprep.subr.bf16.mxu0 0
        %2155 = vmatpush1.bf16.msra.mxu0 0
        %2156 = vmatprep.subr.bf16.mxu0 0
        %2157 = vmatpush1.bf16.msra.mxu0 0
        %2158 = vmatprep.subr.bf16.mxu0 0
        %2159 = vmatpush1.bf16.msra.mxu0 0
        %2160 = vmatprep.subr.bf16.mxu0 0
        %2161 = vmatpush1.bf16.msra.mxu0 %v2142
        %2162 = vmatprep.subr.bf16.mxu0 0
        %2163 = vmatpush1.bf16.msra.mxu0 %v2141
        %2164 = vmatprep.subr.bf16.mxu0 0
        %2165 = vmatpush2.bf16.msra.mxu0 0
        %2166 = vmatprep.subr.bf16.mxu0 0
        %2167 = vmatpush2.bf16.msra.mxu0 0
        %2168 = vmatprep.subr.bf16.mxu0 0
        %2169 = vmatpush2.bf16.msra.mxu0 0
        %2170 = vmatprep.subr.bf16.mxu0 0
        %2171 = vmatpush2.bf16.msra.mxu0 0
        %2172 = vmatprep.subr.bf16.mxu0 0
        %2173 = vmatpush2.bf16.msra.mxu0 0
        %2174 = vmatprep.subr.bf16.mxu0 0
        %2175 = vmatpush2.bf16.msra.mxu0 0
        %2176 = vmatprep.subr.bf16.mxu0 0
        %2177 = vmatpush2.bf16.msra.mxu0 0
        %2178 = vmatprep.subr.bf16.mxu0 0
        %2179 = vmatpush2.bf16.msra.mxu0 0
        %2180 = vmatprep.mubr.bf16.mxu0 0
        %2181 = vmatmul.mubr.bf16.gmra.mxu0 %v1353
        %v2182 = vpop.f32.mrf.mxu0
        %v2183 = vadd.f32 %v2146, %v2182
        %v2184 = vpop.f32.mrf.mxu0
        %v2185 = vpop.f32.mrf.mxu0
        %v2186 = vpop.f32.mrf.mxu0
        %2187 = vdwg.mxu0
        %v2188 = vpack.c.bf16 %v2073, %v2073
        %v2189 = vpack.c.bf16 %v2128, %v2128
        %v2191 = vsel %vm300, %v2188, 0
        %v2194 = vsel %vm300, %v2189, 0
        %2196 = vmatprep.subr.bf16.mxu0 0
        %2197 = vmatpush1.bf16.xpose.msra.mxu0 0
        %2198 = vmatprep.subr.bf16.mxu0 0
        %2199 = vmatpush1.bf16.xpose.msra.mxu0 0
        %2200 = vmatprep.subr.bf16.mxu0 0
        %2201 = vmatpush1.bf16.xpose.msra.mxu0 0
        %2202 = vmatprep.subr.bf16.mxu0 0
        %2203 = vmatpush1.bf16.xpose.msra.mxu0 0
        %2204 = vmatprep.subr.bf16.mxu0 0
        %2205 = vmatpush1.bf16.xpose.msra.mxu0 0
        %2206 = vmatprep.subr.bf16.mxu0 0
        %2207 = vmatpush1.bf16.xpose.msra.mxu0 0
        %2208 = vmatprep.subr.bf16.mxu0 0
        %2209 = vmatpush1.bf16.xpose.msra.mxu0 0
        %2210 = vmatprep.subr.bf16.mxu0 0
        %2211 = vmatpush1.bf16.xpose.msra.mxu0 %v2194
        %2212 = vmatprep.subr.bf16.mxu0 0
        %2213 = vmatpush2.bf16.xpose.msra.mxu0 0
        %2214 = vmatprep.subr.bf16.mxu0 0
        %2215 = vmatpush2.bf16.xpose.msra.mxu0 0
        %2216 = vmatprep.subr.bf16.mxu0 0
        %2217 = vmatpush2.bf16.xpose.msra.mxu0 0
        %2218 = vmatprep.subr.bf16.mxu0 0
        %2219 = vmatpush2.bf16.xpose.msra.mxu0 0
        %2220 = vmatprep.subr.bf16.mxu0 0
        %2221 = vmatpush2.bf16.xpose.msra.mxu0 0
        %2222 = vmatprep.subr.bf16.mxu0 0
        %2223 = vmatpush2.bf16.xpose.msra.mxu0 0
        %2224 = vmatprep.subr.bf16.mxu0 0
        %2225 = vmatpush2.bf16.xpose.msra.mxu0 0
        %2226 = vmatprep.subr.bf16.mxu0 0
        %2227 = vmatpush2.bf16.xpose.msra.mxu0 0
        %2228 = vmatprep.mubr.bf16.mxu0 0
        %2229 = vmatmul.mubr.bf16.gmra.mxu0 %v2191
        %v2230 = vpop.f32.mrf.mxu0
        %v2231 = vadd.f32 0.0, %v2230
        %v2232 = vpop.f32.mrf.mxu0
        %v2233 = vpop.f32.mrf.mxu0
        %v2234 = vpop.f32.mrf.mxu0
        %2235 = vdwg.mxu0
        %v2236 = vmul.f32 %v2231, 0.35355338
        %v2237 = vsel %vm1317, %v2236, -1e+30
        %v2238 = vsel %vm300, %v2237, -inf
        %2239 = vmax.xlane.f32.xlu0 %v2238
        %v2240 = vpop.xlane.xlu0 %2239
        %v2241 = vsub.f32 %v2237, %v2240
        %v2242 = vmul.f32 %v2241, 1.442695
        %v2243 = vpow.pop %v2242
        %v2244 = vsel %vm300, %v2243, 0.0
        %2245 = vadd.xlane.f32.xlu0 %v2244
        %v2246 = vpop.xlane.xlu0 %2245
        %v2247 = vrcp.pop %v2246
        %v2248 = vmul.f32 %v2246, %v2247
        %v2249 = vsub.f32 2.0, %v2248
        %v2250 = vmul.f32 %v2247, %v2249
        %v2251 = vmul.f32 %v2243, %v2250
        %v2252 = vadd.f32 %v1913, %v2251
        %v2253 = vpack.c.bf16 %v2251, %v2251
        %v2254 = vpack.c.bf16 %v2183, %v2183
        %v2256 = vsel %vm300, %v2253, 0
        %v2259 = vsel %vm574, %v2254, 0
        %2261 = vmatprep.subr.bf16.mxu0 0
        %2262 = vmatpush1.bf16.msra.mxu0 0
        %2263 = vmatprep.subr.bf16.mxu0 0
        %2264 = vmatpush1.bf16.msra.mxu0 0
        %2265 = vmatprep.subr.bf16.mxu0 0
        %2266 = vmatpush1.bf16.msra.mxu0 0
        %2267 = vmatprep.subr.bf16.mxu0 0
        %2268 = vmatpush1.bf16.msra.mxu0 0
        %2269 = vmatprep.subr.bf16.mxu0 0
        %2270 = vmatpush1.bf16.msra.mxu0 0
        %2271 = vmatprep.subr.bf16.mxu0 0
        %2272 = vmatpush1.bf16.msra.mxu0 0
        %2273 = vmatprep.subr.bf16.mxu0 0
        %2274 = vmatpush1.bf16.msra.mxu0 0
        %2275 = vmatprep.subr.bf16.mxu0 0
        %2276 = vmatpush1.bf16.msra.mxu0 %v2259
        %2277 = vmatprep.subr.bf16.mxu0 0
        %2278 = vmatpush2.bf16.msra.mxu0 0
        %2279 = vmatprep.subr.bf16.mxu0 0
        %2280 = vmatpush2.bf16.msra.mxu0 0
        %2281 = vmatprep.subr.bf16.mxu0 0
        %2282 = vmatpush2.bf16.msra.mxu0 0
        %2283 = vmatprep.subr.bf16.mxu0 0
        %2284 = vmatpush2.bf16.msra.mxu0 0
        %2285 = vmatprep.subr.bf16.mxu0 0
        %2286 = vmatpush2.bf16.msra.mxu0 0
        %2287 = vmatprep.subr.bf16.mxu0 0
        %2288 = vmatpush2.bf16.msra.mxu0 0
        %2289 = vmatprep.subr.bf16.mxu0 0
        %2290 = vmatpush2.bf16.msra.mxu0 0
        %2291 = vmatprep.subr.bf16.mxu0 0
        %2292 = vmatpush2.bf16.msra.mxu0 0
        %2293 = vmatprep.mubr.bf16.mxu0 0
        %2294 = vmatmul.mubr.bf16.gmra.mxu0 %v2256
        %v2295 = vpop.f32.mrf.mxu0
        %v2296 = vadd.f32 0.0, %v2295
        %v2297 = vpop.f32.mrf.mxu0
        %v2298 = vpop.f32.mrf.mxu0
        %v2299 = vpop.f32.mrf.mxu0
        %2300 = vdwg.mxu0
        %v2301 = vpack.c.bf16 %v2296, %v2296
        %v2303 = vsel %vm300, %v2301, 0
        %v2306 = vsel %vm574, %v2022, 0
        %2308 = vmatprep.subr.bf16.mxu0 0
        %2309 = vmatpush1.bf16.msra.mxu0 0
        %2310 = vmatprep.subr.bf16.mxu0 0
        %2311 = vmatpush1.bf16.msra.mxu0 0
        %2312 = vmatprep.subr.bf16.mxu0 0
        %2313 = vmatpush1.bf16.msra.mxu0 0
        %2314 = vmatprep.subr.bf16.mxu0 0
        %2315 = vmatpush1.bf16.msra.mxu0 0
        %2316 = vmatprep.subr.bf16.mxu0 0
        %2317 = vmatpush1.bf16.msra.mxu0 0
        %2318 = vmatprep.subr.bf16.mxu0 0
        %2319 = vmatpush1.bf16.msra.mxu0 0
        %2320 = vmatprep.subr.bf16.mxu0 0
        %2321 = vmatpush1.bf16.msra.mxu0 0
        %2322 = vmatprep.subr.bf16.mxu0 0
        %2323 = vmatpush1.bf16.msra.mxu0 %v2306
        %2324 = vmatprep.subr.bf16.mxu0 0
        %2325 = vmatpush2.bf16.msra.mxu0 0
        %2326 = vmatprep.subr.bf16.mxu0 0
        %2327 = vmatpush2.bf16.msra.mxu0 0
        %2328 = vmatprep.subr.bf16.mxu0 0
        %2329 = vmatpush2.bf16.msra.mxu0 0
        %2330 = vmatprep.subr.bf16.mxu0 0
        %2331 = vmatpush2.bf16.msra.mxu0 0
        %2332 = vmatprep.subr.bf16.mxu0 0
        %2333 = vmatpush2.bf16.msra.mxu0 0
        %2334 = vmatprep.subr.bf16.mxu0 0
        %2335 = vmatpush2.bf16.msra.mxu0 0
        %2336 = vmatprep.subr.bf16.mxu0 0
        %2337 = vmatpush2.bf16.msra.mxu0 0
        %2338 = vmatprep.subr.bf16.mxu0 0
        %2339 = vmatpush2.bf16.msra.mxu0 0
        %2340 = vmatprep.mubr.bf16.mxu0 0
        %2341 = vmatmul.mubr.bf16.gmra.mxu0 %v2303
        %v2342 = vpop.f32.mrf.mxu0
        %v2343 = vadd.f32 0.0, %v2342
        %v2344 = vpop.f32.mrf.mxu0
        %v2345 = vpop.f32.mrf.mxu0
        %v2346 = vpop.f32.mrf.mxu0
        %2347 = vdwg.mxu0
        %v2348 = vadd.f32 %v2009, %v2343
        %v2349 = vld [vmem:[#allocation2 + $0x1e8] sm:$0xf]
        %v2350 = vld [vmem:[#allocation2 + $0x1ec] sm:$0xf]
        %v2351 = vld [vmem:[#allocation2 + $0x1f0] sm:$0xf]
        %v2352 = vld [vmem:[#allocation2 + $0x1f4] sm:$0xf]
        %v2353 = vld [vmem:[#allocation2 + $0x1f8] sm:$0xf]
        %v2354 = vld [vmem:[#allocation2 + $0x1fc] sm:$0xf]
        %v2355 = vld [vmem:[#allocation2 + $0x200] sm:$0xf]
        %v2356 = vld [vmem:[#allocation2 + $0x204] sm:$0xf]
        %v2357 = vld [vmem:[#allocation2 + $0x208] sm:$0xf]
        %v2358 = vld [vmem:[#allocation2 + $0x20c] sm:$0xf]
        %v2359 = vld [vmem:[#allocation2 + $0x210] sm:$0xf]
        %v2360 = vld [vmem:[#allocation2 + $0x214] sm:$0xf]
        %v2361 = vld [vmem:[#allocation2 + $0x218] sm:$0xf]
        %v2366 = vunpack.c.l.b16 %v2349
        %v2367 = vunpack.c.l.b16 %v2350
        %v2368 = vunpack.c.l.b16 %v2351
        %v2369 = vunpack.c.l.b16 %v2352
        %v2370 = vpack.c.b16 %v2367, %v2366
        %v2371 = vpack.c.b16 %v2369, %v2368
        %2374 = vrot.lane.b32.xlu0 %v1339, 104
        %v2375 = vpop.permute.xlu0 %2374
        %2377 = vmatprep.subr.bf16.mxu0 0
        %2378 = vmatpush1.bf16.msra.mxu0 0
        %2379 = vmatprep.subr.bf16.mxu0 0
        %2380 = vmatpush1.bf16.msra.mxu0 0
        %2381 = vmatprep.subr.bf16.mxu0 0
        %2382 = vmatpush1.bf16.msra.mxu0 0
        %2383 = vmatprep.subr.bf16.mxu0 0
        %2384 = vmatpush1.bf16.msra.mxu0 0
        %2385 = vmatprep.subr.bf16.mxu0 0
        %2386 = vmatpush1.bf16.msra.mxu0 0
        %2387 = vmatprep.subr.bf16.mxu0 0
        %2388 = vmatpush1.bf16.msra.mxu0 0
        %2389 = vmatprep.subr.bf16.mxu0 0
        %2390 = vmatpush1.bf16.msra.mxu0 %v2371
        %2391 = vmatprep.subr.bf16.mxu0 0
        %2392 = vmatpush1.bf16.msra.mxu0 %v2370
        %2393 = vmatprep.subr.bf16.mxu0 0
        %2394 = vmatpush2.bf16.msra.mxu0 0
        %2395 = vmatprep.subr.bf16.mxu0 0
        %2396 = vmatpush2.bf16.msra.mxu0 0
        %2397 = vmatprep.subr.bf16.mxu0 0
        %2398 = vmatpush2.bf16.msra.mxu0 0
        %2399 = vmatprep.subr.bf16.mxu0 0
        %2400 = vmatpush2.bf16.msra.mxu0 0
        %2401 = vmatprep.subr.bf16.mxu0 0
        %2402 = vmatpush2.bf16.msra.mxu0 0
        %2403 = vmatprep.subr.bf16.mxu0 0
        %2404 = vmatpush2.bf16.msra.mxu0 0
        %2405 = vmatprep.subr.bf16.mxu0 0
        %2406 = vmatpush2.bf16.msra.mxu0 0
        %2407 = vmatprep.subr.bf16.mxu0 0
        %2408 = vmatpush2.bf16.msra.mxu0 0
        %2409 = vmatprep.mubr.bf16.mxu0 0
        %2410 = vmatmul.mubr.bf16.gmra.mxu0 %v1353
        %v2411 = vpop.f32.mrf.mxu0
        %v2412 = vadd.f32 %v2375, %v2411
        %v2413 = vpop.f32.mrf.mxu0
        %v2414 = vpop.f32.mrf.mxu0
        %v2415 = vpop.f32.mrf.mxu0
        %2416 = vdwg.mxu0
        %v2421 = vunpack.c.l.b16 %v2353
        %v2422 = vunpack.c.l.b16 %v2354
        %v2423 = vunpack.c.l.b16 %v2355
        %v2424 = vunpack.c.l.b16 %v2356
        %v2425 = vpack.c.b16 %v2422, %v2421
        %v2426 = vpack.c.b16 %v2424, %v2423
        %2429 = vrot.lane.b32.xlu0 %v1398, 104
        %v2430 = vpop.permute.xlu0 %2429
        %2432 = vmatprep.subr.bf16.mxu0 0
        %2433 = vmatpush1.bf16.msra.mxu0 0
        %2434 = vmatprep.subr.bf16.mxu0 0
        %2435 = vmatpush1.bf16.msra.mxu0 0
        %2436 = vmatprep.subr.bf16.mxu0 0
        %2437 = vmatpush1.bf16.msra.mxu0 0
        %2438 = vmatprep.subr.bf16.mxu0 0
        %2439 = vmatpush1.bf16.msra.mxu0 0
        %2440 = vmatprep.subr.bf16.mxu0 0
        %2441 = vmatpush1.bf16.msra.mxu0 0
        %2442 = vmatprep.subr.bf16.mxu0 0
        %2443 = vmatpush1.bf16.msra.mxu0 0
        %2444 = vmatprep.subr.bf16.mxu0 0
        %2445 = vmatpush1.bf16.msra.mxu0 %v2426
        %2446 = vmatprep.subr.bf16.mxu0 0
        %2447 = vmatpush1.bf16.msra.mxu0 %v2425
        %2448 = vmatprep.subr.bf16.mxu0 0
        %2449 = vmatpush2.bf16.msra.mxu0 0
        %2450 = vmatprep.subr.bf16.mxu0 0
        %2451 = vmatpush2.bf16.msra.mxu0 0
        %2452 = vmatprep.subr.bf16.mxu0 0
        %2453 = vmatpush2.bf16.msra.mxu0 0
        %2454 = vmatprep.subr.bf16.mxu0 0
        %2455 = vmatpush2.bf16.msra.mxu0 0
        %2456 = vmatprep.subr.bf16.mxu0 0
        %2457 = vmatpush2.bf16.msra.mxu0 0
        %2458 = vmatprep.subr.bf16.mxu0 0
        %2459 = vmatpush2.bf16.msra.mxu0 0
        %2460 = vmatprep.subr.bf16.mxu0 0
        %2461 = vmatpush2.bf16.msra.mxu0 0
        %2462 = vmatprep.subr.bf16.mxu0 0
        %2463 = vmatpush2.bf16.msra.mxu0 0
        %2464 = vmatprep.mubr.bf16.mxu0 0
        %2465 = vmatmul.mubr.bf16.gmra.mxu0 %v1353
        %v2466 = vpop.f32.mrf.mxu0
        %v2467 = vadd.f32 %v2430, %v2466
        %v2468 = vpop.f32.mrf.mxu0
        %v2469 = vpop.f32.mrf.mxu0
        %v2470 = vpop.f32.mrf.mxu0
        %2471 = vdwg.mxu0
        %v2476 = vunpack.c.l.b16 %v2357
        %v2477 = vunpack.c.l.b16 %v2358
        %v2478 = vunpack.c.l.b16 %v2359
        %v2479 = vunpack.c.l.b16 %v2360
        %v2480 = vpack.c.b16 %v2477, %v2476
        %v2481 = vpack.c.b16 %v2479, %v2478
        %2484 = vrot.lane.b32.xlu0 %v1454, 104
        %v2485 = vpop.permute.xlu0 %2484
        %2487 = vmatprep.subr.bf16.mxu0 0
        %2488 = vmatpush1.bf16.msra.mxu0 0
        %2489 = vmatprep.subr.bf16.mxu0 0
        %2490 = vmatpush1.bf16.msra.mxu0 0
        %2491 = vmatprep.subr.bf16.mxu0 0
        %2492 = vmatpush1.bf16.msra.mxu0 0
        %2493 = vmatprep.subr.bf16.mxu0 0
        %2494 = vmatpush1.bf16.msra.mxu0 0
        %2495 = vmatprep.subr.bf16.mxu0 0
        %2496 = vmatpush1.bf16.msra.mxu0 0
        %2497 = vmatprep.subr.bf16.mxu0 0
        %2498 = vmatpush1.bf16.msra.mxu0 0
        %2499 = vmatprep.subr.bf16.mxu0 0
        %2500 = vmatpush1.bf16.msra.mxu0 %v2481
        %2501 = vmatprep.subr.bf16.mxu0 0
        %2502 = vmatpush1.bf16.msra.mxu0 %v2480
        %2503 = vmatprep.subr.bf16.mxu0 0
        %2504 = vmatpush2.bf16.msra.mxu0 0
        %2505 = vmatprep.subr.bf16.mxu0 0
        %2506 = vmatpush2.bf16.msra.mxu0 0
        %2507 = vmatprep.subr.bf16.mxu0 0
        %2508 = vmatpush2.bf16.msra.mxu0 0
        %2509 = vmatprep.subr.bf16.mxu0 0
        %2510 = vmatpush2.bf16.msra.mxu0 0
        %2511 = vmatprep.subr.bf16.mxu0 0
        %2512 = vmatpush2.bf16.msra.mxu0 0
        %2513 = vmatprep.subr.bf16.mxu0 0
        %2514 = vmatpush2.bf16.msra.mxu0 0
        %2515 = vmatprep.subr.bf16.mxu0 0
        %2516 = vmatpush2.bf16.msra.mxu0 0
        %2517 = vmatprep.subr.bf16.mxu0 0
        %2518 = vmatpush2.bf16.msra.mxu0 0
        %2519 = vmatprep.mubr.bf16.mxu0 0
        %2520 = vmatmul.mubr.bf16.gmra.mxu0 %v1353
        %v2521 = vpop.f32.mrf.mxu0
        %v2522 = vadd.f32 %v2485, %v2521
        %v2523 = vpop.f32.mrf.mxu0
        %v2524 = vpop.f32.mrf.mxu0
        %v2525 = vpop.f32.mrf.mxu0
        %2526 = vdwg.mxu0
        %v2527 = vpack.c.bf16 %v2412, %v2412
        %v2528 = vpack.c.bf16 %v2467, %v2467
        %v2530 = vsel %vm300, %v2527, 0
        %v2533 = vsel %vm300, %v2528, 0
        %2535 = vmatprep.subr.bf16.mxu0 0
        %2536 = vmatpush1.bf16.xpose.msra.mxu0 0
        %2537 = vmatprep.subr.bf16.mxu0 0
        %2538 = vmatpush1.bf16.xpose.msra.mxu0 0
        %2539 = vmatprep.subr.bf16.mxu0 0
        %2540 = vmatpush1.bf16.xpose.msra.mxu0 0
        %2541 = vmatprep.subr.bf16.mxu0 0
        %2542 = vmatpush1.bf16.xpose.msra.mxu0 0
        %2543 = vmatprep.subr.bf16.mxu0 0
        %2544 = vmatpush1.bf16.xpose.msra.mxu0 0
        %2545 = vmatprep.subr.bf16.mxu0 0
        %2546 = vmatpush1.bf16.xpose.msra.mxu0 0
        %2547 = vmatprep.subr.bf16.mxu0 0
        %2548 = vmatpush1.bf16.xpose.msra.mxu0 0
        %2549 = vmatprep.subr.bf16.mxu0 0
        %2550 = vmatpush1.bf16.xpose.msra.mxu0 %v2533
        %2551 = vmatprep.subr.bf16.mxu0 0
        %2552 = vmatpush2.bf16.xpose.msra.mxu0 0
        %2553 = vmatprep.subr.bf16.mxu0 0
        %2554 = vmatpush2.bf16.xpose.msra.mxu0 0
        %2555 = vmatprep.subr.bf16.mxu0 0
        %2556 = vmatpush2.bf16.xpose.msra.mxu0 0
        %2557 = vmatprep.subr.bf16.mxu0 0
        %2558 = vmatpush2.bf16.xpose.msra.mxu0 0
        %2559 = vmatprep.subr.bf16.mxu0 0
        %2560 = vmatpush2.bf16.xpose.msra.mxu0 0
        %2561 = vmatprep.subr.bf16.mxu0 0
        %2562 = vmatpush2.bf16.xpose.msra.mxu0 0
        %2563 = vmatprep.subr.bf16.mxu0 0
        %2564 = vmatpush2.bf16.xpose.msra.mxu0 0
        %2565 = vmatprep.subr.bf16.mxu0 0
        %2566 = vmatpush2.bf16.xpose.msra.mxu0 0
        %2567 = vmatprep.mubr.bf16.mxu0 0
        %2568 = vmatmul.mubr.bf16.gmra.mxu0 %v2530
        %v2569 = vpop.f32.mrf.mxu0
        %v2570 = vadd.f32 0.0, %v2569
        %v2571 = vpop.f32.mrf.mxu0
        %v2572 = vpop.f32.mrf.mxu0
        %v2573 = vpop.f32.mrf.mxu0
        %2574 = vdwg.mxu0
        %v2575 = vmul.f32 %v2570, 0.35355338
        %v2576 = vsel %vm1317, %v2575, -1e+30
        %v2577 = vsel %vm300, %v2576, -inf
        %2578 = vmax.xlane.f32.xlu0 %v2577
        %v2579 = vpop.xlane.xlu0 %2578
        %v2580 = vsub.f32 %v2576, %v2579
        %v2581 = vmul.f32 %v2580, 1.442695
        %v2582 = vpow.pop %v2581
        %v2583 = vsel %vm300, %v2582, 0.0
        %2584 = vadd.xlane.f32.xlu0 %v2583
        %v2585 = vpop.xlane.xlu0 %2584
        %v2586 = vrcp.pop %v2585
        %v2587 = vmul.f32 %v2585, %v2586
        %v2588 = vsub.f32 2.0, %v2587
        %v2589 = vmul.f32 %v2586, %v2588
        %v2590 = vmul.f32 %v2582, %v2589
        %v2591 = vadd.f32 %v2252, %v2590
        %v2592 = vpack.c.bf16 %v2590, %v2590
        %v2593 = vpack.c.bf16 %v2522, %v2522
        %v2595 = vsel %vm300, %v2592, 0
        %v2598 = vsel %vm574, %v2593, 0
        %2600 = vmatprep.subr.bf16.mxu0 0
        %2601 = vmatpush1.bf16.msra.mxu0 0
        %2602 = vmatprep.subr.bf16.mxu0 0
        %2603 = vmatpush1.bf16.msra.mxu0 0
        %2604 = vmatprep.subr.bf16.mxu0 0
        %2605 = vmatpush1.bf16.msra.mxu0 0
        %2606 = vmatprep.subr.bf16.mxu0 0
        %2607 = vmatpush1.bf16.msra.mxu0 0
        %2608 = vmatprep.subr.bf16.mxu0 0
        %2609 = vmatpush1.bf16.msra.mxu0 0
        %2610 = vmatprep.subr.bf16.mxu0 0
        %2611 = vmatpush1.bf16.msra.mxu0 0
        %2612 = vmatprep.subr.bf16.mxu0 0
        %2613 = vmatpush1.bf16.msra.mxu0 0
        %2614 = vmatprep.subr.bf16.mxu0 0
        %2615 = vmatpush1.bf16.msra.mxu0 %v2598
        %2616 = vmatprep.subr.bf16.mxu0 0
        %2617 = vmatpush2.bf16.msra.mxu0 0
        %2618 = vmatprep.subr.bf16.mxu0 0
        %2619 = vmatpush2.bf16.msra.mxu0 0
        %2620 = vmatprep.subr.bf16.mxu0 0
        %2621 = vmatpush2.bf16.msra.mxu0 0
        %2622 = vmatprep.subr.bf16.mxu0 0
        %2623 = vmatpush2.bf16.msra.mxu0 0
        %2624 = vmatprep.subr.bf16.mxu0 0
        %2625 = vmatpush2.bf16.msra.mxu0 0
        %2626 = vmatprep.subr.bf16.mxu0 0
        %2627 = vmatpush2.bf16.msra.mxu0 0
        %2628 = vmatprep.subr.bf16.mxu0 0
        %2629 = vmatpush2.bf16.msra.mxu0 0
        %2630 = vmatprep.subr.bf16.mxu0 0
        %2631 = vmatpush2.bf16.msra.mxu0 0
        %2632 = vmatprep.mubr.bf16.mxu0 0
        %2633 = vmatmul.mubr.bf16.gmra.mxu0 %v2595
        %v2634 = vpop.f32.mrf.mxu0
        %v2635 = vadd.f32 0.0, %v2634
        %v2636 = vpop.f32.mrf.mxu0
        %v2637 = vpop.f32.mrf.mxu0
        %v2638 = vpop.f32.mrf.mxu0
        %2639 = vdwg.mxu0
        %v2640 = vpack.c.bf16 %v2635, %v2635
        %v2642 = vsel %vm300, %v2640, 0
        %v2645 = vsel %vm574, %v2361, 0
        %2647 = vmatprep.subr.bf16.mxu0 0
        %2648 = vmatpush1.bf16.msra.mxu0 0
        %2649 = vmatprep.subr.bf16.mxu0 0
        %2650 = vmatpush1.bf16.msra.mxu0 0
        %2651 = vmatprep.subr.bf16.mxu0 0
        %2652 = vmatpush1.bf16.msra.mxu0 0
        %2653 = vmatprep.subr.bf16.mxu0 0
        %2654 = vmatpush1.bf16.msra.mxu0 0
        %2655 = vmatprep.subr.bf16.mxu0 0
        %2656 = vmatpush1.bf16.msra.mxu0 0
        %2657 = vmatprep.subr.bf16.mxu0 0
        %2658 = vmatpush1.bf16.msra.mxu0 0
        %2659 = vmatprep.subr.bf16.mxu0 0
        %2660 = vmatpush1.bf16.msra.mxu0 0
        %2661 = vmatprep.subr.bf16.mxu0 0
        %2662 = vmatpush1.bf16.msra.mxu0 %v2645
        %2663 = vmatprep.subr.bf16.mxu0 0
        %2664 = vmatpush2.bf16.msra.mxu0 0
        %2665 = vmatprep.subr.bf16.mxu0 0
        %2666 = vmatpush2.bf16.msra.mxu0 0
        %2667 = vmatprep.subr.bf16.mxu0 0
        %2668 = vmatpush2.bf16.msra.mxu0 0
        %2669 = vmatprep.subr.bf16.mxu0 0
        %2670 = vmatpush2.bf16.msra.mxu0 0
        %2671 = vmatprep.subr.bf16.mxu0 0
        %2672 = vmatpush2.bf16.msra.mxu0 0
        %2673 = vmatprep.subr.bf16.mxu0 0
        %2674 = vmatpush2.bf16.msra.mxu0 0
        %2675 = vmatprep.subr.bf16.mxu0 0
        %2676 = vmatpush2.bf16.msra.mxu0 0
        %2677 = vmatprep.subr.bf16.mxu0 0
        %2678 = vmatpush2.bf16.msra.mxu0 0
        %2679 = vmatprep.mubr.bf16.mxu0 0
        %2680 = vmatmul.mubr.bf16.gmra.mxu0 %v2642
        %v2681 = vpop.f32.mrf.mxu0
        %v2682 = vadd.f32 0.0, %v2681
        %v2683 = vpop.f32.mrf.mxu0
        %v2684 = vpop.f32.mrf.mxu0
        %v2685 = vpop.f32.mrf.mxu0
        %2686 = vdwg.mxu0
        %v2687 = vadd.f32 %v2348, %v2682
        %v2688 = vmul.f32 %v2591, 0.25
        %v2689 = vadd.f32 %v1307, %v2687
        %v2690 = vld [vmem:[#allocation4 + $0x70] sm:$0x1]
        %v2691 = vld [vmem:[#allocation4 + $0x78] sm:$0x1]
        %v2692 = vld [vmem:[#allocation4 + $0x80] sm:$0x1]
        %v2693 = vld [vmem:[#allocation4 + $0x88] sm:$0x1]
        %v2694 = vpack.c.bf16 %v2689, %v2689
        %v2695 = vpack.c.bf16 %v820, %v819
        %v2696 = vlaneseq
        %v2697 = vshrl.u32 %v2696, 7
        %v2698 = vsub.s32 0, %v2697
        %v2699 = vrot.slane %v2693, %v2698
        %v2700 = vadd.f32 %v2699, 0.0
        %v2701 = vld [vmem:[#allocation2 + $0x220] sm:$0xf]
        %v2702 = vld [vmem:[#allocation2 + $0x224] sm:$0xf]
        %v2703 = vld [vmem:[#allocation2 + $0x228] sm:$0xf]
        %v2704 = vld [vmem:[#allocation2 + $0x22c] sm:$0xf]
        %v2705 = vld [vmem:[#allocation2 + $0x230] sm:$0xf]
        %v2706 = vld [vmem:[#allocation2 + $0x234] sm:$0xf]
        %v2707 = vld [vmem:[#allocation2 + $0x238] sm:$0xf]
        %v2708 = vld [vmem:[#allocation2 + $0x23c] sm:$0xf]
        %v2709 = vld [vmem:[#allocation2 + $0x240] sm:$0xf]
        %v2710 = vld [vmem:[#allocation2 + $0x244] sm:$0xf]
        %v2711 = vld [vmem:[#allocation2 + $0x248] sm:$0xf]
        %v2712 = vld [vmem:[#allocation2 + $0x24c] sm:$0xf]
        %v2713 = vld [vmem:[#allocation2 + $0x250] sm:$0xf]
        %v2714 = vlaneseq
        %v2715 = vshrl.u32 %v2714, 7
        %v2716 = vsub.s32 0, %v2715
        %v2717 = vrot.slane %v2690, %v2716
        %v2722 = vunpack.c.l.b16 %v2701
        %v2723 = vunpack.c.l.b16 %v2702
        %v2724 = vunpack.c.l.b16 %v2703
        %v2725 = vunpack.c.l.b16 %v2704
        %v2726 = vpack.c.b16 %v2723, %v2722
        %v2727 = vpack.c.b16 %v2725, %v2724
        %v2731 = vsel %vm394, %v2694, 0
        %2733 = vmatprep.subr.bf16.mxu0 0
        %2734 = vmatpush1.bf16.msra.mxu0 0
        %2735 = vmatprep.subr.bf16.mxu0 0
        %2736 = vmatpush1.bf16.msra.mxu0 0
        %2737 = vmatprep.subr.bf16.mxu0 0
        %2738 = vmatpush1.bf16.msra.mxu0 0
        %2739 = vmatprep.subr.bf16.mxu0 0
        %2740 = vmatpush1.bf16.msra.mxu0 0
        %2741 = vmatprep.subr.bf16.mxu0 0
        %2742 = vmatpush1.bf16.msra.mxu0 0
        %2743 = vmatprep.subr.bf16.mxu0 0
        %2744 = vmatpush1.bf16.msra.mxu0 0
        %2745 = vmatprep.subr.bf16.mxu0 0
        %2746 = vmatpush1.bf16.msra.mxu0 %v2727
        %2747 = vmatprep.subr.bf16.mxu0 0
        %2748 = vmatpush1.bf16.msra.mxu0 %v2726
        %2749 = vmatprep.subr.bf16.mxu0 0
        %2750 = vmatpush2.bf16.msra.mxu0 0
        %2751 = vmatprep.subr.bf16.mxu0 0
        %2752 = vmatpush2.bf16.msra.mxu0 0
        %2753 = vmatprep.subr.bf16.mxu0 0
        %2754 = vmatpush2.bf16.msra.mxu0 0
        %2755 = vmatprep.subr.bf16.mxu0 0
        %2756 = vmatpush2.bf16.msra.mxu0 0
        %2757 = vmatprep.subr.bf16.mxu0 0
        %2758 = vmatpush2.bf16.msra.mxu0 0
        %2759 = vmatprep.subr.bf16.mxu0 0
        %2760 = vmatpush2.bf16.msra.mxu0 0
        %2761 = vmatprep.subr.bf16.mxu0 0
        %2762 = vmatpush2.bf16.msra.mxu0 0
        %2763 = vmatprep.subr.bf16.mxu0 0
        %2764 = vmatpush2.bf16.msra.mxu0 0
        %2765 = vmatprep.mubr.bf16.mxu0 0
        %2766 = vmatmul.mubr.bf16.gmra.mxu0 %v2731
        %v2767 = vpop.f32.mrf.mxu0
        %v2768 = vadd.f32 %v2717, %v2767
        %v2769 = vpop.f32.mrf.mxu0
        %v2770 = vpop.f32.mrf.mxu0
        %v2771 = vpop.f32.mrf.mxu0
        %2772 = vdwg.mxu0
        %v2773 = vlaneseq
        %v2774 = vshrl.u32 %v2773, 7
        %v2775 = vsub.s32 0, %v2774
        %v2776 = vrot.slane %v2691, %v2775
        %v2781 = vunpack.c.l.b16 %v2705
        %v2782 = vunpack.c.l.b16 %v2706
        %v2783 = vunpack.c.l.b16 %v2707
        %v2784 = vunpack.c.l.b16 %v2708
        %v2785 = vpack.c.b16 %v2782, %v2781
        %v2786 = vpack.c.b16 %v2784, %v2783
        %v2790 = vsel %vm394, %v2695, 0
        %2792 = vmatprep.subr.bf16.mxu0 0
        %2793 = vmatpush1.bf16.msra.mxu0 0
        %2794 = vmatprep.subr.bf16.mxu0 0
        %2795 = vmatpush1.bf16.msra.mxu0 0
        %2796 = vmatprep.subr.bf16.mxu0 0
        %2797 = vmatpush1.bf16.msra.mxu0 0
        %2798 = vmatprep.subr.bf16.mxu0 0
        %2799 = vmatpush1.bf16.msra.mxu0 0
        %2800 = vmatprep.subr.bf16.mxu0 0
        %2801 = vmatpush1.bf16.msra.mxu0 0
        %2802 = vmatprep.subr.bf16.mxu0 0
        %2803 = vmatpush1.bf16.msra.mxu0 0
        %2804 = vmatprep.subr.bf16.mxu0 0
        %2805 = vmatpush1.bf16.msra.mxu0 %v2786
        %2806 = vmatprep.subr.bf16.mxu0 0
        %2807 = vmatpush1.bf16.msra.mxu0 %v2785
        %2808 = vmatprep.subr.bf16.mxu0 0
        %2809 = vmatpush2.bf16.msra.mxu0 0
        %2810 = vmatprep.subr.bf16.mxu0 0
        %2811 = vmatpush2.bf16.msra.mxu0 0
        %2812 = vmatprep.subr.bf16.mxu0 0
        %2813 = vmatpush2.bf16.msra.mxu0 0
        %2814 = vmatprep.subr.bf16.mxu0 0
        %2815 = vmatpush2.bf16.msra.mxu0 0
        %2816 = vmatprep.subr.bf16.mxu0 0
        %2817 = vmatpush2.bf16.msra.mxu0 0
        %2818 = vmatprep.subr.bf16.mxu0 0
        %2819 = vmatpush2.bf16.msra.mxu0 0
        %2820 = vmatprep.subr.bf16.mxu0 0
        %2821 = vmatpush2.bf16.msra.mxu0 0
        %2822 = vmatprep.subr.bf16.mxu0 0
        %2823 = vmatpush2.bf16.msra.mxu0 0
        %2824 = vmatprep.mubr.bf16.mxu0 0
        %2825 = vmatmul.mubr.bf16.gmra.mxu0 %v2790
        %v2826 = vpop.f32.mrf.mxu0
        %v2827 = vadd.f32 %v2776, %v2826
        %v2828 = vpop.f32.mrf.mxu0
        %v2829 = vpop.f32.mrf.mxu0
        %v2830 = vadd.f32 %v2776, %v2829
        %v2831 = vpop.f32.mrf.mxu0
        %2832 = vdwg.mxu0
        %v2833 = vlaneseq
        %v2834 = vshrl.u32 %v2833, 7
        %v2835 = vsub.s32 0, %v2834
        %v2836 = vrot.slane %v2692, %v2835
        %v2841 = vunpack.c.l.b16 %v2709
        %v2842 = vunpack.c.l.b16 %v2710
        %v2843 = vunpack.c.l.b16 %v2711
        %v2844 = vunpack.c.l.b16 %v2712
        %v2845 = vpack.c.b16 %v2842, %v2841
        %v2846 = vpack.c.b16 %v2844, %v2843
        %2849 = vmatprep.subr.bf16.mxu0 0
        %2850 = vmatpush1.bf16.msra.mxu0 0
        %2851 = vmatprep.subr.bf16.mxu0 0
        %2852 = vmatpush1.bf16.msra.mxu0 0
        %2853 = vmatprep.subr.bf16.mxu0 0
        %2854 = vmatpush1.bf16.msra.mxu0 0
        %2855 = vmatprep.subr.bf16.mxu0 0
        %2856 = vmatpush1.bf16.msra.mxu0 0
        %2857 = vmatprep.subr.bf16.mxu0 0
        %2858 = vmatpush1.bf16.msra.mxu0 0
        %2859 = vmatprep.subr.bf16.mxu0 0
        %2860 = vmatpush1.bf16.msra.mxu0 0
        %2861 = vmatprep.subr.bf16.mxu0 0
        %2862 = vmatpush1.bf16.msra.mxu0 %v2846
        %2863 = vmatprep.subr.bf16.mxu0 0
        %2864 = vmatpush1.bf16.msra.mxu0 %v2845
        %2865 = vmatprep.subr.bf16.mxu0 0
        %2866 = vmatpush2.bf16.msra.mxu0 0
        %2867 = vmatprep.subr.bf16.mxu0 0
        %2868 = vmatpush2.bf16.msra.mxu0 0
        %2869 = vmatprep.subr.bf16.mxu0 0
        %2870 = vmatpush2.bf16.msra.mxu0 0
        %2871 = vmatprep.subr.bf16.mxu0 0
        %2872 = vmatpush2.bf16.msra.mxu0 0
        %2873 = vmatprep.subr.bf16.mxu0 0
        %2874 = vmatpush2.bf16.msra.mxu0 0
        %2875 = vmatprep.subr.bf16.mxu0 0
        %2876 = vmatpush2.bf16.msra.mxu0 0
        %2877 = vmatprep.subr.bf16.mxu0 0
        %2878 = vmatpush2.bf16.msra.mxu0 0
        %2879 = vmatprep.subr.bf16.mxu0 0
        %2880 = vmatpush2.bf16.msra.mxu0 0
        %2881 = vmatprep.mubr.bf16.mxu0 0
        %2882 = vmatmul.mubr.bf16.gmra.mxu0 %v2790
        %v2883 = vpop.f32.mrf.mxu0
        %v2884 = vadd.f32 %v2836, %v2883
        %v2885 = vpop.f32.mrf.mxu0
        %v2886 = vpop.f32.mrf.mxu0
        %v2887 = vadd.f32 %v2836, %v2886
        %v2888 = vpop.f32.mrf.mxu0
        %2889 = vdwg.mxu0
        %v2890 = vpack.c.bf16 %v2768, %v2768
        %v2891 = vpack.c.bf16 %v2830, %v2827
        %v2893 = vsel %vm300, %v2890, 0
        %v2896 = vsel %vm300, %v2891, 0
        %2898 = vmatprep.subr.bf16.mxu0 0
        %2899 = vmatpush1.bf16.xpose.msra.mxu0 0
        %2900 = vmatprep.subr.bf16.mxu0 0
        %2901 = vmatpush1.bf16.xpose.msra.mxu0 0
        %2902 = vmatprep.subr.bf16.mxu0 0
        %2903 = vmatpush1.bf16.xpose.msra.mxu0 0
        %2904 = vmatprep.subr.bf16.mxu0 0
        %2905 = vmatpush1.bf16.xpose.msra.mxu0 0
        %2906 = vmatprep.subr.bf16.mxu0 0
        %2907 = vmatpush1.bf16.xpose.msra.mxu0 0
        %2908 = vmatprep.subr.bf16.mxu0 0
        %2909 = vmatpush1.bf16.xpose.msra.mxu0 0
        %2910 = vmatprep.subr.bf16.mxu0 0
        %2911 = vmatpush1.bf16.xpose.msra.mxu0 0
        %2912 = vmatprep.subr.bf16.mxu0 0
        %2913 = vmatpush1.bf16.xpose.msra.mxu0 %v2896
        %2914 = vmatprep.subr.bf16.mxu0 0
        %2915 = vmatpush2.bf16.xpose.msra.mxu0 0
        %2916 = vmatprep.subr.bf16.mxu0 0
        %2917 = vmatpush2.bf16.xpose.msra.mxu0 0
        %2918 = vmatprep.subr.bf16.mxu0 0
        %2919 = vmatpush2.bf16.xpose.msra.mxu0 0
        %2920 = vmatprep.subr.bf16.mxu0 0
        %2921 = vmatpush2.bf16.xpose.msra.mxu0 0
        %2922 = vmatprep.subr.bf16.mxu0 0
        %2923 = vmatpush2.bf16.xpose.msra.mxu0 0
        %2924 = vmatprep.subr.bf16.mxu0 0
        %2925 = vmatpush2.bf16.xpose.msra.mxu0 0
        %2926 = vmatprep.subr.bf16.mxu0 0
        %2927 = vmatpush2.bf16.xpose.msra.mxu0 0
        %2928 = vmatprep.subr.bf16.mxu0 0
        %2929 = vmatpush2.bf16.xpose.msra.mxu0 0
        %2930 = vmatprep.mubr.bf16.mxu0 0
        %2931 = vmatmul.mubr.bf16.gmra.mxu0 %v2893
        %v2932 = vpop.f32.mrf.mxu0
        %v2933 = vadd.f32 0.0, %v2932
        %v2934 = vpop.f32.mrf.mxu0
        %v2935 = vpop.f32.mrf.mxu0
        %v2936 = vpop.f32.mrf.mxu0
        %2937 = vdwg.mxu0
        %v2938 = vmul.f32 %v2933, 0.35355338
        %vm2939 = vcmask 130048
        %v2940 = vsel %vm2939, %v2938, -inf
        %2941 = vmax.xlane.f32.xlu0 %v2940
        %v2942 = vpop.xlane.xlu0 %2941
        %v2943 = vsub.f32 %v2938, %v2942
        %v2944 = vmul.f32 %v2943, 1.442695
        %v2945 = vpow.pop %v2944
        %v2946 = vsel %vm2939, %v2945, 0.0
        %2947 = vadd.xlane.f32.xlu0 %v2946
        %v2948 = vpop.xlane.xlu0 %2947
        %v2949 = vrcp.pop %v2948
        %v2950 = vmul.f32 %v2948, %v2949
        %v2951 = vsub.f32 2.0, %v2950
        %v2952 = vmul.f32 %v2949, %v2951
        %v2953 = vmul.f32 %v2945, %v2952
        %v2954 = vadd.f32 %v2953, 0.0
        %v2955 = vpack.c.bf16 %v2953, %v2953
        %v2956 = vpack.c.bf16 %v2887, %v2884
        %v2958 = vsel %vm2939, %v2955, 0
        %2960 = vmatprep.subr.bf16.mxu0 0
        %2961 = vmatpush1.bf16.msra.mxu0 0
        %2962 = vmatprep.subr.bf16.mxu0 0
        %2963 = vmatpush1.bf16.msra.mxu0 0
        %2964 = vmatprep.subr.bf16.mxu0 0
        %2965 = vmatpush1.bf16.msra.mxu0 0
        %2966 = vmatprep.subr.bf16.mxu0 0
        %2967 = vmatpush1.bf16.msra.mxu0 0
        %2968 = vmatprep.subr.bf16.mxu0 0
        %2969 = vmatpush1.bf16.msra.mxu0 0
        %2970 = vmatprep.subr.bf16.mxu0 0
        %2971 = vmatpush1.bf16.msra.mxu0 0
        %2972 = vmatprep.subr.bf16.mxu0 0
        %2973 = vmatpush1.bf16.msra.mxu0 0
        %2974 = vmatprep.subr.bf16.mxu0 0
        %2975 = vmatpush1.bf16.msra.mxu0 %v2956
        %2976 = vmatprep.subr.bf16.mxu0 0
        %2977 = vmatpush2.bf16.msra.mxu0 0
        %2978 = vmatprep.subr.bf16.mxu0 0
        %2979 = vmatpush2.bf16.msra.mxu0 0
        %2980 = vmatprep.subr.bf16.mxu0 0
        %2981 = vmatpush2.bf16.msra.mxu0 0
        %2982 = vmatprep.subr.bf16.mxu0 0
        %2983 = vmatpush2.bf16.msra.mxu0 0
        %2984 = vmatprep.subr.bf16.mxu0 0
        %2985 = vmatpush2.bf16.msra.mxu0 0
        %2986 = vmatprep.subr.bf16.mxu0 0
        %2987 = vmatpush2.bf16.msra.mxu0 0
        %2988 = vmatprep.subr.bf16.mxu0 0
        %2989 = vmatpush2.bf16.msra.mxu0 0
        %2990 = vmatprep.subr.bf16.mxu0 0
        %2991 = vmatpush2.bf16.msra.mxu0 0
        %2992 = vmatprep.mubr.bf16.mxu0 0
        %2993 = vmatmul.mubr.bf16.gmra.mxu0 %v2958
        %v2994 = vpop.f32.mrf.mxu0
        %v2995 = vadd.f32 0.0, %v2994
        %v2996 = vpop.f32.mrf.mxu0
        %v2997 = vpop.f32.mrf.mxu0
        %v2998 = vpop.f32.mrf.mxu0
        %2999 = vdwg.mxu0
        %v3000 = vpack.c.bf16 %v2995, %v2995
        %v3002 = vsel %vm300, %v3000, 0
        %v3005 = vsel %vm574, %v2713, 0
        %3007 = vmatprep.subr.bf16.mxu0 0
        %3008 = vmatpush1.bf16.msra.mxu0 0
        %3009 = vmatprep.subr.bf16.mxu0 0
        %3010 = vmatpush1.bf16.msra.mxu0 0
        %3011 = vmatprep.subr.bf16.mxu0 0
        %3012 = vmatpush1.bf16.msra.mxu0 0
        %3013 = vmatprep.subr.bf16.mxu0 0
        %3014 = vmatpush1.bf16.msra.mxu0 0
        %3015 = vmatprep.subr.bf16.mxu0 0
        %3016 = vmatpush1.bf16.msra.mxu0 0
        %3017 = vmatprep.subr.bf16.mxu0 0
        %3018 = vmatpush1.bf16.msra.mxu0 0
        %3019 = vmatprep.subr.bf16.mxu0 0
        %3020 = vmatpush1.bf16.msra.mxu0 0
        %3021 = vmatprep.subr.bf16.mxu0 0
        %3022 = vmatpush1.bf16.msra.mxu0 %v3005
        %3023 = vmatprep.subr.bf16.mxu0 0
        %3024 = vmatpush2.bf16.msra.mxu0 0
        %3025 = vmatprep.subr.bf16.mxu0 0
        %3026 = vmatpush2.bf16.msra.mxu0 0
        %3027 = vmatprep.subr.bf16.mxu0 0
        %3028 = vmatpush2.bf16.msra.mxu0 0
        %3029 = vmatprep.subr.bf16.mxu0 0
        %3030 = vmatpush2.bf16.msra.mxu0 0
        %3031 = vmatprep.subr.bf16.mxu0 0
        %3032 = vmatpush2.bf16.msra.mxu0 0
        %3033 = vmatprep.subr.bf16.mxu0 0
        %3034 = vmatpush2.bf16.msra.mxu0 0
        %3035 = vmatprep.subr.bf16.mxu0 0
        %3036 = vmatpush2.bf16.msra.mxu0 0
        %3037 = vmatprep.subr.bf16.mxu0 0
        %3038 = vmatpush2.bf16.msra.mxu0 0
        %3039 = vmatprep.mubr.bf16.mxu0 0
        %3040 = vmatmul.mubr.bf16.gmra.mxu0 %v3002
        %v3041 = vpop.f32.mrf.mxu0
        %v3042 = vadd.f32 0.0, %v3041
        %v3043 = vpop.f32.mrf.mxu0
        %v3044 = vpop.f32.mrf.mxu0
        %v3045 = vpop.f32.mrf.mxu0
        %3046 = vdwg.mxu0
        %v3047 = vadd.f32 %v2700, %v3042
        %v3048 = vld [vmem:[#allocation2 + $0x258] sm:$0xf]
        %v3049 = vld [vmem:[#allocation2 + $0x25c] sm:$0xf]
        %v3050 = vld [vmem:[#allocation2 + $0x260] sm:$0xf]
        %v3051 = vld [vmem:[#allocation2 + $0x264] sm:$0xf]
        %v3052 = vld [vmem:[#allocation2 + $0x268] sm:$0xf]
        %v3053 = vld [vmem:[#allocation2 + $0x26c] sm:$0xf]
        %v3054 = vld [vmem:[#allocation2 + $0x270] sm:$0xf]
        %v3055 = vld [vmem:[#allocation2 + $0x274] sm:$0xf]
        %v3056 = vld [vmem:[#allocation2 + $0x278] sm:$0xf]
        %v3057 = vld [vmem:[#allocation2 + $0x27c] sm:$0xf]
        %v3058 = vld [vmem:[#allocation2 + $0x280] sm:$0xf]
        %v3059 = vld [vmem:[#allocation2 + $0x284] sm:$0xf]
        %v3060 = vld [vmem:[#allocation2 + $0x288] sm:$0xf]
        %v3065 = vunpack.c.l.b16 %v3048
        %v3066 = vunpack.c.l.b16 %v3049
        %v3067 = vunpack.c.l.b16 %v3050
        %v3068 = vunpack.c.l.b16 %v3051
        %v3069 = vpack.c.b16 %v3066, %v3065
        %v3070 = vpack.c.b16 %v3068, %v3067
        %3074 = vrot.lane.b32.xlu0 %v2717, 120
        %v3075 = vpop.permute.xlu0 %3074
        %3077 = vmatprep.subr.bf16.mxu0 0
        %3078 = vmatpush1.bf16.msra.mxu0 0
        %3079 = vmatprep.subr.bf16.mxu0 0
        %3080 = vmatpush1.bf16.msra.mxu0 0
        %3081 = vmatprep.subr.bf16.mxu0 0
        %3082 = vmatpush1.bf16.msra.mxu0 0
        %3083 = vmatprep.subr.bf16.mxu0 0
        %3084 = vmatpush1.bf16.msra.mxu0 0
        %3085 = vmatprep.subr.bf16.mxu0 0
        %3086 = vmatpush1.bf16.msra.mxu0 0
        %3087 = vmatprep.subr.bf16.mxu0 0
        %3088 = vmatpush1.bf16.msra.mxu0 0
        %3089 = vmatprep.subr.bf16.mxu0 0
        %3090 = vmatpush1.bf16.msra.mxu0 %v3070
        %3091 = vmatprep.subr.bf16.mxu0 0
        %3092 = vmatpush1.bf16.msra.mxu0 %v3069
        %3093 = vmatprep.subr.bf16.mxu0 0
        %3094 = vmatpush2.bf16.msra.mxu0 0
        %3095 = vmatprep.subr.bf16.mxu0 0
        %3096 = vmatpush2.bf16.msra.mxu0 0
        %3097 = vmatprep.subr.bf16.mxu0 0
        %3098 = vmatpush2.bf16.msra.mxu0 0
        %3099 = vmatprep.subr.bf16.mxu0 0
        %3100 = vmatpush2.bf16.msra.mxu0 0
        %3101 = vmatprep.subr.bf16.mxu0 0
        %3102 = vmatpush2.bf16.msra.mxu0 0
        %3103 = vmatprep.subr.bf16.mxu0 0
        %3104 = vmatpush2.bf16.msra.mxu0 0
        %3105 = vmatprep.subr.bf16.mxu0 0
        %3106 = vmatpush2.bf16.msra.mxu0 0
        %3107 = vmatprep.subr.bf16.mxu0 0
        %3108 = vmatpush2.bf16.msra.mxu0 0
        %3109 = vmatprep.mubr.bf16.mxu0 0
        %3110 = vmatmul.mubr.bf16.gmra.mxu0 %v2731
        %v3111 = vpop.f32.mrf.mxu0
        %v3112 = vadd.f32 %v3075, %v3111
        %v3113 = vpop.f32.mrf.mxu0
        %v3114 = vpop.f32.mrf.mxu0
        %v3115 = vpop.f32.mrf.mxu0
        %3116 = vdwg.mxu0
        %v3121 = vunpack.c.l.b16 %v3052
        %v3122 = vunpack.c.l.b16 %v3053
        %v3123 = vunpack.c.l.b16 %v3054
        %v3124 = vunpack.c.l.b16 %v3055
        %v3125 = vpack.c.b16 %v3122, %v3121
        %v3126 = vpack.c.b16 %v3124, %v3123
        %3130 = vrot.lane.b32.xlu0 %v2776, 120
        %v3131 = vpop.permute.xlu0 %3130
        %3133 = vmatprep.subr.bf16.mxu0 0
        %3134 = vmatpush1.bf16.msra.mxu0 0
        %3135 = vmatprep.subr.bf16.mxu0 0
        %3136 = vmatpush1.bf16.msra.mxu0 0
        %3137 = vmatprep.subr.bf16.mxu0 0
        %3138 = vmatpush1.bf16.msra.mxu0 0
        %3139 = vmatprep.subr.bf16.mxu0 0
        %3140 = vmatpush1.bf16.msra.mxu0 0
        %3141 = vmatprep.subr.bf16.mxu0 0
        %3142 = vmatpush1.bf16.msra.mxu0 0
        %3143 = vmatprep.subr.bf16.mxu0 0
        %3144 = vmatpush1.bf16.msra.mxu0 0
        %3145 = vmatprep.subr.bf16.mxu0 0
        %3146 = vmatpush1.bf16.msra.mxu0 %v3126
        %3147 = vmatprep.subr.bf16.mxu0 0
        %3148 = vmatpush1.bf16.msra.mxu0 %v3125
        %3149 = vmatprep.subr.bf16.mxu0 0
        %3150 = vmatpush2.bf16.msra.mxu0 0
        %3151 = vmatprep.subr.bf16.mxu0 0
        %3152 = vmatpush2.bf16.msra.mxu0 0
        %3153 = vmatprep.subr.bf16.mxu0 0
        %3154 = vmatpush2.bf16.msra.mxu0 0
        %3155 = vmatprep.subr.bf16.mxu0 0
        %3156 = vmatpush2.bf16.msra.mxu0 0
        %3157 = vmatprep.subr.bf16.mxu0 0
        %3158 = vmatpush2.bf16.msra.mxu0 0
        %3159 = vmatprep.subr.bf16.mxu0 0
        %3160 = vmatpush2.bf16.msra.mxu0 0
        %3161 = vmatprep.subr.bf16.mxu0 0
        %3162 = vmatpush2.bf16.msra.mxu0 0
        %3163 = vmatprep.subr.bf16.mxu0 0
        %3164 = vmatpush2.bf16.msra.mxu0 0
        %3165 = vmatprep.mubr.bf16.mxu0 0
        %3166 = vmatmul.mubr.bf16.gmra.mxu0 %v2790
        %v3167 = vpop.f32.mrf.mxu0
        %v3168 = vadd.f32 %v3131, %v3167
        %v3169 = vpop.f32.mrf.mxu0
        %v3170 = vpop.f32.mrf.mxu0
        %v3171 = vadd.f32 %v3131, %v3170
        %v3172 = vpop.f32.mrf.mxu0
        %3173 = vdwg.mxu0
        %v3178 = vunpack.c.l.b16 %v3056
        %v3179 = vunpack.c.l.b16 %v3057
        %v3180 = vunpack.c.l.b16 %v3058
        %v3181 = vunpack.c.l.b16 %v3059
        %v3182 = vpack.c.b16 %v3179, %v3178
        %v3183 = vpack.c.b16 %v3181, %v3180
        %3187 = vrot.lane.b32.xlu0 %v2836, 120
        %v3188 = vpop.permute.xlu0 %3187
        %3190 = vmatprep.subr.bf16.mxu0 0
        %3191 = vmatpush1.bf16.msra.mxu0 0
        %3192 = vmatprep.subr.bf16.mxu0 0
        %3193 = vmatpush1.bf16.msra.mxu0 0
        %3194 = vmatprep.subr.bf16.mxu0 0
        %3195 = vmatpush1.bf16.msra.mxu0 0
        %3196 = vmatprep.subr.bf16.mxu0 0
        %3197 = vmatpush1.bf16.msra.mxu0 0
        %3198 = vmatprep.subr.bf16.mxu0 0
        %3199 = vmatpush1.bf16.msra.mxu0 0
        %3200 = vmatprep.subr.bf16.mxu0 0
        %3201 = vmatpush1.bf16.msra.mxu0 0
        %3202 = vmatprep.subr.bf16.mxu0 0
        %3203 = vmatpush1.bf16.msra.mxu0 %v3183
        %3204 = vmatprep.subr.bf16.mxu0 0
        %3205 = vmatpush1.bf16.msra.mxu0 %v3182
        %3206 = vmatprep.subr.bf16.mxu0 0
        %3207 = vmatpush2.bf16.msra.mxu0 0
        %3208 = vmatprep.subr.bf16.mxu0 0
        %3209 = vmatpush2.bf16.msra.mxu0 0
        %3210 = vmatprep.subr.bf16.mxu0 0
        %3211 = vmatpush2.bf16.msra.mxu0 0
        %3212 = vmatprep.subr.bf16.mxu0 0
        %3213 = vmatpush2.bf16.msra.mxu0 0
        %3214 = vmatprep.subr.bf16.mxu0 0
        %3215 = vmatpush2.bf16.msra.mxu0 0
        %3216 = vmatprep.subr.bf16.mxu0 0
        %3217 = vmatpush2.bf16.msra.mxu0 0
        %3218 = vmatprep.subr.bf16.mxu0 0
        %3219 = vmatpush2.bf16.msra.mxu0 0
        %3220 = vmatprep.subr.bf16.mxu0 0
        %3221 = vmatpush2.bf16.msra.mxu0 0
        %3222 = vmatprep.mubr.bf16.mxu0 0
        %3223 = vmatmul.mubr.bf16.gmra.mxu0 %v2790
        %v3224 = vpop.f32.mrf.mxu0
        %v3225 = vadd.f32 %v3188, %v3224
        %v3226 = vpop.f32.mrf.mxu0
        %v3227 = vpop.f32.mrf.mxu0
        %v3228 = vadd.f32 %v3188, %v3227
        %v3229 = vpop.f32.mrf.mxu0
        %3230 = vdwg.mxu0
        %v3231 = vpack.c.bf16 %v3112, %v3112
        %v3232 = vpack.c.bf16 %v3171, %v3168
        %v3234 = vsel %vm300, %v3231, 0
        %v3237 = vsel %vm300, %v3232, 0
        %3239 = vmatprep.subr.bf16.mxu0 0
        %3240 = vmatpush1.bf16.xpose.msra.mxu0 0
        %3241 = vmatprep.subr.bf16.mxu0 0
        %3242 = vmatpush1.bf16.xpose.msra.mxu0 0
        %3243 = vmatprep.subr.bf16.mxu0 0
        %3244 = vmatpush1.bf16.xpose.msra.mxu0 0
        %3245 = vmatprep.subr.bf16.mxu0 0
        %3246 = vmatpush1.bf16.xpose.msra.mxu0 0
        %3247 = vmatprep.subr.bf16.mxu0 0
        %3248 = vmatpush1.bf16.xpose.msra.mxu0 0
        %3249 = vmatprep.subr.bf16.mxu0 0
        %3250 = vmatpush1.bf16.xpose.msra.mxu0 0
        %3251 = vmatprep.subr.bf16.mxu0 0
        %3252 = vmatpush1.bf16.xpose.msra.mxu0 0
        %3253 = vmatprep.subr.bf16.mxu0 0
        %3254 = vmatpush1.bf16.xpose.msra.mxu0 %v3237
        %3255 = vmatprep.subr.bf16.mxu0 0
        %3256 = vmatpush2.bf16.xpose.msra.mxu0 0
        %3257 = vmatprep.subr.bf16.mxu0 0
        %3258 = vmatpush2.bf16.xpose.msra.mxu0 0
        %3259 = vmatprep.subr.bf16.mxu0 0
        %3260 = vmatpush2.bf16.xpose.msra.mxu0 0
        %3261 = vmatprep.subr.bf16.mxu0 0
        %3262 = vmatpush2.bf16.xpose.msra.mxu0 0
        %3263 = vmatprep.subr.bf16.mxu0 0
        %3264 = vmatpush2.bf16.xpose.msra.mxu0 0
        %3265 = vmatprep.subr.bf16.mxu0 0
        %3266 = vmatpush2.bf16.xpose.msra.mxu0 0
        %3267 = vmatprep.subr.bf16.mxu0 0
        %3268 = vmatpush2.bf16.xpose.msra.mxu0 0
        %3269 = vmatprep.subr.bf16.mxu0 0
        %3270 = vmatpush2.bf16.xpose.msra.mxu0 0
        %3271 = vmatprep.mubr.bf16.mxu0 0
        %3272 = vmatmul.mubr.bf16.gmra.mxu0 %v3234
        %v3273 = vpop.f32.mrf.mxu0
        %v3274 = vadd.f32 0.0, %v3273
        %v3275 = vpop.f32.mrf.mxu0
        %v3276 = vpop.f32.mrf.mxu0
        %v3277 = vpop.f32.mrf.mxu0
        %3278 = vdwg.mxu0
        %v3279 = vmul.f32 %v3274, 0.35355338
        %v3280 = vsel %vm2939, %v3279, -inf
        %3281 = vmax.xlane.f32.xlu0 %v3280
        %v3282 = vpop.xlane.xlu0 %3281
        %v3283 = vsub.f32 %v3279, %v3282
        %v3284 = vmul.f32 %v3283, 1.442695
        %v3285 = vpow.pop %v3284
        %v3286 = vsel %vm2939, %v3285, 0.0
        %3287 = vadd.xlane.f32.xlu0 %v3286
        %v3288 = vpop.xlane.xlu0 %3287
        %v3289 = vrcp.pop %v3288
        %v3290 = vmul.f32 %v3288, %v3289
        %v3291 = vsub.f32 2.0, %v3290
        %v3292 = vmul.f32 %v3289, %v3291
        %v3293 = vmul.f32 %v3285, %v3292
        %v3294 = vadd.f32 %v2954, %v3293
        %v3295 = vpack.c.bf16 %v3293, %v3293
        %v3296 = vpack.c.bf16 %v3228, %v3225
        %v3298 = vsel %vm2939, %v3295, 0
        %3300 = vmatprep.subr.bf16.mxu0 0
        %3301 = vmatpush1.bf16.msra.mxu0 0
        %3302 = vmatprep.subr.bf16.mxu0 0
        %3303 = vmatpush1.bf16.msra.mxu0 0
        %3304 = vmatprep.subr.bf16.mxu0 0
        %3305 = vmatpush1.bf16.msra.mxu0 0
        %3306 = vmatprep.subr.bf16.mxu0 0
        %3307 = vmatpush1.bf16.msra.mxu0 0
        %3308 = vmatprep.subr.bf16.mxu0 0
        %3309 = vmatpush1.bf16.msra.mxu0 0
        %3310 = vmatprep.subr.bf16.mxu0 0
        %3311 = vmatpush1.bf16.msra.mxu0 0
        %3312 = vmatprep.subr.bf16.mxu0 0
        %3313 = vmatpush1.bf16.msra.mxu0 0
        %3314 = vmatprep.subr.bf16.mxu0 0
        %3315 = vmatpush1.bf16.msra.mxu0 %v3296
        %3316 = vmatprep.subr.bf16.mxu0 0
        %3317 = vmatpush2.bf16.msra.mxu0 0
        %3318 = vmatprep.subr.bf16.mxu0 0
        %3319 = vmatpush2.bf16.msra.mxu0 0
        %3320 = vmatprep.subr.bf16.mxu0 0
        %3321 = vmatpush2.bf16.msra.mxu0 0
        %3322 = vmatprep.subr.bf16.mxu0 0
        %3323 = vmatpush2.bf16.msra.mxu0 0
        %3324 = vmatprep.subr.bf16.mxu0 0
        %3325 = vmatpush2.bf16.msra.mxu0 0
        %3326 = vmatprep.subr.bf16.mxu0 0
        %3327 = vmatpush2.bf16.msra.mxu0 0
        %3328 = vmatprep.subr.bf16.mxu0 0
        %3329 = vmatpush2.bf16.msra.mxu0 0
        %3330 = vmatprep.subr.bf16.mxu0 0
        %3331 = vmatpush2.bf16.msra.mxu0 0
        %3332 = vmatprep.mubr.bf16.mxu0 0
        %3333 = vmatmul.mubr.bf16.gmra.mxu0 %v3298
        %v3334 = vpop.f32.mrf.mxu0
        %v3335 = vadd.f32 0.0, %v3334
        %v3336 = vpop.f32.mrf.mxu0
        %v3337 = vpop.f32.mrf.mxu0
        %v3338 = vpop.f32.mrf.mxu0
        %3339 = vdwg.mxu0
        %v3340 = vpack.c.bf16 %v3335, %v3335
        %v3342 = vsel %vm300, %v3340, 0
        %v3345 = vsel %vm574, %v3060, 0
        %3347 = vmatprep.subr.bf16.mxu0 0
        %3348 = vmatpush1.bf16.msra.mxu0 0
        %3349 = vmatprep.subr.bf16.mxu0 0
        %3350 = vmatpush1.bf16.msra.mxu0 0
        %3351 = vmatprep.subr.bf16.mxu0 0
        %3352 = vmatpush1.bf16.msra.mxu0 0
        %3353 = vmatprep.subr.bf16.mxu0 0
        %3354 = vmatpush1.bf16.msra.mxu0 0
        %3355 = vmatprep.subr.bf16.mxu0 0
        %3356 = vmatpush1.bf16.msra.mxu0 0
        %3357 = vmatprep.subr.bf16.mxu0 0
        %3358 = vmatpush1.bf16.msra.mxu0 0
        %3359 = vmatprep.subr.bf16.mxu0 0
        %3360 = vmatpush1.bf16.msra.mxu0 0
        %3361 = vmatprep.subr.bf16.mxu0 0
        %3362 = vmatpush1.bf16.msra.mxu0 %v3345
        %3363 = vmatprep.subr.bf16.mxu0 0
        %3364 = vmatpush2.bf16.msra.mxu0 0
        %3365 = vmatprep.subr.bf16.mxu0 0
        %3366 = vmatpush2.bf16.msra.mxu0 0
        %3367 = vmatprep.subr.bf16.mxu0 0
        %3368 = vmatpush2.bf16.msra.mxu0 0
        %3369 = vmatprep.subr.bf16.mxu0 0
        %3370 = vmatpush2.bf16.msra.mxu0 0
        %3371 = vmatprep.subr.bf16.mxu0 0
        %3372 = vmatpush2.bf16.msra.mxu0 0
        %3373 = vmatprep.subr.bf16.mxu0 0
        %3374 = vmatpush2.bf16.msra.mxu0 0
        %3375 = vmatprep.subr.bf16.mxu0 0
        %3376 = vmatpush2.bf16.msra.mxu0 0
        %3377 = vmatprep.subr.bf16.mxu0 0
        %3378 = vmatpush2.bf16.msra.mxu0 0
        %3379 = vmatprep.mubr.bf16.mxu0 0
        %3380 = vmatmul.mubr.bf16.gmra.mxu0 %v3342
        %v3381 = vpop.f32.mrf.mxu0
        %v3382 = vadd.f32 0.0, %v3381
        %v3383 = vpop.f32.mrf.mxu0
        %v3384 = vpop.f32.mrf.mxu0
        %v3385 = vpop.f32.mrf.mxu0
        %3386 = vdwg.mxu0
        %v3387 = vadd.f32 %v3047, %v3382
        %v3388 = vld [vmem:[#allocation2 + $0x290] sm:$0xf]
        %v3389 = vld [vmem:[#allocation2 + $0x294] sm:$0xf]
        %v3390 = vld [vmem:[#allocation2 + $0x298] sm:$0xf]
        %v3391 = vld [vmem:[#allocation2 + $0x29c] sm:$0xf]
        %v3392 = vld [vmem:[#allocation2 + $0x2a0] sm:$0xf]
        %v3393 = vld [vmem:[#allocation2 + $0x2a4] sm:$0xf]
        %v3394 = vld [vmem:[#allocation2 + $0x2a8] sm:$0xf]
        %v3395 = vld [vmem:[#allocation2 + $0x2ac] sm:$0xf]
        %v3396 = vld [vmem:[#allocation2 + $0x2b0] sm:$0xf]
        %v3397 = vld [vmem:[#allocation2 + $0x2b4] sm:$0xf]
        %v3398 = vld [vmem:[#allocation2 + $0x2b8] sm:$0xf]
        %v3399 = vld [vmem:[#allocation2 + $0x2bc] sm:$0xf]
        %v3400 = vld [vmem:[#allocation2 + $0x2c0] sm:$0xf]
        %v3405 = vunpack.c.l.b16 %v3388
        %v3406 = vunpack.c.l.b16 %v3389
        %v3407 = vunpack.c.l.b16 %v3390
        %v3408 = vunpack.c.l.b16 %v3391
        %v3409 = vpack.c.b16 %v3406, %v3405
        %v3410 = vpack.c.b16 %v3408, %v3407
        %3413 = vrot.lane.b32.xlu0 %v2717, 112
        %v3414 = vpop.permute.xlu0 %3413
        %3416 = vmatprep.subr.bf16.mxu0 0
        %3417 = vmatpush1.bf16.msra.mxu0 0
        %3418 = vmatprep.subr.bf16.mxu0 0
        %3419 = vmatpush1.bf16.msra.mxu0 0
        %3420 = vmatprep.subr.bf16.mxu0 0
        %3421 = vmatpush1.bf16.msra.mxu0 0
        %3422 = vmatprep.subr.bf16.mxu0 0
        %3423 = vmatpush1.bf16.msra.mxu0 0
        %3424 = vmatprep.subr.bf16.mxu0 0
        %3425 = vmatpush1.bf16.msra.mxu0 0
        %3426 = vmatprep.subr.bf16.mxu0 0
        %3427 = vmatpush1.bf16.msra.mxu0 0
        %3428 = vmatprep.subr.bf16.mxu0 0
        %3429 = vmatpush1.bf16.msra.mxu0 %v3410
        %3430 = vmatprep.subr.bf16.mxu0 0
        %3431 = vmatpush1.bf16.msra.mxu0 %v3409
        %3432 = vmatprep.subr.bf16.mxu0 0
        %3433 = vmatpush2.bf16.msra.mxu0 0
        %3434 = vmatprep.subr.bf16.mxu0 0
        %3435 = vmatpush2.bf16.msra.mxu0 0
        %3436 = vmatprep.subr.bf16.mxu0 0
        %3437 = vmatpush2.bf16.msra.mxu0 0
        %3438 = vmatprep.subr.bf16.mxu0 0
        %3439 = vmatpush2.bf16.msra.mxu0 0
        %3440 = vmatprep.subr.bf16.mxu0 0
        %3441 = vmatpush2.bf16.msra.mxu0 0
        %3442 = vmatprep.subr.bf16.mxu0 0
        %3443 = vmatpush2.bf16.msra.mxu0 0
        %3444 = vmatprep.subr.bf16.mxu0 0
        %3445 = vmatpush2.bf16.msra.mxu0 0
        %3446 = vmatprep.subr.bf16.mxu0 0
        %3447 = vmatpush2.bf16.msra.mxu0 0
        %3448 = vmatprep.mubr.bf16.mxu0 0
        %3449 = vmatmul.mubr.bf16.gmra.mxu0 %v2731
        %v3450 = vpop.f32.mrf.mxu0
        %v3451 = vadd.f32 %v3414, %v3450
        %v3452 = vpop.f32.mrf.mxu0
        %v3453 = vpop.f32.mrf.mxu0
        %v3454 = vpop.f32.mrf.mxu0
        %3455 = vdwg.mxu0
        %v3460 = vunpack.c.l.b16 %v3392
        %v3461 = vunpack.c.l.b16 %v3393
        %v3462 = vunpack.c.l.b16 %v3394
        %v3463 = vunpack.c.l.b16 %v3395
        %v3464 = vpack.c.b16 %v3461, %v3460
        %v3465 = vpack.c.b16 %v3463, %v3462
        %3468 = vrot.lane.b32.xlu0 %v2776, 112
        %v3469 = vpop.permute.xlu0 %3468
        %3471 = vmatprep.subr.bf16.mxu0 0
        %3472 = vmatpush1.bf16.msra.mxu0 0
        %3473 = vmatprep.subr.bf16.mxu0 0
        %3474 = vmatpush1.bf16.msra.mxu0 0
        %3475 = vmatprep.subr.bf16.mxu0 0
        %3476 = vmatpush1.bf16.msra.mxu0 0
        %3477 = vmatprep.subr.bf16.mxu0 0
        %3478 = vmatpush1.bf16.msra.mxu0 0
        %3479 = vmatprep.subr.bf16.mxu0 0
        %3480 = vmatpush1.bf16.msra.mxu0 0
        %3481 = vmatprep.subr.bf16.mxu0 0
        %3482 = vmatpush1.bf16.msra.mxu0 0
        %3483 = vmatprep.subr.bf16.mxu0 0
        %3484 = vmatpush1.bf16.msra.mxu0 %v3465
        %3485 = vmatprep.subr.bf16.mxu0 0
        %3486 = vmatpush1.bf16.msra.mxu0 %v3464
        %3487 = vmatprep.subr.bf16.mxu0 0
        %3488 = vmatpush2.bf16.msra.mxu0 0
        %3489 = vmatprep.subr.bf16.mxu0 0
        %3490 = vmatpush2.bf16.msra.mxu0 0
        %3491 = vmatprep.subr.bf16.mxu0 0
        %3492 = vmatpush2.bf16.msra.mxu0 0
        %3493 = vmatprep.subr.bf16.mxu0 0
        %3494 = vmatpush2.bf16.msra.mxu0 0
        %3495 = vmatprep.subr.bf16.mxu0 0
        %3496 = vmatpush2.bf16.msra.mxu0 0
        %3497 = vmatprep.subr.bf16.mxu0 0
        %3498 = vmatpush2.bf16.msra.mxu0 0
        %3499 = vmatprep.subr.bf16.mxu0 0
        %3500 = vmatpush2.bf16.msra.mxu0 0
        %3501 = vmatprep.subr.bf16.mxu0 0
        %3502 = vmatpush2.bf16.msra.mxu0 0
        %3503 = vmatprep.mubr.bf16.mxu0 0
        %3504 = vmatmul.mubr.bf16.gmra.mxu0 %v2790
        %v3505 = vpop.f32.mrf.mxu0
        %v3506 = vadd.f32 %v3469, %v3505
        %v3507 = vpop.f32.mrf.mxu0
        %v3508 = vpop.f32.mrf.mxu0
        %v3509 = vadd.f32 %v3469, %v3508
        %v3510 = vpop.f32.mrf.mxu0
        %3511 = vdwg.mxu0
        %v3516 = vunpack.c.l.b16 %v3396
        %v3517 = vunpack.c.l.b16 %v3397
        %v3518 = vunpack.c.l.b16 %v3398
        %v3519 = vunpack.c.l.b16 %v3399
        %v3520 = vpack.c.b16 %v3517, %v3516
        %v3521 = vpack.c.b16 %v3519, %v3518
        %3524 = vrot.lane.b32.xlu0 %v2836, 112
        %v3525 = vpop.permute.xlu0 %3524
        %3527 = vmatprep.subr.bf16.mxu0 0
        %3528 = vmatpush1.bf16.msra.mxu0 0
        %3529 = vmatprep.subr.bf16.mxu0 0
        %3530 = vmatpush1.bf16.msra.mxu0 0
        %3531 = vmatprep.subr.bf16.mxu0 0
        %3532 = vmatpush1.bf16.msra.mxu0 0
        %3533 = vmatprep.subr.bf16.mxu0 0
        %3534 = vmatpush1.bf16.msra.mxu0 0
        %3535 = vmatprep.subr.bf16.mxu0 0
        %3536 = vmatpush1.bf16.msra.mxu0 0
        %3537 = vmatprep.subr.bf16.mxu0 0
        %3538 = vmatpush1.bf16.msra.mxu0 0
        %3539 = vmatprep.subr.bf16.mxu0 0
        %3540 = vmatpush1.bf16.msra.mxu0 %v3521
        %3541 = vmatprep.subr.bf16.mxu0 0
        %3542 = vmatpush1.bf16.msra.mxu0 %v3520
        %3543 = vmatprep.subr.bf16.mxu0 0
        %3544 = vmatpush2.bf16.msra.mxu0 0
        %3545 = vmatprep.subr.bf16.mxu0 0
        %3546 = vmatpush2.bf16.msra.mxu0 0
        %3547 = vmatprep.subr.bf16.mxu0 0
        %3548 = vmatpush2.bf16.msra.mxu0 0
        %3549 = vmatprep.subr.bf16.mxu0 0
        %3550 = vmatpush2.bf16.msra.mxu0 0
        %3551 = vmatprep.subr.bf16.mxu0 0
        %3552 = vmatpush2.bf16.msra.mxu0 0
        %3553 = vmatprep.subr.bf16.mxu0 0
        %3554 = vmatpush2.bf16.msra.mxu0 0
        %3555 = vmatprep.subr.bf16.mxu0 0
        %3556 = vmatpush2.bf16.msra.mxu0 0
        %3557 = vmatprep.subr.bf16.mxu0 0
        %3558 = vmatpush2.bf16.msra.mxu0 0
        %3559 = vmatprep.mubr.bf16.mxu0 0
        %3560 = vmatmul.mubr.bf16.gmra.mxu0 %v2790
        %v3561 = vpop.f32.mrf.mxu0
        %v3562 = vadd.f32 %v3525, %v3561
        %v3563 = vpop.f32.mrf.mxu0
        %v3564 = vpop.f32.mrf.mxu0
        %v3565 = vadd.f32 %v3525, %v3564
        %v3566 = vpop.f32.mrf.mxu0
        %3567 = vdwg.mxu0
        %v3568 = vpack.c.bf16 %v3451, %v3451
        %v3569 = vpack.c.bf16 %v3509, %v3506
        %v3571 = vsel %vm300, %v3568, 0
        %v3574 = vsel %vm300, %v3569, 0
        %3576 = vmatprep.subr.bf16.mxu0 0
        %3577 = vmatpush1.bf16.xpose.msra.mxu0 0
        %3578 = vmatprep.subr.bf16.mxu0 0
        %3579 = vmatpush1.bf16.xpose.msra.mxu0 0
        %3580 = vmatprep.subr.bf16.mxu0 0
        %3581 = vmatpush1.bf16.xpose.msra.mxu0 0
        %3582 = vmatprep.subr.bf16.mxu0 0
        %3583 = vmatpush1.bf16.xpose.msra.mxu0 0
        %3584 = vmatprep.subr.bf16.mxu0 0
        %3585 = vmatpush1.bf16.xpose.msra.mxu0 0
        %3586 = vmatprep.subr.bf16.mxu0 0
        %3587 = vmatpush1.bf16.xpose.msra.mxu0 0
        %3588 = vmatprep.subr.bf16.mxu0 0
        %3589 = vmatpush1.bf16.xpose.msra.mxu0 0
        %3590 = vmatprep.subr.bf16.mxu0 0
        %3591 = vmatpush1.bf16.xpose.msra.mxu0 %v3574
        %3592 = vmatprep.subr.bf16.mxu0 0
        %3593 = vmatpush2.bf16.xpose.msra.mxu0 0
        %3594 = vmatprep.subr.bf16.mxu0 0
        %3595 = vmatpush2.bf16.xpose.msra.mxu0 0
        %3596 = vmatprep.subr.bf16.mxu0 0
        %3597 = vmatpush2.bf16.xpose.msra.mxu0 0
        %3598 = vmatprep.subr.bf16.mxu0 0
        %3599 = vmatpush2.bf16.xpose.msra.mxu0 0
        %3600 = vmatprep.subr.bf16.mxu0 0
        %3601 = vmatpush2.bf16.xpose.msra.mxu0 0
        %3602 = vmatprep.subr.bf16.mxu0 0
        %3603 = vmatpush2.bf16.xpose.msra.mxu0 0
        %3604 = vmatprep.subr.bf16.mxu0 0
        %3605 = vmatpush2.bf16.xpose.msra.mxu0 0
        %3606 = vmatprep.subr.bf16.mxu0 0
        %3607 = vmatpush2.bf16.xpose.msra.mxu0 0
        %3608 = vmatprep.mubr.bf16.mxu0 0
        %3609 = vmatmul.mubr.bf16.gmra.mxu0 %v3571
        %v3610 = vpop.f32.mrf.mxu0
        %v3611 = vadd.f32 0.0, %v3610
        %v3612 = vpop.f32.mrf.mxu0
        %v3613 = vpop.f32.mrf.mxu0
        %v3614 = vpop.f32.mrf.mxu0
        %3615 = vdwg.mxu0
        %v3616 = vmul.f32 %v3611, 0.35355338
        %v3617 = vsel %vm2939, %v3616, -inf
        %3618 = vmax.xlane.f32.xlu0 %v3617
        %v3619 = vpop.xlane.xlu0 %3618
        %v3620 = vsub.f32 %v3616, %v3619
        %v3621 = vmul.f32 %v3620, 1.442695
        %v3622 = vpow.pop %v3621
        %v3623 = vsel %vm2939, %v3622, 0.0
        %3624 = vadd.xlane.f32.xlu0 %v3623
        %v3625 = vpop.xlane.xlu0 %3624
        %v3626 = vrcp.pop %v3625
        %v3627 = vmul.f32 %v3625, %v3626
        %v3628 = vsub.f32 2.0, %v3627
        %v3629 = vmul.f32 %v3626, %v3628
        %v3630 = vmul.f32 %v3622, %v3629
        %v3631 = vadd.f32 %v3294, %v3630
        %v3632 = vpack.c.bf16 %v3630, %v3630
        %v3633 = vpack.c.bf16 %v3565, %v3562
        %v3635 = vsel %vm2939, %v3632, 0
        %3637 = vmatprep.subr.bf16.mxu0 0
        %3638 = vmatpush1.bf16.msra.mxu0 0
        %3639 = vmatprep.subr.bf16.mxu0 0
        %3640 = vmatpush1.bf16.msra.mxu0 0
        %3641 = vmatprep.subr.bf16.mxu0 0
        %3642 = vmatpush1.bf16.msra.mxu0 0
        %3643 = vmatprep.subr.bf16.mxu0 0
        %3644 = vmatpush1.bf16.msra.mxu0 0
        %3645 = vmatprep.subr.bf16.mxu0 0
        %3646 = vmatpush1.bf16.msra.mxu0 0
        %3647 = vmatprep.subr.bf16.mxu0 0
        %3648 = vmatpush1.bf16.msra.mxu0 0
        %3649 = vmatprep.subr.bf16.mxu0 0
        %3650 = vmatpush1.bf16.msra.mxu0 0
        %3651 = vmatprep.subr.bf16.mxu0 0
        %3652 = vmatpush1.bf16.msra.mxu0 %v3633
        %3653 = vmatprep.subr.bf16.mxu0 0
        %3654 = vmatpush2.bf16.msra.mxu0 0
        %3655 = vmatprep.subr.bf16.mxu0 0
        %3656 = vmatpush2.bf16.msra.mxu0 0
        %3657 = vmatprep.subr.bf16.mxu0 0
        %3658 = vmatpush2.bf16.msra.mxu0 0
        %3659 = vmatprep.subr.bf16.mxu0 0
        %3660 = vmatpush2.bf16.msra.mxu0 0
        %3661 = vmatprep.subr.bf16.mxu0 0
        %3662 = vmatpush2.bf16.msra.mxu0 0
        %3663 = vmatprep.subr.bf16.mxu0 0
        %3664 = vmatpush2.bf16.msra.mxu0 0
        %3665 = vmatprep.subr.bf16.mxu0 0
        %3666 = vmatpush2.bf16.msra.mxu0 0
        %3667 = vmatprep.subr.bf16.mxu0 0
        %3668 = vmatpush2.bf16.msra.mxu0 0
        %3669 = vmatprep.mubr.bf16.mxu0 0
        %3670 = vmatmul.mubr.bf16.gmra.mxu0 %v3635
        %v3671 = vpop.f32.mrf.mxu0
        %v3672 = vadd.f32 0.0, %v3671
        %v3673 = vpop.f32.mrf.mxu0
        %v3674 = vpop.f32.mrf.mxu0
        %v3675 = vpop.f32.mrf.mxu0
        %3676 = vdwg.mxu0
        %v3677 = vpack.c.bf16 %v3672, %v3672
        %v3679 = vsel %vm300, %v3677, 0
        %v3682 = vsel %vm574, %v3400, 0
        %3684 = vmatprep.subr.bf16.mxu0 0
        %3685 = vmatpush1.bf16.msra.mxu0 0
        %3686 = vmatprep.subr.bf16.mxu0 0
        %3687 = vmatpush1.bf16.msra.mxu0 0
        %3688 = vmatprep.subr.bf16.mxu0 0
        %3689 = vmatpush1.bf16.msra.mxu0 0
        %3690 = vmatprep.subr.bf16.mxu0 0
        %3691 = vmatpush1.bf16.msra.mxu0 0
        %3692 = vmatprep.subr.bf16.mxu0 0
        %3693 = vmatpush1.bf16.msra.mxu0 0
        %3694 = vmatprep.subr.bf16.mxu0 0
        %3695 = vmatpush1.bf16.msra.mxu0 0
        %3696 = vmatprep.subr.bf16.mxu0 0
        %3697 = vmatpush1.bf16.msra.mxu0 0
        %3698 = vmatprep.subr.bf16.mxu0 0
        %3699 = vmatpush1.bf16.msra.mxu0 %v3682
        %3700 = vmatprep.subr.bf16.mxu0 0
        %3701 = vmatpush2.bf16.msra.mxu0 0
        %3702 = vmatprep.subr.bf16.mxu0 0
        %3703 = vmatpush2.bf16.msra.mxu0 0
        %3704 = vmatprep.subr.bf16.mxu0 0
        %3705 = vmatpush2.bf16.msra.mxu0 0
        %3706 = vmatprep.subr.bf16.mxu0 0
        %3707 = vmatpush2.bf16.msra.mxu0 0
        %3708 = vmatprep.subr.bf16.mxu0 0
        %3709 = vmatpush2.bf16.msra.mxu0 0
        %3710 = vmatprep.subr.bf16.mxu0 0
        %3711 = vmatpush2.bf16.msra.mxu0 0
        %3712 = vmatprep.subr.bf16.mxu0 0
        %3713 = vmatpush2.bf16.msra.mxu0 0
        %3714 = vmatprep.subr.bf16.mxu0 0
        %3715 = vmatpush2.bf16.msra.mxu0 0
        %3716 = vmatprep.mubr.bf16.mxu0 0
        %3717 = vmatmul.mubr.bf16.gmra.mxu0 %v3679
        %v3718 = vpop.f32.mrf.mxu0
        %v3719 = vadd.f32 0.0, %v3718
        %v3720 = vpop.f32.mrf.mxu0
        %v3721 = vpop.f32.mrf.mxu0
        %v3722 = vpop.f32.mrf.mxu0
        %3723 = vdwg.mxu0
        %v3724 = vadd.f32 %v3387, %v3719
        %v3725 = vld [vmem:[#allocation2 + $0x2c8] sm:$0xf]
        %v3726 = vld [vmem:[#allocation2 + $0x2cc] sm:$0xf]
        %v3727 = vld [vmem:[#allocation2 + $0x2d0] sm:$0xf]
        %v3728 = vld [vmem:[#allocation2 + $0x2d4] sm:$0xf]
        %v3729 = vld [vmem:[#allocation2 + $0x2d8] sm:$0xf]
        %v3730 = vld [vmem:[#allocation2 + $0x2dc] sm:$0xf]
        %v3731 = vld [vmem:[#allocation2 + $0x2e0] sm:$0xf]
        %v3732 = vld [vmem:[#allocation2 + $0x2e4] sm:$0xf]
        %v3733 = vld [vmem:[#allocation2 + $0x2e8] sm:$0xf]
        %v3734 = vld [vmem:[#allocation2 + $0x2ec] sm:$0xf]
        %v3735 = vld [vmem:[#allocation2 + $0x2f0] sm:$0xf]
        %v3736 = vld [vmem:[#allocation2 + $0x2f4] sm:$0xf]
        %v3737 = vld [vmem:[#allocation2 + $0x2f8] sm:$0xf]
        %v3742 = vunpack.c.l.b16 %v3725
        %v3743 = vunpack.c.l.b16 %v3726
        %v3744 = vunpack.c.l.b16 %v3727
        %v3745 = vunpack.c.l.b16 %v3728
        %v3746 = vpack.c.b16 %v3743, %v3742
        %v3747 = vpack.c.b16 %v3745, %v3744
        %3750 = vrot.lane.b32.xlu0 %v2717, 104
        %v3751 = vpop.permute.xlu0 %3750
        %3753 = vmatprep.subr.bf16.mxu0 0
        %3754 = vmatpush1.bf16.msra.mxu0 0
        %3755 = vmatprep.subr.bf16.mxu0 0
        %3756 = vmatpush1.bf16.msra.mxu0 0
        %3757 = vmatprep.subr.bf16.mxu0 0
        %3758 = vmatpush1.bf16.msra.mxu0 0
        %3759 = vmatprep.subr.bf16.mxu0 0
        %3760 = vmatpush1.bf16.msra.mxu0 0
        %3761 = vmatprep.subr.bf16.mxu0 0
        %3762 = vmatpush1.bf16.msra.mxu0 0
        %3763 = vmatprep.subr.bf16.mxu0 0
        %3764 = vmatpush1.bf16.msra.mxu0 0
        %3765 = vmatprep.subr.bf16.mxu0 0
        %3766 = vmatpush1.bf16.msra.mxu0 %v3747
        %3767 = vmatprep.subr.bf16.mxu0 0
        %3768 = vmatpush1.bf16.msra.mxu0 %v3746
        %3769 = vmatprep.subr.bf16.mxu0 0
        %3770 = vmatpush2.bf16.msra.mxu0 0
        %3771 = vmatprep.subr.bf16.mxu0 0
        %3772 = vmatpush2.bf16.msra.mxu0 0
        %3773 = vmatprep.subr.bf16.mxu0 0
        %3774 = vmatpush2.bf16.msra.mxu0 0
        %3775 = vmatprep.subr.bf16.mxu0 0
        %3776 = vmatpush2.bf16.msra.mxu0 0
        %3777 = vmatprep.subr.bf16.mxu0 0
        %3778 = vmatpush2.bf16.msra.mxu0 0
        %3779 = vmatprep.subr.bf16.mxu0 0
        %3780 = vmatpush2.bf16.msra.mxu0 0
        %3781 = vmatprep.subr.bf16.mxu0 0
        %3782 = vmatpush2.bf16.msra.mxu0 0
        %3783 = vmatprep.subr.bf16.mxu0 0
        %3784 = vmatpush2.bf16.msra.mxu0 0
        %3785 = vmatprep.mubr.bf16.mxu0 0
        %3786 = vmatmul.mubr.bf16.gmra.mxu0 %v2731
        %v3787 = vpop.f32.mrf.mxu0
        %v3788 = vadd.f32 %v3751, %v3787
        %v3789 = vpop.f32.mrf.mxu0
        %v3790 = vpop.f32.mrf.mxu0
        %v3791 = vpop.f32.mrf.mxu0
        %3792 = vdwg.mxu0
        %v3797 = vunpack.c.l.b16 %v3729
        %v3798 = vunpack.c.l.b16 %v3730
        %v3799 = vunpack.c.l.b16 %v3731
        %v3800 = vunpack.c.l.b16 %v3732
        %v3801 = vpack.c.b16 %v3798, %v3797
        %v3802 = vpack.c.b16 %v3800, %v3799
        %3805 = vrot.lane.b32.xlu0 %v2776, 104
        %v3806 = vpop.permute.xlu0 %3805
        %3808 = vmatprep.subr.bf16.mxu0 0
        %3809 = vmatpush1.bf16.msra.mxu0 0
        %3810 = vmatprep.subr.bf16.mxu0 0
        %3811 = vmatpush1.bf16.msra.mxu0 0
        %3812 = vmatprep.subr.bf16.mxu0 0
        %3813 = vmatpush1.bf16.msra.mxu0 0
        %3814 = vmatprep.subr.bf16.mxu0 0
        %3815 = vmatpush1.bf16.msra.mxu0 0
        %3816 = vmatprep.subr.bf16.mxu0 0
        %3817 = vmatpush1.bf16.msra.mxu0 0
        %3818 = vmatprep.subr.bf16.mxu0 0
        %3819 = vmatpush1.bf16.msra.mxu0 0
        %3820 = vmatprep.subr.bf16.mxu0 0
        %3821 = vmatpush1.bf16.msra.mxu0 %v3802
        %3822 = vmatprep.subr.bf16.mxu0 0
        %3823 = vmatpush1.bf16.msra.mxu0 %v3801
        %3824 = vmatprep.subr.bf16.mxu0 0
        %3825 = vmatpush2.bf16.msra.mxu0 0
        %3826 = vmatprep.subr.bf16.mxu0 0
        %3827 = vmatpush2.bf16.msra.mxu0 0
        %3828 = vmatprep.subr.bf16.mxu0 0
        %3829 = vmatpush2.bf16.msra.mxu0 0
        %3830 = vmatprep.subr.bf16.mxu0 0
        %3831 = vmatpush2.bf16.msra.mxu0 0
        %3832 = vmatprep.subr.bf16.mxu0 0
        %3833 = vmatpush2.bf16.msra.mxu0 0
        %3834 = vmatprep.subr.bf16.mxu0 0
        %3835 = vmatpush2.bf16.msra.mxu0 0
        %3836 = vmatprep.subr.bf16.mxu0 0
        %3837 = vmatpush2.bf16.msra.mxu0 0
        %3838 = vmatprep.subr.bf16.mxu0 0
        %3839 = vmatpush2.bf16.msra.mxu0 0
        %3840 = vmatprep.mubr.bf16.mxu0 0
        %3841 = vmatmul.mubr.bf16.gmra.mxu0 %v2790
        %v3842 = vpop.f32.mrf.mxu0
        %v3843 = vadd.f32 %v3806, %v3842
        %v3844 = vpop.f32.mrf.mxu0
        %v3845 = vpop.f32.mrf.mxu0
        %v3846 = vadd.f32 %v3806, %v3845
        %v3847 = vpop.f32.mrf.mxu0
        %3848 = vdwg.mxu0
        %v3853 = vunpack.c.l.b16 %v3733
        %v3854 = vunpack.c.l.b16 %v3734
        %v3855 = vunpack.c.l.b16 %v3735
        %v3856 = vunpack.c.l.b16 %v3736
        %v3857 = vpack.c.b16 %v3854, %v3853
        %v3858 = vpack.c.b16 %v3856, %v3855
        %3861 = vrot.lane.b32.xlu0 %v2836, 104
        %v3862 = vpop.permute.xlu0 %3861
        %3864 = vmatprep.subr.bf16.mxu0 0
        %3865 = vmatpush1.bf16.msra.mxu0 0
        %3866 = vmatprep.subr.bf16.mxu0 0
        %3867 = vmatpush1.bf16.msra.mxu0 0
        %3868 = vmatprep.subr.bf16.mxu0 0
        %3869 = vmatpush1.bf16.msra.mxu0 0
        %3870 = vmatprep.subr.bf16.mxu0 0
        %3871 = vmatpush1.bf16.msra.mxu0 0
        %3872 = vmatprep.subr.bf16.mxu0 0
        %3873 = vmatpush1.bf16.msra.mxu0 0
        %3874 = vmatprep.subr.bf16.mxu0 0
        %3875 = vmatpush1.bf16.msra.mxu0 0
        %3876 = vmatprep.subr.bf16.mxu0 0
        %3877 = vmatpush1.bf16.msra.mxu0 %v3858
        %3878 = vmatprep.subr.bf16.mxu0 0
        %3879 = vmatpush1.bf16.msra.mxu0 %v3857
        %3880 = vmatprep.subr.bf16.mxu0 0
        %3881 = vmatpush2.bf16.msra.mxu0 0
        %3882 = vmatprep.subr.bf16.mxu0 0
        %3883 = vmatpush2.bf16.msra.mxu0 0
        %3884 = vmatprep.subr.bf16.mxu0 0
        %3885 = vmatpush2.bf16.msra.mxu0 0
        %3886 = vmatprep.subr.bf16.mxu0 0
        %3887 = vmatpush2.bf16.msra.mxu0 0
        %3888 = vmatprep.subr.bf16.mxu0 0
        %3889 = vmatpush2.bf16.msra.mxu0 0
        %3890 = vmatprep.subr.bf16.mxu0 0
        %3891 = vmatpush2.bf16.msra.mxu0 0
        %3892 = vmatprep.subr.bf16.mxu0 0
        %3893 = vmatpush2.bf16.msra.mxu0 0
        %3894 = vmatprep.subr.bf16.mxu0 0
        %3895 = vmatpush2.bf16.msra.mxu0 0
        %3896 = vmatprep.mubr.bf16.mxu0 0
        %3897 = vmatmul.mubr.bf16.gmra.mxu0 %v2790
        %v3898 = vpop.f32.mrf.mxu0
        %v3899 = vadd.f32 %v3862, %v3898
        %v3900 = vpop.f32.mrf.mxu0
        %v3901 = vpop.f32.mrf.mxu0
        %v3902 = vadd.f32 %v3862, %v3901
        %v3903 = vpop.f32.mrf.mxu0
        %3904 = vdwg.mxu0
        %v3905 = vpack.c.bf16 %v3788, %v3788
        %v3906 = vpack.c.bf16 %v3846, %v3843
        %v3908 = vsel %vm300, %v3905, 0
        %v3911 = vsel %vm300, %v3906, 0
        %3913 = vmatprep.subr.bf16.mxu0 0
        %3914 = vmatpush1.bf16.xpose.msra.mxu0 0
        %3915 = vmatprep.subr.bf16.mxu0 0
        %3916 = vmatpush1.bf16.xpose.msra.mxu0 0
        %3917 = vmatprep.subr.bf16.mxu0 0
        %3918 = vmatpush1.bf16.xpose.msra.mxu0 0
        %3919 = vmatprep.subr.bf16.mxu0 0
        %3920 = vmatpush1.bf16.xpose.msra.mxu0 0
        %3921 = vmatprep.subr.bf16.mxu0 0
        %3922 = vmatpush1.bf16.xpose.msra.mxu0 0
        %3923 = vmatprep.subr.bf16.mxu0 0
        %3924 = vmatpush1.bf16.xpose.msra.mxu0 0
        %3925 = vmatprep.subr.bf16.mxu0 0
        %3926 = vmatpush1.bf16.xpose.msra.mxu0 0
        %3927 = vmatprep.subr.bf16.mxu0 0
        %3928 = vmatpush1.bf16.xpose.msra.mxu0 %v3911
        %3929 = vmatprep.subr.bf16.mxu0 0
        %3930 = vmatpush2.bf16.xpose.msra.mxu0 0
        %3931 = vmatprep.subr.bf16.mxu0 0
        %3932 = vmatpush2.bf16.xpose.msra.mxu0 0
        %3933 = vmatprep.subr.bf16.mxu0 0
        %3934 = vmatpush2.bf16.xpose.msra.mxu0 0
        %3935 = vmatprep.subr.bf16.mxu0 0
        %3936 = vmatpush2.bf16.xpose.msra.mxu0 0
        %3937 = vmatprep.subr.bf16.mxu0 0
        %3938 = vmatpush2.bf16.xpose.msra.mxu0 0
        %3939 = vmatprep.subr.bf16.mxu0 0
        %3940 = vmatpush2.bf16.xpose.msra.mxu0 0
        %3941 = vmatprep.subr.bf16.mxu0 0
        %3942 = vmatpush2.bf16.xpose.msra.mxu0 0
        %3943 = vmatprep.subr.bf16.mxu0 0
        %3944 = vmatpush2.bf16.xpose.msra.mxu0 0
        %3945 = vmatprep.mubr.bf16.mxu0 0
        %3946 = vmatmul.mubr.bf16.gmra.mxu0 %v3908
        %v3947 = vpop.f32.mrf.mxu0
        %v3948 = vadd.f32 0.0, %v3947
        %v3949 = vpop.f32.mrf.mxu0
        %v3950 = vpop.f32.mrf.mxu0
        %v3951 = vpop.f32.mrf.mxu0
        %3952 = vdwg.mxu0
        %v3953 = vmul.f32 %v3948, 0.35355338
        %v3954 = vsel %vm2939, %v3953, -inf
        %3955 = vmax.xlane.f32.xlu0 %v3954
        %v3956 = vpop.xlane.xlu0 %3955
        %v3957 = vsub.f32 %v3953, %v3956
        %v3958 = vmul.f32 %v3957, 1.442695
        %v3959 = vpow.pop %v3958
        %v3960 = vsel %vm2939, %v3959, 0.0
        %3961 = vadd.xlane.f32.xlu0 %v3960
        %v3962 = vpop.xlane.xlu0 %3961
        %v3963 = vrcp.pop %v3962
        %v3964 = vmul.f32 %v3962, %v3963
        %v3965 = vsub.f32 2.0, %v3964
        %v3966 = vmul.f32 %v3963, %v3965
        %v3967 = vmul.f32 %v3959, %v3966
        %v3968 = vadd.f32 %v3631, %v3967
        %v3969 = vpack.c.bf16 %v3967, %v3967
        %v3970 = vpack.c.bf16 %v3902, %v3899
        %v3972 = vsel %vm2939, %v3969, 0
        %3974 = vmatprep.subr.bf16.mxu0 0
        %3975 = vmatpush1.bf16.msra.mxu0 0
        %3976 = vmatprep.subr.bf16.mxu0 0
        %3977 = vmatpush1.bf16.msra.mxu0 0
        %3978 = vmatprep.subr.bf16.mxu0 0
        %3979 = vmatpush1.bf16.msra.mxu0 0
        %3980 = vmatprep.subr.bf16.mxu0 0
        %3981 = vmatpush1.bf16.msra.mxu0 0
        %3982 = vmatprep.subr.bf16.mxu0 0
        %3983 = vmatpush1.bf16.msra.mxu0 0
        %3984 = vmatprep.subr.bf16.mxu0 0
        %3985 = vmatpush1.bf16.msra.mxu0 0
        %3986 = vmatprep.subr.bf16.mxu0 0
        %3987 = vmatpush1.bf16.msra.mxu0 0
        %3988 = vmatprep.subr.bf16.mxu0 0
        %3989 = vmatpush1.bf16.msra.mxu0 %v3970
        %3990 = vmatprep.subr.bf16.mxu0 0
        %3991 = vmatpush2.bf16.msra.mxu0 0
        %3992 = vmatprep.subr.bf16.mxu0 0
        %3993 = vmatpush2.bf16.msra.mxu0 0
        %3994 = vmatprep.subr.bf16.mxu0 0
        %3995 = vmatpush2.bf16.msra.mxu0 0
        %3996 = vmatprep.subr.bf16.mxu0 0
        %3997 = vmatpush2.bf16.msra.mxu0 0
        %3998 = vmatprep.subr.bf16.mxu0 0
        %3999 = vmatpush2.bf16.msra.mxu0 0
        %4000 = vmatprep.subr.bf16.mxu0 0
        %4001 = vmatpush2.bf16.msra.mxu0 0
        %4002 = vmatprep.subr.bf16.mxu0 0
        %4003 = vmatpush2.bf16.msra.mxu0 0
        %4004 = vmatprep.subr.bf16.mxu0 0
        %4005 = vmatpush2.bf16.msra.mxu0 0
        %4006 = vmatprep.mubr.bf16.mxu0 0
        %4007 = vmatmul.mubr.bf16.gmra.mxu0 %v3972
        %v4008 = vpop.f32.mrf.mxu0
        %v4009 = vadd.f32 0.0, %v4008
        %v4010 = vpop.f32.mrf.mxu0
        %v4011 = vpop.f32.mrf.mxu0
        %v4012 = vpop.f32.mrf.mxu0
        %4013 = vdwg.mxu0
        %v4014 = vpack.c.bf16 %v4009, %v4009
        %v4016 = vsel %vm300, %v4014, 0
        %v4019 = vsel %vm574, %v3737, 0
        %4021 = vmatprep.subr.bf16.mxu0 0
        %4022 = vmatpush1.bf16.msra.mxu0 0
        %4023 = vmatprep.subr.bf16.mxu0 0
        %4024 = vmatpush1.bf16.msra.mxu0 0
        %4025 = vmatprep.subr.bf16.mxu0 0
        %4026 = vmatpush1.bf16.msra.mxu0 0
        %4027 = vmatprep.subr.bf16.mxu0 0
        %4028 = vmatpush1.bf16.msra.mxu0 0
        %4029 = vmatprep.subr.bf16.mxu0 0
        %4030 = vmatpush1.bf16.msra.mxu0 0
        %4031 = vmatprep.subr.bf16.mxu0 0
        %4032 = vmatpush1.bf16.msra.mxu0 0
        %4033 = vmatprep.subr.bf16.mxu0 0
        %4034 = vmatpush1.bf16.msra.mxu0 0
        %4035 = vmatprep.subr.bf16.mxu0 0
        %4036 = vmatpush1.bf16.msra.mxu0 %v4019
        %4037 = vmatprep.subr.bf16.mxu0 0
        %4038 = vmatpush2.bf16.msra.mxu0 0
        %4039 = vmatprep.subr.bf16.mxu0 0
        %4040 = vmatpush2.bf16.msra.mxu0 0
        %4041 = vmatprep.subr.bf16.mxu0 0
        %4042 = vmatpush2.bf16.msra.mxu0 0
        %4043 = vmatprep.subr.bf16.mxu0 0
        %4044 = vmatpush2.bf16.msra.mxu0 0
        %4045 = vmatprep.subr.bf16.mxu0 0
        %4046 = vmatpush2.bf16.msra.mxu0 0
        %4047 = vmatprep.subr.bf16.mxu0 0
        %4048 = vmatpush2.bf16.msra.mxu0 0
        %4049 = vmatprep.subr.bf16.mxu0 0
        %4050 = vmatpush2.bf16.msra.mxu0 0
        %4051 = vmatprep.subr.bf16.mxu0 0
        %4052 = vmatpush2.bf16.msra.mxu0 0
        %4053 = vmatprep.mubr.bf16.mxu0 0
        %4054 = vmatmul.mubr.bf16.gmra.mxu0 %v4016
        %v4055 = vpop.f32.mrf.mxu0
        %v4056 = vadd.f32 0.0, %v4055
        %v4057 = vpop.f32.mrf.mxu0
        %v4058 = vpop.f32.mrf.mxu0
        %v4059 = vpop.f32.mrf.mxu0
        %4060 = vdwg.mxu0
        %v4061 = vadd.f32 %v3724, %v4056
        %v4062 = vmul.f32 %v3968, 0.25
        %v4063 = vadd.f32 %v2689, %v4061
        %v4064 = vld [vmem:[#allocation2 + $0x300] sm:$0xf]
        %v4065 = vld [vmem:[#allocation2 + $0x304] sm:$0xf]
        %v4066 = vld [vmem:[#allocation2 + $0x308] sm:$0xf]
        %v4067 = vld [vmem:[#allocation2 + $0x30c] sm:$0xf]
        %v4068 = vld [vmem:[#allocation4 + $0x90] sm:$0x1]
        %v4069 = vpack.c.bf16 %v4063, %v4063
        %v4070 = vlaneseq
        %v4071 = vshrl.u32 %v4070, 7
        %v4072 = vsub.s32 0, %v4071
        %v4073 = vrot.slane %v4068, %v4072
        %v4078 = vunpack.c.l.b16 %v4064
        %v4079 = vunpack.c.l.b16 %v4065
        %v4080 = vunpack.c.l.b16 %v4066
        %v4081 = vunpack.c.l.b16 %v4067
        %v4082 = vpack.c.b16 %v4079, %v4078
        %v4083 = vpack.c.b16 %v4081, %v4080
        %v4087 = vsel %vm394, %v4069, 0
        %4089 = vmatprep.subr.bf16.mxu0 0
        %4090 = vmatpush1.bf16.msra.mxu0 0
        %4091 = vmatprep.subr.bf16.mxu0 0
        %4092 = vmatpush1.bf16.msra.mxu0 0
        %4093 = vmatprep.subr.bf16.mxu0 0
        %4094 = vmatpush1.bf16.msra.mxu0 0
        %4095 = vmatprep.subr.bf16.mxu0 0
        %4096 = vmatpush1.bf16.msra.mxu0 0
        %4097 = vmatprep.subr.bf16.mxu0 0
        %4098 = vmatpush1.bf16.msra.mxu0 0
        %4099 = vmatprep.subr.bf16.mxu0 0
        %4100 = vmatpush1.bf16.msra.mxu0 0
        %4101 = vmatprep.subr.bf16.mxu0 0
        %4102 = vmatpush1.bf16.msra.mxu0 %v4083
        %4103 = vmatprep.subr.bf16.mxu0 0
        %4104 = vmatpush1.bf16.msra.mxu0 %v4082
        %4105 = vmatprep.subr.bf16.mxu0 0
        %4106 = vmatpush2.bf16.msra.mxu0 0
        %4107 = vmatprep.subr.bf16.mxu0 0
        %4108 = vmatpush2.bf16.msra.mxu0 0
        %4109 = vmatprep.subr.bf16.mxu0 0
        %4110 = vmatpush2.bf16.msra.mxu0 0
        %4111 = vmatprep.subr.bf16.mxu0 0
        %4112 = vmatpush2.bf16.msra.mxu0 0
        %4113 = vmatprep.subr.bf16.mxu0 0
        %4114 = vmatpush2.bf16.msra.mxu0 0
        %4115 = vmatprep.subr.bf16.mxu0 0
        %4116 = vmatpush2.bf16.msra.mxu0 0
        %4117 = vmatprep.subr.bf16.mxu0 0
        %4118 = vmatpush2.bf16.msra.mxu0 0
        %4119 = vmatprep.subr.bf16.mxu0 0
        %4120 = vmatpush2.bf16.msra.mxu0 0
        %4121 = vmatprep.mubr.bf16.mxu0 0
        %4122 = vmatmul.mubr.bf16.gmra.mxu0 %v4087
        %v4123 = vpop.f32.mrf.mxu0
        %v4124 = vadd.f32 %v4073, %v4123
        %v4125 = vpop.f32.mrf.mxu0
        %v4126 = vpop.f32.mrf.mxu0
        %v4127 = vpop.f32.mrf.mxu0
        %4128 = vdwg.mxu0
        %4130 = vrot.lane.b32.xlu0 %v2688, 2
        %v4131 = vpop.permute.xlu0 %4130
        %4134 = vrot.lane.b32.xlu0 %v4062, 10
        %v4135 = vpop.permute.xlu0 %4134
        %vm4137 = vcmask 15360
        %v4138 = vsel %vm4137, %v4124, %v4131
        %vm4139 = vcmask 80896
        %v4140 = vsel %vm4139, %v4138, %v4135
        %vm4141 = vcmask 211968
        %v4142 = vsel %vm4141, %v4140, 0.0
        %4143 = vst [vmem:[%s242] sm:$0xff] %v4142
        %p4144 = scmp.lt.s32.totalorder %s17, 1
        %s4145 = scalar_select %p4144, %s17, 1
        %s4146 = smul.addr %s4145, 8
        %s4147 = scalar_lea.vmem %s4, %s4146
        // Predicated region
        $region45: #{forward.1} parent=35 // pred_check
          %p4148 = pneg %p129
        $region46: #{forward.1} parent=35 // pred_check_branch
          %4150 = sbr.rel (%p4148) target = $region48
        $region47: #{forward.1} parent=35 // pred_region
          _
        $region48: #{forward.1} parent=35 // pred_fallthru
          _
      $region36: #{forward.1} parent=5 // pred_fallthru
        _
      %p4151 = scmp.le.s32.totalorder 2, %s12
      // Predicated region
      $region49: #{forward.1} parent=5 // pred_check
        %p4152 = pneg %p4151
      $region50: #{forward.1} parent=5 // pred_check_branch
        %4154 = sbr.rel (%p4152) target = $region52
      $region51: #{forward.1} parent=5 // pred_region
        %s4155 = ssub.s32 %s12, 2
        // Predicated region
        $region53: #{forward.1} parent=51 // pred_check
          %p4156 = pneg %p135
        $region54: #{forward.1} parent=51 // pred_check_branch
          %4158 = sbr.rel (%p4156) target = $region56
        $region55: #{forward.1} parent=51 // pred_region
          %p4159 = scmp.lt.s32.totalorder %s18, 1
          %s4160 = scalar_select %p4159, %s18, 1
          %s4161 = smul.addr %s4160, 8
          %s4162 = scalar_lea.vmem %s4, %s4161
        $region56: #{forward.1} parent=51 // pred_fallthru
          _
      $region52: #{forward.1} parent=5 // pred_fallthru
        _
    $region6: #{forward.1} parent=1 // loop_footer
      %s16 = sadd.s32 1, %s12
    $region7: #{forward.1} parent=1 // loop_footer_branch
      %11 = sbr.rel target = $region3
    $region8: #{forward.1} parent=1 // loop_exit
      _
    %4163 = vsyncpa [#allocation3], 1
    %s4164 = scalar_lea.sflag [#allocation3], 1
    %4165 = vsyncpa %s4164, 1
    %4166 = vsyncpa [#allocation5], 1

</llo_original>
